<compile_context>
chip_gen: v7x
topology: tpu7x:2x2x1
jax: 0.10.0
libtpu: 0.0.40
codegen_flags: <defaults>
</compile_context>

<pallas_src>
import numpy as np
import jax
import jax.numpy as jnp
from jax.experimental import pallas as pl
from jax.experimental.pallas import tpu as pltpu

LOG_STD_MIN = -20.0
LOG_STD_MAX = 2.0


def _conv_out(size, k, s):
    return (size - (k - 1) - 1) // s + 1


def _round_up(x, m):
    return ((x + m - 1) // m) * m


# ----------------------------- fused Pallas kernel ---------------------------

def _policy_fused_kernel(p1_ref, w1_ref, b1_ref,
                         s2_ref, w2_ref, b2_ref,
                         s3_ref, w3_ref, b3_ref,
                         fc1w_ref, fc1b_ref, fc2w_ref, fc2b_ref,
                         headw_ref, meanb_ref, logstdb_ref,
                         mean_ref, logstd_ref,
                         g2_scratch):
    f32 = jnp.float32
    bf16 = jnp.bfloat16

    # ---- conv1: single matmul on the im2col patch matrix ----
    a1 = jnp.dot(p1_ref[...], w1_ref[...], preferred_element_type=f32)
    a1 = jnp.maximum(a1 + b1_ref[...], 0.0).astype(bf16)          # [B*8*8, 32]

    # ---- conv2: ONE stacked gather matmul, then 16 independent weight matmuls ----
    n_tap2 = w2_ref.shape[0]
    tp2 = s2_ref.shape[0] // n_tap2                                # padded rows per tap
    oc2 = w2_ref.shape[2]
    # Gather result is exact (0/1 selection of bf16 values); stage in VMEM to
    # keep vreg pressure low, then slice per tap at tile-aligned offsets.
    g2_scratch[...] = jnp.dot(s2_ref[...], a1,
                              preferred_element_type=f32).astype(bf16)
    acc2 = jnp.zeros((tp2, oc2), f32)
    for t in range(n_tap2):                                        # independent matmuls
        acc2 = acc2 + jnp.dot(g2_scratch[pl.ds(t * tp2, tp2), :], w2_ref[t],
                              preferred_element_type=f32)
    a2 = jnp.maximum(acc2 + b2_ref[...], 0.0).astype(bf16)        # [tp2, 64]

    # ---- conv3 (1x1 output spatial): 1 stacked gather + 9 independent matmuls ----
    n_tap3 = w3_ref.shape[0]
    tp3 = s3_ref.shape[0] // n_tap3
    oc3 = w3_ref.shape[2]
    g3 = jnp.dot(s3_ref[...], a2, preferred_element_type=f32).astype(bf16)   # [9*tp3, 64]
    acc3 = jnp.zeros((tp3, oc3), f32)
    for t in range(n_tap3):
        acc3 = acc3 + jnp.dot(g3[t * tp3:(t + 1) * tp3, :], w3_ref[t],
                              preferred_element_type=f32)
    feat = jnp.maximum(acc3 + b3_ref[...], 0.0).astype(bf16)      # [tp3, 64]

    # ---- MLP head: fc1 -> relu -> fc2 -> relu -> fused padded [mean | log_std] ----
    h1 = jnp.maximum(
        jnp.dot(feat, fc1w_ref[...], preferred_element_type=f32) + fc1b_ref[...],
        0.0).astype(bf16)
    h2 = jnp.maximum(
        jnp.dot(h1, fc2w_ref[...], preferred_element_type=f32) + fc2b_ref[...],
        0.0).astype(bf16)
    ho = jnp.dot(h2, headw_ref[...], preferred_element_type=f32)   # [tp3, 2*128]
    B, A = mean_ref.shape
    half = headw_ref.shape[1] // 2                                  # log_std block @ lane 128
    mean_ref[...] = ho[:B, :A] + meanb_ref[...]
    logstd_ref[...] = jnp.clip(ho[:B, half:half + A] + logstdb_ref[...],
                               LOG_STD_MIN, LOG_STD_MAX)


# ------------------------------ JAX-side wrapper ------------------------------

def _im2col_generic(x, kh, kw, stride):
    """x: [B,C,H,W] -> [B*OH*OW, C*KH*KW]; rows (b,oh,ow), features (c,i,j)."""
    B, C, H, W = x.shape
    OH = _conv_out(H, kh, stride)
    OW = _conv_out(W, kw, stride)
    cols = []
    for i in range(kh):
        for j in range(kw):
            cols.append(x[:, :, i:i + stride * (OH - 1) + 1:stride,
                               j:j + stride * (OW - 1) + 1:stride])
    col = jnp.stack(cols, axis=-1)                       # [B,C,OH,OW,KH*KW]
    return col.transpose(0, 2, 3, 1, 4).reshape(B * OH * OW, C * kh * kw)


def _im2col_conv1(x):
    """conv1 (k=8, s=4) im2col with only 4 slices + 1 transpose (cheap XLA prep)."""
    B, C, H, W = x.shape
    if H % 4 != 0 or W % 4 != 0:
        return _im2col_generic(x, 8, 8, 4)
    OH, OW = _conv_out(H, 8, 4), _conv_out(W, 8, 4)
    xb = x.reshape(B, C, H // 4, 4, W // 4, 4)
    blocks = []
    for di in range(2):
        for dj in range(2):
            blocks.append(xb[:, :, di:di + OH, :, dj:dj + OW, :])   # [B,C,OH,4,OW,4]
    p = jnp.stack(blocks, axis=0).reshape(2, 2, B, C, OH, 4, OW, 4)
    # feature order (c, i, j) with i = 4*di + ii, j = 4*dj + jj
    p = p.transpose(2, 4, 6, 3, 0, 5, 1, 7)              # [B,OH,OW,C,di,ii,dj,jj]
    return p.reshape(B * OH * OW, C * 64)


def policy_network_forward(x, kp):
    """x: [B, C, H, W] f32 (NCHW, like PyTorch). kp: dict from prepare_kernel_params."""
    B = x.shape[0]
    # NOTE: input patches are cast to bf16 (like the weights) before the MXU.
    patches = _im2col_conv1(x).astype(jnp.bfloat16)
    assert patches.shape[0] == kp["s2"].shape[1], \
        "kernel params were prepared for a different batch size / input shape"
    a_dim = kp["mean_b"].shape[1]
    t3 = kp["w3"].shape[0]
    assert B <= kp["s3"].shape[0] // t3

    ops = (patches, kp["w1"], kp["b1"],
           kp["s2"], kp["w2"], kp["b2"],
           kp["s3"], kp["w3"], kp["b3"],
           kp["fc1_w"], kp["fc1_b"], kp["fc2_w"], kp["fc2_b"],
           kp["head_w"], kp["mean_b"], kp["log_std_b"])

    # Advisory cost estimate so XLA schedules the tiny custom call sensibly.
    m1, k1 = patches.shape
    n1c = kp["w1"].shape[1]
    s2r = kp["s2"].shape[0]
    t2, ic2, oc2 = kp["w2"].shape
    tp2 = s2r // t2
    s3r = kp["s3"].shape[0]
    _, ic3, oc3 = kp["w3"].shape
    tp3 = s3r // t3
    hid = kp["fc2_w"].shape[0]
    hw_n = kp["head_w"].shape[1]
    flops = 2 * (m1 * k1 * n1c
                 + s2r * m1 * n1c + t2 * tp2 * ic2 * oc2
                 + s3r * tp2 * oc2 + t3 * tp3 * ic3 * oc3
                 + tp3 * (oc3 * hid + hid * hid + hid * hw_n))
    bytes_accessed = sum(int(np.prod(a.shape)) * a.dtype.itemsize for a in ops) \
        + 2 * B * a_dim * 4

    vmem = pl.BlockSpec(memory_space=pltpu.MemorySpace.VMEM)
    mean, log_std = pl.pallas_call(
        _policy_fused_kernel,
        out_shape=(jax.ShapeDtypeStruct((B, a_dim), jnp.float32),
                   jax.ShapeDtypeStruct((B, a_dim), jnp.float32)),
        in_specs=[vmem] * len(ops),
        out_specs=(vmem, vmem),
        scratch_shapes=[pltpu.VMEM((s2r, n1c), jnp.bfloat16)],   # staged conv2 gather
        compiler_params=pltpu.CompilerParams(
            # let XLA fuse the (cheap) im2col producer into the call's patch input
            allow_input_fusion=[True] + [False] * (len(ops) - 1)),
        cost_estimate=pl.CostEstimate(flops=flops, transcendentals=0,
                                      bytes_accessed=bytes_accessed),
    )(*ops)
    return mean, log_std


# ---------------------- one-time parameter preparation ------------------------

def _stacked_gather(batch, ih, iw, kh, kw, stride, rows_pad, in_rows_total):
    """Stacked 0/1 selection matrix implementing the per-tap row gather on the MXU.

    Shape [KH*KW*rows_pad, in_rows_total] bf16.  Rows [t*rows_pad + r_out] select
    input row (b, stride*oh+i, stride*ow+j) for output row r_out=(b,oh,ow) of tap
    t=i*KW+j; padding rows (r_out >= batch*OH*OW) are all-zero.
    """
    oh = _conv_out(ih, kh, stride)
    ow = _conv_out(iw, kw, stride)
    assert batch * oh * ow <= rows_pad
    sel = np.zeros((kh * kw * rows_pad, in_rows_total), np.float32)
    for i in range(kh):
        for j in range(kw):
            t = i * kw + j
            for b in range(batch):
                for r in range(oh):
                    for c in range(ow):
                        r_out = (b * oh + r) * ow + c
                        r_in = (b * ih + stride * r + i) * iw + (stride * c + j)
                        sel[t * rows_pad + r_out, r_in] = 1.0
    return jnp.asarray(sel, dtype=jnp.bfloat16)


def prepare_kernel_params(params, input_shape, batch):
    """One-time transform of PyTorch-layout params into kernel-ready operands."""
    C, H, W = input_shape
    bf16, f32 = jnp.bfloat16, jnp.float32

    oc1, _, kh1, kw1 = params["conv1_w"].shape
    oc2, ic2, kh2, kw2 = params["conv2_w"].shape
    oc3, ic3, kh3, kw3 = params["conv3_w"].shape
    oh1, ow1 = _conv_out(H, kh1, 4), _conv_out(W, kw1, 4)
    oh2, ow2 = _conv_out(oh1, kh2, 2), _conv_out(ow1, kw2, 2)
    oh3, ow3 = _conv_out(oh2, kh3, 1), _conv_out(ow2, kw3, 1)
    # TODO(synk): for conv3 output spatial > 1x1 one extra constant gather is
    # needed to reproduce PyTorch's NCHW flatten order before fc1.
    assert oh3 == 1 and ow3 == 1, "fused kernel assumes conv3 output is 1x1"

    n1 = batch * oh1 * ow1
    tp2 = _round_up(max(batch * oh2 * ow2, 16), 16)   # padded rows per conv2 tap
    tp3 = _round_up(max(batch, 16), 16)               # padded rows per conv3 tap

    kp = {}
    kp["w1"] = params["conv1_w"].reshape(oc1, -1).T.astype(bf16)              # [C*64, 32]
    kp["b1"] = params["conv1_b"].reshape(1, -1).astype(f32)

    kp["s2"] = _stacked_gather(batch, oh1, ow1, kh2, kw2, 2, tp2, n1)         # [16*tp2, n1]
    kp["w2"] = jnp.transpose(params["conv2_w"], (2, 3, 1, 0)) \
                  .reshape(kh2 * kw2, ic2, oc2).astype(bf16)                  # [16, 32, 64]
    kp["b2"] = params["conv2_b"].reshape(1, -1).astype(f32)

    kp["s3"] = _stacked_gather(batch, oh2, ow2, kh3, kw3, 1, tp3, tp2)        # [9*tp3, tp2]
    kp["w3"] = jnp.transpose(params["conv3_w"], (2, 3, 1, 0)) \
                  .reshape(kh3 * kw3, ic3, oc3).astype(bf16)                  # [9, 64, 64]
    kp["b3"] = params["conv3_b"].reshape(1, -1).astype(f32)

    kp["fc1_w"] = params["fc1_w"].astype(bf16)
    kp["fc1_b"] = params["fc1_b"].astype(f32)
    kp["fc2_w"] = params["fc2_w"].astype(bf16)
    kp["fc2_b"] = params["fc2_b"].astype(f32)

    # Head: mean at lanes [0, A), log_std at lanes [128, 128+A) -> aligned slices.
    hid = params["fc2_w"].shape[1]
    a_dim = params["mean_w"].shape[1]
    assert a_dim <= 128
    half = 128
    hw = jnp.zeros((hid, 2 * half), f32)
    hw = hw.at[:, :a_dim].set(params["mean_w"])
    hw = hw.at[:, half:half + a_dim].set(params["log_std_w"])
    kp["head_w"] = hw.astype(bf16)                                            # [hid, 256]
    kp["mean_b"] = params["mean_b"].reshape(1, -1).astype(f32)                # [1, A]
    kp["log_std_b"] = params["log_std_b"].reshape(1, -1).astype(f32)          # [1, A]
    return kp


# --------------------------- parameter construction ---------------------------

def _uniform(key, shape, fan_in):
    bound = 1.0 / float(np.sqrt(fan_in))
    return jax.random.uniform(key, shape, jnp.float32, -bound, bound)


def init_params(key, input_shape, action_dim, hidden_dim=256):
    C, H, W = input_shape
    convw = _conv_out(_conv_out(_conv_out(W, 8, 4), 4, 2), 3, 1)
    convh = _conv_out(_conv_out(_conv_out(H, 8, 4), 4, 2), 3, 1)
    feature_size = convw * convh * 64

    keys = jax.random.split(key, 14)
    p = {}
    # conv weights in PyTorch layout [OC, IC, KH, KW]
    p["conv1_w"] = _uniform(keys[0], (32, C, 8, 8), C * 8 * 8)
    p["conv1_b"] = _uniform(keys[1], (32,), C * 8 * 8)
    p["conv2_w"] = _uniform(keys[2], (64, 32, 4, 4), 32 * 4 * 4)
    p["conv2_b"] = _uniform(keys[3], (64,), 32 * 4 * 4)
    p["conv3_w"] = _uniform(keys[4], (64, 64, 3, 3), 64 * 3 * 3)
    p["conv3_b"] = _uniform(keys[5], (64,), 64 * 3 * 3)
    # linear weights stored as [in, out]; biases as [1, out]
    p["fc1_w"] = _uniform(keys[6], (feature_size, hidden_dim), feature_size)
    p["fc1_b"] = _uniform(keys[7], (1, hidden_dim), feature_size)
    p["fc2_w"] = _uniform(keys[8], (hidden_dim, hidden_dim), hidden_dim)
    p["fc2_b"] = _uniform(keys[9], (1, hidden_dim), hidden_dim)
    p["mean_w"] = _uniform(keys[10], (hidden_dim, action_dim), hidden_dim)
    p["mean_b"] = _uniform(keys[11], (1, action_dim), hidden_dim)
    p["log_std_w"] = _uniform(keys[12], (hidden_dim, action_dim), hidden_dim)
    p["log_std_b"] = _uniform(keys[13], (1, action_dim), hidden_dim)
    return p


# ------------------------------ plain-JAX reference ----------------------------

def _reference_forward(x, params):
    def conv(h, w, b, s):
        out = jax.lax.conv_general_dilated(
            h, w, window_strides=(s, s), padding="VALID",
            dimension_numbers=("NCHW", "OIHW", "NCHW"))
        return jax.nn.relu(out + b.reshape(1, -1, 1, 1))

    h = conv(x, params["conv1_w"], params["conv1_b"], 4)
    h = conv(h, params["conv2_w"], params["conv2_b"], 2)
    h = conv(h, params["conv3_w"], params["conv3_b"], 1)
    f = h.reshape(h.shape[0], -1)                       # NCHW flatten
    f = jax.nn.relu(f @ params["fc1_w"] + params["fc1_b"])
    f = jax.nn.relu(f @ params["fc2_w"] + params["fc2_b"])
    mean = f @ params["mean_w"] + params["mean_b"]
    log_std = jnp.clip(f @ params["log_std_w"] + params["log_std_b"],
                       LOG_STD_MIN, LOG_STD_MAX)
    return mean, log_std


# ----------------------------------- main --------------------------------------

if __name__ == "__main__":
    key = jax.random.PRNGKey(0)
    k_x, k_p = jax.random.split(key)

    # Smallest spatial size compatible with the conv stack (8/4 -> 4/2 -> 3/1)
    # is 36: 36 -> 8 -> 3 -> 1, giving feature_size = 64.
    B, C, H, W = 2, 4, 36, 36
    action_dim, hidden_dim = 6, 256

    x = jax.random.normal(k_x, (B, C, H, W), jnp.float32)     # NCHW, like PyTorch
    params = init_params(k_p, (C, H, W), action_dim, hidden_dim)
    kp = prepare_kernel_params(params, (C, H, W), B)

    fwd = jax.jit(policy_network_forward)
    mean, log_std = fwd(x, kp)
    jax.block_until_ready((mean, log_std))

    assert mean.shape == (B, action_dim)
    assert log_std.shape == (B, action_dim)
    assert bool(jnp.all(log_std >= LOG_STD_MIN)) and bool(jnp.all(log_std <= LOG_STD_MAX))

    # correctness vs. plain-JAX f32 reference (bf16 MXU operands -> loose tol)
    ref_mean, ref_log_std = _reference_forward(x, params)
    err = max(float(jnp.max(jnp.abs(mean - ref_mean))),
              float(jnp.max(jnp.abs(log_std - ref_log_std))))
    assert err < 5e-2, f"mismatch vs reference: max abs err = {err}"

    print("KERNEL_OK")
</pallas_src>

<mosaic_0001>
module attributes {stable_mosaic.version = 11 : i64} {
  func.func @_policy_fused_kernel(%arg0: memref<128x256xbf16, #tpu.memory_space<vmem>>, %arg1: memref<256x32xbf16, #tpu.memory_space<vmem>>, %arg2: memref<1x32xf32, #tpu.memory_space<vmem>>, %arg3: memref<512x128xbf16, #tpu.memory_space<vmem>>, %arg4: memref<16x32x64xbf16, #tpu.memory_space<vmem>>, %arg5: memref<1x64xf32, #tpu.memory_space<vmem>>, %arg6: memref<144x32xbf16, #tpu.memory_space<vmem>>, %arg7: memref<9x64x64xbf16, #tpu.memory_space<vmem>>, %arg8: memref<1x64xf32, #tpu.memory_space<vmem>>, %arg9: memref<64x256xbf16, #tpu.memory_space<vmem>>, %arg10: memref<1x256xf32, #tpu.memory_space<vmem>>, %arg11: memref<256x256xbf16, #tpu.memory_space<vmem>>, %arg12: memref<1x256xf32, #tpu.memory_space<vmem>>, %arg13: memref<256x256xbf16, #tpu.memory_space<vmem>>, %arg14: memref<1x6xf32, #tpu.memory_space<vmem>>, %arg15: memref<1x6xf32, #tpu.memory_space<vmem>>, %arg16: memref<2x6xf32, #tpu.memory_space<vmem>>, %arg17: memref<2x6xf32, #tpu.memory_space<vmem>>, %arg18: memref<512x32xbf16, #tpu.memory_space<vmem>>) attributes {dimension_semantics = [], scalar_prefetch = 0 : i64, scratch_operands = 1 : i64, tpu.core_type = #tpu.core_type<tc>} {
    %c0 = arith.constant 0 : index
    %c0_0 = arith.constant 0 : index
    %0 = vector.load %arg0[%c0, %c0_0] : memref<128x256xbf16, #tpu.memory_space<vmem>>, vector<128x256xbf16>
    %c0_1 = arith.constant 0 : index
    %c0_2 = arith.constant 0 : index
    %1 = vector.load %arg1[%c0_1, %c0_2] : memref<256x32xbf16, #tpu.memory_space<vmem>>, vector<256x32xbf16>
    %cst = arith.constant dense<0.000000e+00> : vector<128x32xf32>
    %2 = tpu.matmul %0, %1, %cst {dimension_numbers = #tpu.dot_dimension_numbers<[1], [0], [0], [1], [0, 0, 1, 1], [], []>} : vector<128x256xbf16>, vector<256x32xbf16>, vector<128x32xf32> -> vector<128x32xf32>
    %c0_3 = arith.constant 0 : index
    %c0_4 = arith.constant 0 : index
    %3 = vector.load %arg2[%c0_3, %c0_4] : memref<1x32xf32, #tpu.memory_space<vmem>>, vector<1x32xf32>
    %4 = vector.broadcast %3 : vector<1x32xf32> to vector<128x32xf32>
    %5 = arith.addf %2, %4 : vector<128x32xf32>
    %cst_5 = arith.constant 0.000000e+00 : f32
    %6 = vector.broadcast %cst_5 : f32 to vector<128x32xf32>
    %7 = arith.maximumf %5, %6 : vector<128x32xf32>
    %8 = arith.truncf %7 : vector<128x32xf32> to vector<128x32xbf16>
    %c0_6 = arith.constant 0 : index
    %c0_7 = arith.constant 0 : index
    %9 = vector.load %arg3[%c0_6, %c0_7] : memref<512x128xbf16, #tpu.memory_space<vmem>>, vector<512x128xbf16>
    %cst_8 = arith.constant dense<0.000000e+00> : vector<512x32xf32>
    %10 = tpu.matmul %9, %8, %cst_8 {dimension_numbers = #tpu.dot_dimension_numbers<[1], [0], [0], [1], [0, 0, 1, 1], [], []>} : vector<512x128xbf16>, vector<128x32xbf16>, vector<512x32xf32> -> vector<512x32xf32>
    %11 = arith.truncf %10 : vector<512x32xf32> to vector<512x32xbf16>
    %c0_9 = arith.constant 0 : index
    %c0_10 = arith.constant 0 : index
    %12 = vector.load %arg18[%c0_9, %c0_10] : memref<512x32xbf16, #tpu.memory_space<vmem>>, vector<512x32xbf16>
    tpu.vector_store %arg18[%c0_9, %c0_10], %11 {strides = array<i32>} : memref<512x32xbf16, #tpu.memory_space<vmem>>, vector<512x32xbf16>,
    %cst_11 = arith.constant 0.000000e+00 : f32
    %13 = vector.broadcast %cst_11 : f32 to vector<32x64xf32>
    %c0_12 = arith.constant 0 : index
    %c0_13 = arith.constant 0 : index
    %14 = vector.load %arg18[%c0_12, %c0_13] : memref<512x32xbf16, #tpu.memory_space<vmem>>, vector<32x32xbf16>
    %c0_14 = arith.constant 0 : index
    %c0_15 = arith.constant 0 : index
    %c0_16 = arith.constant 0 : index
    %15 = vector.load %arg4[%c0_14, %c0_15, %c0_16] : memref<16x32x64xbf16, #tpu.memory_space<vmem>>, vector<1x32x64xbf16>
    %16 = vector.shape_cast %15 : vector<1x32x64xbf16> to vector<32x64xbf16>
    %cst_17 = arith.constant dense<0.000000e+00> : vector<32x64xf32>
    %17 = tpu.matmul %14, %16, %cst_17 {dimension_numbers = #tpu.dot_dimension_numbers<[1], [0], [0], [1], [0, 0, 1, 1], [], []>} : vector<32x32xbf16>, vector<32x64xbf16>, vector<32x64xf32> -> vector<32x64xf32>
    %18 = arith.addf %13, %17 : vector<32x64xf32>
    %c32 = arith.constant 32 : index
    %c0_18 = arith.constant 0 : index
    %19 = vector.load %arg18[%c32, %c0_18] : memref<512x32xbf16, #tpu.memory_space<vmem>>, vector<32x32xbf16>
    %c1 = arith.constant 1 : index
    %c0_19 = arith.constant 0 : index
    %c0_20 = arith.constant 0 : index
    %20 = vector.load %arg4[%c1, %c0_19, %c0_20] : memref<16x32x64xbf16, #tpu.memory_space<vmem>>, vector<1x32x64xbf16>
    %21 = vector.shape_cast %20 : vector<1x32x64xbf16> to vector<32x64xbf16>
    %cst_21 = arith.constant dense<0.000000e+00> : vector<32x64xf32>
    %22 = tpu.matmul %19, %21, %cst_21 {dimension_numbers = #tpu.dot_dimension_numbers<[1], [0], [0], [1], [0, 0, 1, 1], [], []>} : vector<32x32xbf16>, vector<32x64xbf16>, vector<32x64xf32> -> vector<32x64xf32>
    %23 = arith.addf %18, %22 : vector<32x64xf32>
    %c64 = arith.constant 64 : index
    %c0_22 = arith.constant 0 : index
    %24 = vector.load %arg18[%c64, %c0_22] : memref<512x32xbf16, #tpu.memory_space<vmem>>, vector<32x32xbf16>
    %c2 = arith.constant 2 : index
    %c0_23 = arith.constant 0 : index
    %c0_24 = arith.constant 0 : index
    %25 = vector.load %arg4[%c2, %c0_23, %c0_24] : memref<16x32x64xbf16, #tpu.memory_space<vmem>>, vector<1x32x64xbf16>
    %26 = vector.shape_cast %25 : vector<1x32x64xbf16> to vector<32x64xbf16>
    %cst_25 = arith.constant dense<0.000000e+00> : vector<32x64xf32>
    %27 = tpu.matmul %24, %26, %cst_25 {dimension_numbers = #tpu.dot_dimension_numbers<[1], [0], [0], [1], [0, 0, 1, 1], [], []>} : vector<32x32xbf16>, vector<32x64xbf16>, vector<32x64xf32> -> vector<32x64xf32>
    %28 = arith.addf %23, %27 : vector<32x64xf32>
    %c96 = arith.constant 96 : index
    %c0_26 = arith.constant 0 : index
    %29 = vector.load %arg18[%c96, %c0_26] : memref<512x32xbf16, #tpu.memory_space<vmem>>, vector<32x32xbf16>
    %c3 = arith.constant 3 : index
    %c0_27 = arith.constant 0 : index
    %c0_28 = arith.constant 0 : index
    %30 = vector.load %arg4[%c3, %c0_27, %c0_28] : memref<16x32x64xbf16, #tpu.memory_space<vmem>>, vector<1x32x64xbf16>
    %31 = vector.shape_cast %30 : vector<1x32x64xbf16> to vector<32x64xbf16>
    %cst_29 = arith.constant dense<0.000000e+00> : vector<32x64xf32>
    %32 = tpu.matmul %29, %31, %cst_29 {dimension_numbers = #tpu.dot_dimension_numbers<[1], [0], [0], [1], [0, 0, 1, 1], [], []>} : vector<32x32xbf16>, vector<32x64xbf16>, vector<32x64xf32> -> vector<32x64xf32>
    %33 = arith.addf %28, %32 : vector<32x64xf32>
    %c128 = arith.constant 128 : index
    %c0_30 = arith.constant 0 : index
    %34 = vector.load %arg18[%c128, %c0_30] : memref<512x32xbf16, #tpu.memory_space<vmem>>, vector<32x32xbf16>
    %c4 = arith.constant 4 : index
    %c0_31 = arith.constant 0 : index
    %c0_32 = arith.constant 0 : index
    %35 = vector.load %arg4[%c4, %c0_31, %c0_32] : memref<16x32x64xbf16, #tpu.memory_space<vmem>>, vector<1x32x64xbf16>
    %36 = vector.shape_cast %35 : vector<1x32x64xbf16> to vector<32x64xbf16>
    %cst_33 = arith.constant dense<0.000000e+00> : vector<32x64xf32>
    %37 = tpu.matmul %34, %36, %cst_33 {dimension_numbers = #tpu.dot_dimension_numbers<[1], [0], [0], [1], [0, 0, 1, 1], [], []>} : vector<32x32xbf16>, vector<32x64xbf16>, vector<32x64xf32> -> vector<32x64xf32>
    %38 = arith.addf %33, %37 : vector<32x64xf32>
    %c160 = arith.constant 160 : index
    %c0_34 = arith.constant 0 : index
    %39 = vector.load %arg18[%c160, %c0_34] : memref<512x32xbf16, #tpu.memory_space<vmem>>, vector<32x32xbf16>
    %c5 = arith.constant 5 : index
    %c0_35 = arith.constant 0 : index
    %c0_36 = arith.constant 0 : index
    %40 = vector.load %arg4[%c5, %c0_35, %c0_36] : memref<16x32x64xbf16, #tpu.memory_space<vmem>>, vector<1x32x64xbf16>
    %41 = vector.shape_cast %40 : vector<1x32x64xbf16> to vector<32x64xbf16>
    %cst_37 = arith.constant dense<0.000000e+00> : vector<32x64xf32>
    %42 = tpu.matmul %39, %41, %cst_37 {dimension_numbers = #tpu.dot_dimension_numbers<[1], [0], [0], [1], [0, 0, 1, 1], [], []>} : vector<32x32xbf16>, vector<32x64xbf16>, vector<32x64xf32> -> vector<32x64xf32>
    %43 = arith.addf %38, %42 : vector<32x64xf32>
    %c192 = arith.constant 192 : index
    %c0_38 = arith.constant 0 : index
    %44 = vector.load %arg18[%c192, %c0_38] : memref<512x32xbf16, #tpu.memory_space<vmem>>, vector<32x32xbf16>
    %c6 = arith.constant 6 : index
    %c0_39 = arith.constant 0 : index
    %c0_40 = arith.constant 0 : index
    %45 = vector.load %arg4[%c6, %c0_39, %c0_40] : memref<16x32x64xbf16, #tpu.memory_space<vmem>>, vector<1x32x64xbf16>
    %46 = vector.shape_cast %45 : vector<1x32x64xbf16> to vector<32x64xbf16>
    %cst_41 = arith.constant dense<0.000000e+00> : vector<32x64xf32>
    %47 = tpu.matmul %44, %46, %cst_41 {dimension_numbers = #tpu.dot_dimension_numbers<[1], [0], [0], [1], [0, 0, 1, 1], [], []>} : vector<32x32xbf16>, vector<32x64xbf16>, vector<32x64xf32> -> vector<32x64xf32>
    %48 = arith.addf %43, %47 : vector<32x64xf32>
    %c224 = arith.constant 224 : index
    %c0_42 = arith.constant 0 : index
    %49 = vector.load %arg18[%c224, %c0_42] : memref<512x32xbf16, #tpu.memory_space<vmem>>, vector<32x32xbf16>
    %c7 = arith.constant 7 : index
    %c0_43 = arith.constant 0 : index
    %c0_44 = arith.constant 0 : index
    %50 = vector.load %arg4[%c7, %c0_43, %c0_44] : memref<16x32x64xbf16, #tpu.memory_space<vmem>>, vector<1x32x64xbf16>
    %51 = vector.shape_cast %50 : vector<1x32x64xbf16> to vector<32x64xbf16>
    %cst_45 = arith.constant dense<0.000000e+00> : vector<32x64xf32>
    %52 = tpu.matmul %49, %51, %cst_45 {dimension_numbers = #tpu.dot_dimension_numbers<[1], [0], [0], [1], [0, 0, 1, 1], [], []>} : vector<32x32xbf16>, vector<32x64xbf16>, vector<32x64xf32> -> vector<32x64xf32>
    %53 = arith.addf %48, %52 : vector<32x64xf32>
    %c256 = arith.constant 256 : index
    %c0_46 = arith.constant 0 : index
    %54 = vector.load %arg18[%c256, %c0_46] : memref<512x32xbf16, #tpu.memory_space<vmem>>, vector<32x32xbf16>
    %c8 = arith.constant 8 : index
    %c0_47 = arith.constant 0 : index
    %c0_48 = arith.constant 0 : index
    %55 = vector.load %arg4[%c8, %c0_47, %c0_48] : memref<16x32x64xbf16, #tpu.memory_space<vmem>>, vector<1x32x64xbf16>
    %56 = vector.shape_cast %55 : vector<1x32x64xbf16> to vector<32x64xbf16>
    %cst_49 = arith.constant dense<0.000000e+00> : vector<32x64xf32>
    %57 = tpu.matmul %54, %56, %cst_49 {dimension_numbers = #tpu.dot_dimension_numbers<[1], [0], [0], [1], [0, 0, 1, 1], [], []>} : vector<32x32xbf16>, vector<32x64xbf16>, vector<32x64xf32> -> vector<32x64xf32>
    %58 = arith.addf %53, %57 : vector<32x64xf32>
    %c288 = arith.constant 288 : index
    %c0_50 = arith.constant 0 : index
    %59 = vector.load %arg18[%c288, %c0_50] : memref<512x32xbf16, #tpu.memory_space<vmem>>, vector<32x32xbf16>
    %c9 = arith.constant 9 : index
    %c0_51 = arith.constant 0 : index
    %c0_52 = arith.constant 0 : index
    %60 = vector.load %arg4[%c9, %c0_51, %c0_52] : memref<16x32x64xbf16, #tpu.memory_space<vmem>>, vector<1x32x64xbf16>
    %61 = vector.shape_cast %60 : vector<1x32x64xbf16> to vector<32x64xbf16>
    %cst_53 = arith.constant dense<0.000000e+00> : vector<32x64xf32>
    %62 = tpu.matmul %59, %61, %cst_53 {dimension_numbers = #tpu.dot_dimension_numbers<[1], [0], [0], [1], [0, 0, 1, 1], [], []>} : vector<32x32xbf16>, vector<32x64xbf16>, vector<32x64xf32> -> vector<32x64xf32>
    %63 = arith.addf %58, %62 : vector<32x64xf32>
    %c320 = arith.constant 320 : index
    %c0_54 = arith.constant 0 : index
    %64 = vector.load %arg18[%c320, %c0_54] : memref<512x32xbf16, #tpu.memory_space<vmem>>, vector<32x32xbf16>
    %c10 = arith.constant 10 : index
    %c0_55 = arith.constant 0 : index
    %c0_56 = arith.constant 0 : index
    %65 = vector.load %arg4[%c10, %c0_55, %c0_56] : memref<16x32x64xbf16, #tpu.memory_space<vmem>>, vector<1x32x64xbf16>
    %66 = vector.shape_cast %65 : vector<1x32x64xbf16> to vector<32x64xbf16>
    %cst_57 = arith.constant dense<0.000000e+00> : vector<32x64xf32>
    %67 = tpu.matmul %64, %66, %cst_57 {dimension_numbers = #tpu.dot_dimension_numbers<[1], [0], [0], [1], [0, 0, 1, 1], [], []>} : vector<32x32xbf16>, vector<32x64xbf16>, vector<32x64xf32> -> vector<32x64xf32>
    %68 = arith.addf %63, %67 : vector<32x64xf32>
    %c352 = arith.constant 352 : index
    %c0_58 = arith.constant 0 : index
    %69 = vector.load %arg18[%c352, %c0_58] : memref<512x32xbf16, #tpu.memory_space<vmem>>, vector<32x32xbf16>
    %c11 = arith.constant 11 : index
    %c0_59 = arith.constant 0 : index
    %c0_60 = arith.constant 0 : index
    %70 = vector.load %arg4[%c11, %c0_59, %c0_60] : memref<16x32x64xbf16, #tpu.memory_space<vmem>>, vector<1x32x64xbf16>
    %71 = vector.shape_cast %70 : vector<1x32x64xbf16> to vector<32x64xbf16>
    %cst_61 = arith.constant dense<0.000000e+00> : vector<32x64xf32>
    %72 = tpu.matmul %69, %71, %cst_61 {dimension_numbers = #tpu.dot_dimension_numbers<[1], [0], [0], [1], [0, 0, 1, 1], [], []>} : vector<32x32xbf16>, vector<32x64xbf16>, vector<32x64xf32> -> vector<32x64xf32>
    %73 = arith.addf %68, %72 : vector<32x64xf32>
    %c384 = arith.constant 384 : index
    %c0_62 = arith.constant 0 : index
    %74 = vector.load %arg18[%c384, %c0_62] : memref<512x32xbf16, #tpu.memory_space<vmem>>, vector<32x32xbf16>
    %c12 = arith.constant 12 : index
    %c0_63 = arith.constant 0 : index
    %c0_64 = arith.constant 0 : index
    %75 = vector.load %arg4[%c12, %c0_63, %c0_64] : memref<16x32x64xbf16, #tpu.memory_space<vmem>>, vector<1x32x64xbf16>
    %76 = vector.shape_cast %75 : vector<1x32x64xbf16> to vector<32x64xbf16>
    %cst_65 = arith.constant dense<0.000000e+00> : vector<32x64xf32>
    %77 = tpu.matmul %74, %76, %cst_65 {dimension_numbers = #tpu.dot_dimension_numbers<[1], [0], [0], [1], [0, 0, 1, 1], [], []>} : vector<32x32xbf16>, vector<32x64xbf16>, vector<32x64xf32> -> vector<32x64xf32>
    %78 = arith.addf %73, %77 : vector<32x64xf32>
    %c416 = arith.constant 416 : index
    %c0_66 = arith.constant 0 : index
    %79 = vector.load %arg18[%c416, %c0_66] : memref<512x32xbf16, #tpu.memory_space<vmem>>, vector<32x32xbf16>
    %c13 = arith.constant 13 : index
    %c0_67 = arith.constant 0 : index
    %c0_68 = arith.constant 0 : index
    %80 = vector.load %arg4[%c13, %c0_67, %c0_68] : memref<16x32x64xbf16, #tpu.memory_space<vmem>>, vector<1x32x64xbf16>
    %81 = vector.shape_cast %80 : vector<1x32x64xbf16> to vector<32x64xbf16>
    %cst_69 = arith.constant dense<0.000000e+00> : vector<32x64xf32>
    %82 = tpu.matmul %79, %81, %cst_69 {dimension_numbers = #tpu.dot_dimension_numbers<[1], [0], [0], [1], [0, 0, 1, 1], [], []>} : vector<32x32xbf16>, vector<32x64xbf16>, vector<32x64xf32> -> vector<32x64xf32>
    %83 = arith.addf %78, %82 : vector<32x64xf32>
    %c448 = arith.constant 448 : index
    %c0_70 = arith.constant 0 : index
    %84 = vector.load %arg18[%c448, %c0_70] : memref<512x32xbf16, #tpu.memory_space<vmem>>, vector<32x32xbf16>
    %c14 = arith.constant 14 : index
    %c0_71 = arith.constant 0 : index
    %c0_72 = arith.constant 0 : index
    %85 = vector.load %arg4[%c14, %c0_71, %c0_72] : memref<16x32x64xbf16, #tpu.memory_space<vmem>>, vector<1x32x64xbf16>
    %86 = vector.shape_cast %85 : vector<1x32x64xbf16> to vector<32x64xbf16>
    %cst_73 = arith.constant dense<0.000000e+00> : vector<32x64xf32>
    %87 = tpu.matmul %84, %86, %cst_73 {dimension_numbers = #tpu.dot_dimension_numbers<[1], [0], [0], [1], [0, 0, 1, 1], [], []>} : vector<32x32xbf16>, vector<32x64xbf16>, vector<32x64xf32> -> vector<32x64xf32>
    %88 = arith.addf %83, %87 : vector<32x64xf32>
    %c480 = arith.constant 480 : index
    %c0_74 = arith.constant 0 : index
    %89 = vector.load %arg18[%c480, %c0_74] : memref<512x32xbf16, #tpu.memory_space<vmem>>, vector<32x32xbf16>
    %c15 = arith.constant 15 : index
    %c0_75 = arith.constant 0 : index
    %c0_76 = arith.constant 0 : index
    %90 = vector.load %arg4[%c15, %c0_75, %c0_76] : memref<16x32x64xbf16, #tpu.memory_space<vmem>>, vector<1x32x64xbf16>
    %91 = vector.shape_cast %90 : vector<1x32x64xbf16> to vector<32x64xbf16>
    %cst_77 = arith.constant dense<0.000000e+00> : vector<32x64xf32>
    %92 = tpu.matmul %89, %91, %cst_77 {dimension_numbers = #tpu.dot_dimension_numbers<[1], [0], [0], [1], [0, 0, 1, 1], [], []>} : vector<32x32xbf16>, vector<32x64xbf16>, vector<32x64xf32> -> vector<32x64xf32>
    %93 = arith.addf %88, %92 : vector<32x64xf32>
    %c0_78 = arith.constant 0 : index
    %c0_79 = arith.constant 0 : index
    %94 = vector.load %arg5[%c0_78, %c0_79] : memref<1x64xf32, #tpu.memory_space<vmem>>, vector<1x64xf32>
    %95 = vector.broadcast %94 : vector<1x64xf32> to vector<32x64xf32>
    %96 = arith.addf %93, %95 : vector<32x64xf32>
    %cst_80 = arith.constant 0.000000e+00 : f32
    %97 = vector.broadcast %cst_80 : f32 to vector<32x64xf32>
    %98 = arith.maximumf %96, %97 : vector<32x64xf32>
    %99 = arith.truncf %98 : vector<32x64xf32> to vector<32x64xbf16>
    %c0_81 = arith.constant 0 : index
    %c0_82 = arith.constant 0 : index
    %100 = vector.load %arg6[%c0_81, %c0_82] : memref<144x32xbf16, #tpu.memory_space<vmem>>, vector<144x32xbf16>
    %cst_83 = arith.constant dense<0.000000e+00> : vector<144x64xf32>
    %101 = tpu.matmul %100, %99, %cst_83 {dimension_numbers = #tpu.dot_dimension_numbers<[1], [0], [0], [1], [0, 0, 1, 1], [], []>} : vector<144x32xbf16>, vector<32x64xbf16>, vector<144x64xf32> -> vector<144x64xf32>
    %102 = arith.truncf %101 : vector<144x64xf32> to vector<144x64xbf16>
    %cst_84 = arith.constant 0.000000e+00 : f32
    %103 = vector.broadcast %cst_84 : f32 to vector<16x64xf32>
    %104 = vector.extract_strided_slice %102 {offsets = [0, 0], sizes = [16, 64], strides = [1, 1]} : vector<144x64xbf16> to vector<16x64xbf16>
    %c0_85 = arith.constant 0 : index
    %c0_86 = arith.constant 0 : index
    %c0_87 = arith.constant 0 : index
    %105 = vector.load %arg7[%c0_85, %c0_86, %c0_87] : memref<9x64x64xbf16, #tpu.memory_space<vmem>>, vector<1x64x64xbf16>
    %106 = vector.shape_cast %105 : vector<1x64x64xbf16> to vector<64x64xbf16>
    %cst_88 = arith.constant dense<0.000000e+00> : vector<16x64xf32>
    %107 = tpu.matmul %104, %106, %cst_88 {dimension_numbers = #tpu.dot_dimension_numbers<[1], [0], [0], [1], [0, 0, 1, 1], [], []>} : vector<16x64xbf16>, vector<64x64xbf16>, vector<16x64xf32> -> vector<16x64xf32>
    %108 = arith.addf %103, %107 : vector<16x64xf32>
    %109 = vector.extract_strided_slice %102 {offsets = [16, 0], sizes = [16, 64], strides = [1, 1]} : vector<144x64xbf16> to vector<16x64xbf16>
    %c1_89 = arith.constant 1 : index
    %c0_90 = arith.constant 0 : index
    %c0_91 = arith.constant 0 : index
    %110 = vector.load %arg7[%c1_89, %c0_90, %c0_91] : memref<9x64x64xbf16, #tpu.memory_space<vmem>>, vector<1x64x64xbf16>
    %111 = vector.shape_cast %110 : vector<1x64x64xbf16> to vector<64x64xbf16>
    %cst_92 = arith.constant dense<0.000000e+00> : vector<16x64xf32>
    %112 = tpu.matmul %109, %111, %cst_92 {dimension_numbers = #tpu.dot_dimension_numbers<[1], [0], [0], [1], [0, 0, 1, 1], [], []>} : vector<16x64xbf16>, vector<64x64xbf16>, vector<16x64xf32> -> vector<16x64xf32>
    %113 = arith.addf %108, %112 : vector<16x64xf32>
    %114 = vector.extract_strided_slice %102 {offsets = [32, 0], sizes = [16, 64], strides = [1, 1]} : vector<144x64xbf16> to vector<16x64xbf16>
    %c2_93 = arith.constant 2 : index
    %c0_94 = arith.constant 0 : index
    %c0_95 = arith.constant 0 : index
    %115 = vector.load %arg7[%c2_93, %c0_94, %c0_95] : memref<9x64x64xbf16, #tpu.memory_space<vmem>>, vector<1x64x64xbf16>
    %116 = vector.shape_cast %115 : vector<1x64x64xbf16> to vector<64x64xbf16>
    %cst_96 = arith.constant dense<0.000000e+00> : vector<16x64xf32>
    %117 = tpu.matmul %114, %116, %cst_96 {dimension_numbers = #tpu.dot_dimension_numbers<[1], [0], [0], [1], [0, 0, 1, 1], [], []>} : vector<16x64xbf16>, vector<64x64xbf16>, vector<16x64xf32> -> vector<16x64xf32>
    %118 = arith.addf %113, %117 : vector<16x64xf32>
    %119 = vector.extract_strided_slice %102 {offsets = [48, 0], sizes = [16, 64], strides = [1, 1]} : vector<144x64xbf16> to vector<16x64xbf16>
    %c3_97 = arith.constant 3 : index
    %c0_98 = arith.constant 0 : index
    %c0_99 = arith.constant 0 : index
    %120 = vector.load %arg7[%c3_97, %c0_98, %c0_99] : memref<9x64x64xbf16, #tpu.memory_space<vmem>>, vector<1x64x64xbf16>
    %121 = vector.shape_cast %120 : vector<1x64x64xbf16> to vector<64x64xbf16>
    %cst_100 = arith.constant dense<0.000000e+00> : vector<16x64xf32>
    %122 = tpu.matmul %119, %121, %cst_100 {dimension_numbers = #tpu.dot_dimension_numbers<[1], [0], [0], [1], [0, 0, 1, 1], [], []>} : vector<16x64xbf16>, vector<64x64xbf16>, vector<16x64xf32> -> vector<16x64xf32>
    %123 = arith.addf %118, %122 : vector<16x64xf32>
    %124 = vector.extract_strided_slice %102 {offsets = [64, 0], sizes = [16, 64], strides = [1, 1]} : vector<144x64xbf16> to vector<16x64xbf16>
    %c4_101 = arith.constant 4 : index
    %c0_102 = arith.constant 0 : index
    %c0_103 = arith.constant 0 : index
    %125 = vector.load %arg7[%c4_101, %c0_102, %c0_103] : memref<9x64x64xbf16, #tpu.memory_space<vmem>>, vector<1x64x64xbf16>
    %126 = vector.shape_cast %125 : vector<1x64x64xbf16> to vector<64x64xbf16>
    %cst_104 = arith.constant dense<0.000000e+00> : vector<16x64xf32>
    %127 = tpu.matmul %124, %126, %cst_104 {dimension_numbers = #tpu.dot_dimension_numbers<[1], [0], [0], [1], [0, 0, 1, 1], [], []>} : vector<16x64xbf16>, vector<64x64xbf16>, vector<16x64xf32> -> vector<16x64xf32>
    %128 = arith.addf %123, %127 : vector<16x64xf32>
    %129 = vector.extract_strided_slice %102 {offsets = [80, 0], sizes = [16, 64], strides = [1, 1]} : vector<144x64xbf16> to vector<16x64xbf16>
    %c5_105 = arith.constant 5 : index
    %c0_106 = arith.constant 0 : index
    %c0_107 = arith.constant 0 : index
    %130 = vector.load %arg7[%c5_105, %c0_106, %c0_107] : memref<9x64x64xbf16, #tpu.memory_space<vmem>>, vector<1x64x64xbf16>
    %131 = vector.shape_cast %130 : vector<1x64x64xbf16> to vector<64x64xbf16>
    %cst_108 = arith.constant dense<0.000000e+00> : vector<16x64xf32>
    %132 = tpu.matmul %129, %131, %cst_108 {dimension_numbers = #tpu.dot_dimension_numbers<[1], [0], [0], [1], [0, 0, 1, 1], [], []>} : vector<16x64xbf16>, vector<64x64xbf16>, vector<16x64xf32> -> vector<16x64xf32>
    %133 = arith.addf %128, %132 : vector<16x64xf32>
    %134 = vector.extract_strided_slice %102 {offsets = [96, 0], sizes = [16, 64], strides = [1, 1]} : vector<144x64xbf16> to vector<16x64xbf16>
    %c6_109 = arith.constant 6 : index
    %c0_110 = arith.constant 0 : index
    %c0_111 = arith.constant 0 : index
    %135 = vector.load %arg7[%c6_109, %c0_110, %c0_111] : memref<9x64x64xbf16, #tpu.memory_space<vmem>>, vector<1x64x64xbf16>
    %136 = vector.shape_cast %135 : vector<1x64x64xbf16> to vector<64x64xbf16>
    %cst_112 = arith.constant dense<0.000000e+00> : vector<16x64xf32>
    %137 = tpu.matmul %134, %136, %cst_112 {dimension_numbers = #tpu.dot_dimension_numbers<[1], [0], [0], [1], [0, 0, 1, 1], [], []>} : vector<16x64xbf16>, vector<64x64xbf16>, vector<16x64xf32> -> vector<16x64xf32>
    %138 = arith.addf %133, %137 : vector<16x64xf32>
    %139 = vector.extract_strided_slice %102 {offsets = [112, 0], sizes = [16, 64], strides = [1, 1]} : vector<144x64xbf16> to vector<16x64xbf16>
    %c7_113 = arith.constant 7 : index
    %c0_114 = arith.constant 0 : index
    %c0_115 = arith.constant 0 : index
    %140 = vector.load %arg7[%c7_113, %c0_114, %c0_115] : memref<9x64x64xbf16, #tpu.memory_space<vmem>>, vector<1x64x64xbf16>
    %141 = vector.shape_cast %140 : vector<1x64x64xbf16> to vector<64x64xbf16>
    %cst_116 = arith.constant dense<0.000000e+00> : vector<16x64xf32>
    %142 = tpu.matmul %139, %141, %cst_116 {dimension_numbers = #tpu.dot_dimension_numbers<[1], [0], [0], [1], [0, 0, 1, 1], [], []>} : vector<16x64xbf16>, vector<64x64xbf16>, vector<16x64xf32> -> vector<16x64xf32>
    %143 = arith.addf %138, %142 : vector<16x64xf32>
    %144 = vector.extract_strided_slice %102 {offsets = [128, 0], sizes = [16, 64], strides = [1, 1]} : vector<144x64xbf16> to vector<16x64xbf16>
    %c8_117 = arith.constant 8 : index
    %c0_118 = arith.constant 0 : index
    %c0_119 = arith.constant 0 : index
    %145 = vector.load %arg7[%c8_117, %c0_118, %c0_119] : memref<9x64x64xbf16, #tpu.memory_space<vmem>>, vector<1x64x64xbf16>
    %146 = vector.shape_cast %145 : vector<1x64x64xbf16> to vector<64x64xbf16>
    %cst_120 = arith.constant dense<0.000000e+00> : vector<16x64xf32>
    %147 = tpu.matmul %144, %146, %cst_120 {dimension_numbers = #tpu.dot_dimension_numbers<[1], [0], [0], [1], [0, 0, 1, 1], [], []>} : vector<16x64xbf16>, vector<64x64xbf16>, vector<16x64xf32> -> vector<16x64xf32>
    %148 = arith.addf %143, %147 : vector<16x64xf32>
    %c0_121 = arith.constant 0 : index
    %c0_122 = arith.constant 0 : index
    %149 = vector.load %arg8[%c0_121, %c0_122] : memref<1x64xf32, #tpu.memory_space<vmem>>, vector<1x64xf32>
    %150 = vector.broadcast %149 : vector<1x64xf32> to vector<16x64xf32>
    %151 = arith.addf %148, %150 : vector<16x64xf32>
    %cst_123 = arith.constant 0.000000e+00 : f32
    %152 = vector.broadcast %cst_123 : f32 to vector<16x64xf32>
    %153 = arith.maximumf %151, %152 : vector<16x64xf32>
    %154 = arith.truncf %153 : vector<16x64xf32> to vector<16x64xbf16>
    %c0_124 = arith.constant 0 : index
    %c0_125 = arith.constant 0 : index
    %155 = vector.load %arg9[%c0_124, %c0_125] : memref<64x256xbf16, #tpu.memory_space<vmem>>, vector<64x256xbf16>
    %cst_126 = arith.constant dense<0.000000e+00> : vector<16x256xf32>
    %156 = tpu.matmul %154, %155, %cst_126 {dimension_numbers = #tpu.dot_dimension_numbers<[1], [0], [0], [1], [0, 0, 1, 1], [], []>} : vector<16x64xbf16>, vector<64x256xbf16>, vector<16x256xf32> -> vector<16x256xf32>
    %c0_127 = arith.constant 0 : index
    %c0_128 = arith.constant 0 : index
    %157 = vector.load %arg10[%c0_127, %c0_128] : memref<1x256xf32, #tpu.memory_space<vmem>>, vector<1x256xf32>
    %158 = vector.broadcast %157 : vector<1x256xf32> to vector<16x256xf32>
    %159 = arith.addf %156, %158 : vector<16x256xf32>
    %cst_129 = arith.constant 0.000000e+00 : f32
    %160 = vector.broadcast %cst_129 : f32 to vector<16x256xf32>
    %161 = arith.maximumf %159, %160 : vector<16x256xf32>
    %162 = arith.truncf %161 : vector<16x256xf32> to vector<16x256xbf16>
    %c0_130 = arith.constant 0 : index
    %c0_131 = arith.constant 0 : index
    %163 = vector.load %arg11[%c0_130, %c0_131] : memref<256x256xbf16, #tpu.memory_space<vmem>>, vector<256x256xbf16>
    %cst_132 = arith.constant dense<0.000000e+00> : vector<16x256xf32>
    %164 = tpu.matmul %162, %163, %cst_132 {dimension_numbers = #tpu.dot_dimension_numbers<[1], [0], [0], [1], [0, 0, 1, 1], [], []>} : vector<16x256xbf16>, vector<256x256xbf16>, vector<16x256xf32> -> vector<16x256xf32>
    %c0_133 = arith.constant 0 : index
    %c0_134 = arith.constant 0 : index
    %165 = vector.load %arg12[%c0_133, %c0_134] : memref<1x256xf32, #tpu.memory_space<vmem>>, vector<1x256xf32>
    %166 = vector.broadcast %165 : vector<1x256xf32> to vector<16x256xf32>
    %167 = arith.addf %164, %166 : vector<16x256xf32>
    %cst_135 = arith.constant 0.000000e+00 : f32
    %168 = vector.broadcast %cst_135 : f32 to vector<16x256xf32>
    %169 = arith.maximumf %167, %168 : vector<16x256xf32>
    %170 = arith.truncf %169 : vector<16x256xf32> to vector<16x256xbf16>
    %c0_136 = arith.constant 0 : index
    %c0_137 = arith.constant 0 : index
    %171 = vector.load %arg13[%c0_136, %c0_137] : memref<256x256xbf16, #tpu.memory_space<vmem>>, vector<256x256xbf16>
    %cst_138 = arith.constant dense<0.000000e+00> : vector<16x256xf32>
    %172 = tpu.matmul %170, %171, %cst_138 {dimension_numbers = #tpu.dot_dimension_numbers<[1], [0], [0], [1], [0, 0, 1, 1], [], []>} : vector<16x256xbf16>, vector<256x256xbf16>, vector<16x256xf32> -> vector<16x256xf32>
    %173 = vector.extract_strided_slice %172 {offsets = [0, 0], sizes = [2, 6], strides = [1, 1]} : vector<16x256xf32> to vector<2x6xf32>
    %c0_139 = arith.constant 0 : index
    %c0_140 = arith.constant 0 : index
    %174 = vector.load %arg14[%c0_139, %c0_140] : memref<1x6xf32, #tpu.memory_space<vmem>>, vector<1x6xf32>
    %175 = vector.broadcast %174 : vector<1x6xf32> to vector<2x6xf32>
    %176 = arith.addf %173, %175 : vector<2x6xf32>
    %c0_141 = arith.constant 0 : index
    %c0_142 = arith.constant 0 : index
    %177 = vector.load %arg16[%c0_141, %c0_142] : memref<2x6xf32, #tpu.memory_space<vmem>>, vector<2x6xf32>
    tpu.vector_store %arg16[%c0_141, %c0_142], %176 {strides = array<i32>} : memref<2x6xf32, #tpu.memory_space<vmem>>, vector<2x6xf32>,
    %178 = vector.extract_strided_slice %172 {offsets = [0, 128], sizes = [2, 6], strides = [1, 1]} : vector<16x256xf32> to vector<2x6xf32>
    %c0_143 = arith.constant 0 : index
    %c0_144 = arith.constant 0 : index
    %179 = vector.load %arg15[%c0_143, %c0_144] : memref<1x6xf32, #tpu.memory_space<vmem>>, vector<1x6xf32>
    %180 = vector.broadcast %179 : vector<1x6xf32> to vector<2x6xf32>
    %181 = arith.addf %178, %180 : vector<2x6xf32>
    %cst_145 = arith.constant -2.000000e+01 : f32
    %cst_146 = arith.constant 2.000000e+00 : f32
    %182 = vector.broadcast %cst_145 : f32 to vector<2x6xf32>
    %183 = arith.maximumf %182, %181 : vector<2x6xf32>
    %184 = vector.broadcast %cst_146 : f32 to vector<2x6xf32>
    %185 = arith.minimumf %184, %183 : vector<2x6xf32>
    %c0_147 = arith.constant 0 : index
    %c0_148 = arith.constant 0 : index
    %186 = vector.load %arg17[%c0_147, %c0_148] : memref<2x6xf32, #tpu.memory_space<vmem>>, vector<2x6xf32>
    tpu.vector_store %arg17[%c0_147, %c0_148], %185 {strides = array<i32>} : memref<2x6xf32, #tpu.memory_space<vmem>>, vector<2x6xf32>,
    return
  }
}

</mosaic_0001>

<llo_original>
// kernel: policy_network_forward.1
$region0: #{policy_network_forward.1}
  #allocation0 [shape = 'u32[]', space=smem, size = 0x4, offset = 0x4, fixed_abs, tag = 'smem constant byte address 0x4 - core index']
  #allocation1 [shape = 'u32[144,128]{1,0:T(1,128)}', space=vmem, size = 0x12000, scoped, tag = 'internal scratch']
  #allocation2 [shape = 'bf16[512,32]{1,0:T(16,128)(2,1)}', space=vmem, size = 0x20000, scoped, tag = 'scratch operand']
  %s0 = inlined_call_operand.vmem [shape: bf16[128,256], index: 0, kind: input, shape index: {}]
  %s1 = inlined_call_operand.vmem [shape: bf16[256,32], index: 1, kind: input, shape index: {}]
  %s2 = inlined_call_operand.vmem [shape: f32[1,32], index: 2, kind: input, shape index: {}]
  %s3 = inlined_call_operand.vmem [shape: bf16[512,128], index: 3, kind: input, shape index: {}]
  %s4 = inlined_call_operand.vmem [shape: bf16[16,32,64], index: 4, kind: input, shape index: {}]
  %s5 = inlined_call_operand.vmem [shape: f32[1,64], index: 5, kind: input, shape index: {}]
  %s6 = inlined_call_operand.vmem [shape: bf16[144,32], index: 6, kind: input, shape index: {}]
  %s7 = inlined_call_operand.vmem [shape: bf16[9,64,64], index: 7, kind: input, shape index: {}]
  %s8 = inlined_call_operand.vmem [shape: f32[1,64], index: 8, kind: input, shape index: {}]
  %s9 = inlined_call_operand.vmem [shape: bf16[64,256], index: 9, kind: input, shape index: {}]
  %s10 = inlined_call_operand.vmem [shape: f32[1,256], index: 10, kind: input, shape index: {}]
  %s11 = inlined_call_operand.vmem [shape: bf16[256,256], index: 11, kind: input, shape index: {}]
  %s12 = inlined_call_operand.vmem [shape: f32[1,256], index: 12, kind: input, shape index: {}]
  %s13 = inlined_call_operand.vmem [shape: bf16[256,256], index: 13, kind: input, shape index: {}]
  %s14 = inlined_call_operand.vmem [shape: f32[1,6], index: 14, kind: input, shape index: {}]
  %s15 = inlined_call_operand.vmem [shape: f32[1,6], index: 15, kind: input, shape index: {}]
  %s16 = inlined_call_operand.hbm [shape: f32[2,6], index: 16, kind: output, shape index: {0}]
  %s17 = inlined_call_operand.hbm [shape: f32[2,6], index: 17, kind: output, shape index: {1}]
  %18 = xla_tuple %s16, %s17
  %s19 = sld [smem:[#allocation0]]
  $region82: #{policy_network_forward.1} parent=0
    _
  %s21 = ssub.s32 1, %s19
  %s22 = scalar_select 0, %s21, %s19
  $region1: #{policy_network_forward.1} parent=0
    #allocation3 [shape = 'u8[1024]{0}', space=vmem, size = 0x400, scoped, tag = 'output window, operand 0, single buffered']
    #allocation4 [shape = 's32[1]{0}', space=sflag, size = 0x4, scoped, tag = 'scoped memory for policy_network_forward.1']
    #allocation5 [shape = 'u8[1024]{0}', space=vmem, size = 0x400, scoped, tag = 'output window, operand 1, single buffered']
    #allocation6 [shape = 's32[1]{0}', space=sflag, size = 0x4, scoped, tag = 'scoped memory for policy_network_forward.1']
    %23 = vsyncpa [#allocation4], 0
    %24 = vsyncpa [#allocation6], 0
    // Predicated region
    $region2: #{policy_network_forward.1} parent=1 // pred_check
      _
    $region3: #{policy_network_forward.1} parent=1 // pred_check_branch
      %26 = sbr.rel (0) target = $region5
    $region4: #{policy_network_forward.1} parent=1 // pred_region
      _
    $region5: #{policy_network_forward.1} parent=1 // pred_fallthru
      _
    // Predicated region
    $region6: #{policy_network_forward.1} parent=1 // pred_check
      _
    $region7: #{policy_network_forward.1} parent=1 // pred_check_branch
      %28 = sbr.rel (0) target = $region9
    $region8: #{policy_network_forward.1} parent=1 // pred_region
      _
    $region9: #{policy_network_forward.1} parent=1 // pred_fallthru
      _
    // Predicated region
    $region10: #{policy_network_forward.1} parent=1 // pred_check
      _
    $region11: #{policy_network_forward.1} parent=1 // pred_check_branch
      %30 = sbr.rel (0) target = $region13
    $region12: #{policy_network_forward.1} parent=1 // pred_region
      _
    $region13: #{policy_network_forward.1} parent=1 // pred_fallthru
      _
    // Predicated region
    $region14: #{policy_network_forward.1} parent=1 // pred_check
      _
    $region15: #{policy_network_forward.1} parent=1 // pred_check_branch
      %32 = sbr.rel (0) target = $region17
    $region16: #{policy_network_forward.1} parent=1 // pred_region
      _
    $region17: #{policy_network_forward.1} parent=1 // pred_fallthru
      _
    // Predicated region
    $region18: #{policy_network_forward.1} parent=1 // pred_check
      _
    $region19: #{policy_network_forward.1} parent=1 // pred_check_branch
      %34 = sbr.rel (0) target = $region21
    $region20: #{policy_network_forward.1} parent=1 // pred_region
      _
    $region21: #{policy_network_forward.1} parent=1 // pred_fallthru
      _
    // Predicated region
    $region22: #{policy_network_forward.1} parent=1 // pred_check
      _
    $region23: #{policy_network_forward.1} parent=1 // pred_check_branch
      %36 = sbr.rel (0) target = $region25
    $region24: #{policy_network_forward.1} parent=1 // pred_region
      _
    $region25: #{policy_network_forward.1} parent=1 // pred_fallthru
      _
    // Predicated region
    $region26: #{policy_network_forward.1} parent=1 // pred_check
      _
    $region27: #{policy_network_forward.1} parent=1 // pred_check_branch
      %38 = sbr.rel (0) target = $region29
    $region28: #{policy_network_forward.1} parent=1 // pred_region
      _
    $region29: #{policy_network_forward.1} parent=1 // pred_fallthru
      _
    // Predicated region
    $region30: #{policy_network_forward.1} parent=1 // pred_check
      _
    $region31: #{policy_network_forward.1} parent=1 // pred_check_branch
      %40 = sbr.rel (0) target = $region33
    $region32: #{policy_network_forward.1} parent=1 // pred_region
      _
    $region33: #{policy_network_forward.1} parent=1 // pred_fallthru
      _
    // Predicated region
    $region34: #{policy_network_forward.1} parent=1 // pred_check
      _
    $region35: #{policy_network_forward.1} parent=1 // pred_check_branch
      %42 = sbr.rel (0) target = $region37
    $region36: #{policy_network_forward.1} parent=1 // pred_region
      _
    $region37: #{policy_network_forward.1} parent=1 // pred_fallthru
      _
    // Predicated region
    $region38: #{policy_network_forward.1} parent=1 // pred_check
      _
    $region39: #{policy_network_forward.1} parent=1 // pred_check_branch
      %44 = sbr.rel (0) target = $region41
    $region40: #{policy_network_forward.1} parent=1 // pred_region
      _
    $region41: #{policy_network_forward.1} parent=1 // pred_fallthru
      _
    // Predicated region
    $region42: #{policy_network_forward.1} parent=1 // pred_check
      _
    $region43: #{policy_network_forward.1} parent=1 // pred_check_branch
      %46 = sbr.rel (0) target = $region45
    $region44: #{policy_network_forward.1} parent=1 // pred_region
      _
    $region45: #{policy_network_forward.1} parent=1 // pred_fallthru
      _
    // Predicated region
    $region46: #{policy_network_forward.1} parent=1 // pred_check
      _
    $region47: #{policy_network_forward.1} parent=1 // pred_check_branch
      %48 = sbr.rel (0) target = $region49
    $region48: #{policy_network_forward.1} parent=1 // pred_region
      _
    $region49: #{policy_network_forward.1} parent=1 // pred_fallthru
      _
    // Predicated region
    $region50: #{policy_network_forward.1} parent=1 // pred_check
      _
    $region51: #{policy_network_forward.1} parent=1 // pred_check_branch
      %50 = sbr.rel (0) target = $region53
    $region52: #{policy_network_forward.1} parent=1 // pred_region
      _
    $region53: #{policy_network_forward.1} parent=1 // pred_fallthru
      _
    // Predicated region
    $region54: #{policy_network_forward.1} parent=1 // pred_check
      _
    $region55: #{policy_network_forward.1} parent=1 // pred_check_branch
      %52 = sbr.rel (0) target = $region57
    $region56: #{policy_network_forward.1} parent=1 // pred_region
      _
    $region57: #{policy_network_forward.1} parent=1 // pred_fallthru
      _
    // Predicated region
    $region58: #{policy_network_forward.1} parent=1 // pred_check
      _
    $region59: #{policy_network_forward.1} parent=1 // pred_check_branch
      %54 = sbr.rel (0) target = $region61
    $region60: #{policy_network_forward.1} parent=1 // pred_region
      _
    $region61: #{policy_network_forward.1} parent=1 // pred_fallthru
      _
    // Predicated region
    $region62: #{policy_network_forward.1} parent=1 // pred_check
      _
    $region63: #{policy_network_forward.1} parent=1 // pred_check_branch
      %56 = sbr.rel (0) target = $region65
    $region64: #{policy_network_forward.1} parent=1 // pred_region
      _
    $region65: #{policy_network_forward.1} parent=1 // pred_fallthru
      _
    %v58 = vld [vmem:[%s0] sm:$0xff]
    %v59 = vld [vmem:[%s0 + $0x8] sm:$0xff]
    %v60 = vld [vmem:[%s0 + $0x10] sm:$0xff]
    %v61 = vld [vmem:[%s0 + $0x18] sm:$0xff]
    %v62 = vld [vmem:[%s0 + $0x20] sm:$0xff]
    %v63 = vld [vmem:[%s0 + $0x28] sm:$0xff]
    %v64 = vld [vmem:[%s0 + $0x30] sm:$0xff]
    %v65 = vld [vmem:[%s0 + $0x38] sm:$0xff]
    %v66 = vld [vmem:[%s0 + $0x40] sm:$0xff]
    %v67 = vld [vmem:[%s0 + $0x48] sm:$0xff]
    %v68 = vld [vmem:[%s0 + $0x50] sm:$0xff]
    %v69 = vld [vmem:[%s0 + $0x58] sm:$0xff]
    %v70 = vld [vmem:[%s0 + $0x60] sm:$0xff]
    %v71 = vld [vmem:[%s0 + $0x68] sm:$0xff]
    %v72 = vld [vmem:[%s0 + $0x70] sm:$0xff]
    %v73 = vld [vmem:[%s0 + $0x78] sm:$0xff]
    %v74 = vld [vmem:[%s1] sm:$0xf]
    %v75 = vld [vmem:[%s1 + $0x4] sm:$0xf]
    %v76 = vld [vmem:[%s1 + $0x8] sm:$0xf]
    %v77 = vld [vmem:[%s1 + $0xc] sm:$0xf]
    %v78 = vld [vmem:[%s1 + $0x10] sm:$0xf]
    %v79 = vld [vmem:[%s1 + $0x14] sm:$0xf]
    %v80 = vld [vmem:[%s1 + $0x18] sm:$0xf]
    %v81 = vld [vmem:[%s1 + $0x1c] sm:$0xf]
    %v82 = vld [vmem:[%s1 + $0x20] sm:$0xf]
    %v83 = vld [vmem:[%s1 + $0x24] sm:$0xf]
    %v84 = vld [vmem:[%s1 + $0x28] sm:$0xf]
    %v85 = vld [vmem:[%s1 + $0x2c] sm:$0xf]
    %v86 = vld [vmem:[%s1 + $0x30] sm:$0xf]
    %v87 = vld [vmem:[%s1 + $0x34] sm:$0xf]
    %v88 = vld [vmem:[%s1 + $0x38] sm:$0xf]
    %v89 = vld [vmem:[%s1 + $0x3c] sm:$0xf]
    %v90 = vld [vmem:[%s1 + $0x40] sm:$0xf]
    %v91 = vld [vmem:[%s1 + $0x44] sm:$0xf]
    %v92 = vld [vmem:[%s1 + $0x48] sm:$0xf]
    %v93 = vld [vmem:[%s1 + $0x4c] sm:$0xf]
    %v94 = vld [vmem:[%s1 + $0x50] sm:$0xf]
    %v95 = vld [vmem:[%s1 + $0x54] sm:$0xf]
    %v96 = vld [vmem:[%s1 + $0x58] sm:$0xf]
    %v97 = vld [vmem:[%s1 + $0x5c] sm:$0xf]
    %v98 = vld [vmem:[%s1 + $0x60] sm:$0xf]
    %v99 = vld [vmem:[%s1 + $0x64] sm:$0xf]
    %v100 = vld [vmem:[%s1 + $0x68] sm:$0xf]
    %v101 = vld [vmem:[%s1 + $0x6c] sm:$0xf]
    %v102 = vld [vmem:[%s1 + $0x70] sm:$0xf]
    %v103 = vld [vmem:[%s1 + $0x74] sm:$0xf]
    %v104 = vld [vmem:[%s1 + $0x78] sm:$0xf]
    %v105 = vld [vmem:[%s1 + $0x7c] sm:$0xf]
    %v106 = vld [vmem:[%s2] sm:$0x1]
    %v108 = vlaneseq
    %v109 = vshrl.u32 %v108, 7
    %v110 = vsub.s32 0, %v109
    %v111 = vrot.slane %v106, %v110
    %v129 = vunpack.c.l.b16 %v58
    %v130 = vunpack.c.h.b16 %v58
    %v131 = vunpack.c.l.b16 %v59
    %v132 = vunpack.c.h.b16 %v59
    %v133 = vunpack.c.l.b16 %v60
    %v134 = vunpack.c.h.b16 %v60
    %v135 = vunpack.c.l.b16 %v61
    %v136 = vunpack.c.h.b16 %v61
    %v137 = vunpack.c.l.b16 %v62
    %v138 = vunpack.c.h.b16 %v62
    %v139 = vunpack.c.l.b16 %v63
    %v140 = vunpack.c.h.b16 %v63
    %v141 = vunpack.c.l.b16 %v64
    %v142 = vunpack.c.h.b16 %v64
    %v143 = vunpack.c.l.b16 %v65
    %v144 = vunpack.c.h.b16 %v65
    %v145 = vunpack.c.l.b16 %v66
    %v146 = vunpack.c.h.b16 %v66
    %v147 = vunpack.c.l.b16 %v67
    %v148 = vunpack.c.h.b16 %v67
    %v149 = vunpack.c.l.b16 %v68
    %v150 = vunpack.c.h.b16 %v68
    %v151 = vunpack.c.l.b16 %v69
    %v152 = vunpack.c.h.b16 %v69
    %v153 = vunpack.c.l.b16 %v70
    %v154 = vunpack.c.h.b16 %v70
    %v155 = vunpack.c.l.b16 %v71
    %v156 = vunpack.c.h.b16 %v71
    %v157 = vunpack.c.l.b16 %v72
    %v158 = vunpack.c.h.b16 %v72
    %v159 = vunpack.c.l.b16 %v73
    %v160 = vunpack.c.h.b16 %v73
    %v161 = vpack.c.b16 %v131, %v129
    %v162 = vpack.c.b16 %v132, %v130
    %v163 = vpack.c.b16 %v135, %v133
    %v164 = vpack.c.b16 %v136, %v134
    %v165 = vpack.c.b16 %v139, %v137
    %v166 = vpack.c.b16 %v140, %v138
    %v167 = vpack.c.b16 %v143, %v141
    %v168 = vpack.c.b16 %v144, %v142
    %v169 = vpack.c.b16 %v147, %v145
    %v170 = vpack.c.b16 %v148, %v146
    %v171 = vpack.c.b16 %v151, %v149
    %v172 = vpack.c.b16 %v152, %v150
    %v173 = vpack.c.b16 %v155, %v153
    %v174 = vpack.c.b16 %v156, %v154
    %v175 = vpack.c.b16 %v159, %v157
    %v176 = vpack.c.b16 %v160, %v158
    %v225 = vunpack.c.l.b16 %v74
    %v226 = vunpack.c.l.b16 %v75
    %v227 = vunpack.c.l.b16 %v76
    %v228 = vunpack.c.l.b16 %v77
    %v229 = vunpack.c.l.b16 %v78
    %v230 = vunpack.c.l.b16 %v79
    %v231 = vunpack.c.l.b16 %v80
    %v232 = vunpack.c.l.b16 %v81
    %v233 = vunpack.c.l.b16 %v82
    %v234 = vunpack.c.l.b16 %v83
    %v235 = vunpack.c.l.b16 %v84
    %v236 = vunpack.c.l.b16 %v85
    %v237 = vunpack.c.l.b16 %v86
    %v238 = vunpack.c.l.b16 %v87
    %v239 = vunpack.c.l.b16 %v88
    %v240 = vunpack.c.l.b16 %v89
    %v241 = vunpack.c.l.b16 %v90
    %v242 = vunpack.c.l.b16 %v91
    %v243 = vunpack.c.l.b16 %v92
    %v244 = vunpack.c.l.b16 %v93
    %v245 = vunpack.c.l.b16 %v94
    %v246 = vunpack.c.l.b16 %v95
    %v247 = vunpack.c.l.b16 %v96
    %v248 = vunpack.c.l.b16 %v97
    %v249 = vunpack.c.l.b16 %v98
    %v250 = vunpack.c.l.b16 %v99
    %v251 = vunpack.c.l.b16 %v100
    %v252 = vunpack.c.l.b16 %v101
    %v253 = vunpack.c.l.b16 %v102
    %v254 = vunpack.c.l.b16 %v103
    %v255 = vunpack.c.l.b16 %v104
    %v256 = vunpack.c.l.b16 %v105
    %v257 = vpack.c.b16 %v226, %v225
    %v258 = vpack.c.b16 %v228, %v227
    %v259 = vpack.c.b16 %v230, %v229
    %v260 = vpack.c.b16 %v232, %v231
    %v261 = vpack.c.b16 %v234, %v233
    %v262 = vpack.c.b16 %v236, %v235
    %v263 = vpack.c.b16 %v238, %v237
    %v264 = vpack.c.b16 %v240, %v239
    %v265 = vpack.c.b16 %v242, %v241
    %v266 = vpack.c.b16 %v244, %v243
    %v267 = vpack.c.b16 %v246, %v245
    %v268 = vpack.c.b16 %v248, %v247
    %v269 = vpack.c.b16 %v250, %v249
    %v270 = vpack.c.b16 %v252, %v251
    %v271 = vpack.c.b16 %v254, %v253
    %v272 = vpack.c.b16 %v256, %v255
    %289 = vmatprep.subr.bf16.mxu0 0
    %290 = vmatpush1.bf16.msra.mxu0 %v257
    %291 = vmatprep.subr.bf16.mxu0 0
    %292 = vmatpush1.bf16.msra.mxu0 %v258
    %293 = vmatprep.subr.bf16.mxu0 0
    %294 = vmatpush1.bf16.msra.mxu0 %v259
    %295 = vmatprep.subr.bf16.mxu0 0
    %296 = vmatpush1.bf16.msra.mxu0 %v260
    %297 = vmatprep.subr.bf16.mxu0 0
    %298 = vmatpush1.bf16.msra.mxu0 %v261
    %299 = vmatprep.subr.bf16.mxu0 0
    %300 = vmatpush1.bf16.msra.mxu0 %v262
    %301 = vmatprep.subr.bf16.mxu0 0
    %302 = vmatpush1.bf16.msra.mxu0 %v263
    %303 = vmatprep.subr.bf16.mxu0 0
    %304 = vmatpush1.bf16.msra.mxu0 %v264
    %305 = vmatprep.subr.bf16.mxu0 0
    %306 = vmatpush1.bf16.msra.mxu0 %v265
    %307 = vmatprep.subr.bf16.mxu0 0
    %308 = vmatpush1.bf16.msra.mxu0 %v266
    %309 = vmatprep.subr.bf16.mxu0 0
    %310 = vmatpush1.bf16.msra.mxu0 %v267
    %311 = vmatprep.subr.bf16.mxu0 0
    %312 = vmatpush1.bf16.msra.mxu0 %v268
    %313 = vmatprep.subr.bf16.mxu0 0
    %314 = vmatpush1.bf16.msra.mxu0 %v269
    %315 = vmatprep.subr.bf16.mxu0 0
    %316 = vmatpush1.bf16.msra.mxu0 %v270
    %317 = vmatprep.subr.bf16.mxu0 0
    %318 = vmatpush1.bf16.msra.mxu0 %v271
    %319 = vmatprep.subr.bf16.mxu0 0
    %320 = vmatpush1.bf16.msra.mxu0 %v272
    %321 = vmatprep.mubr.bf16.mxu0 %v162
    %322 = vmatmul.mubr.bf16.gmra.mrb[0].mxu0 %v161
    %v323 = vpop.f32.mrb[0].mxu0
    %v324 = vadd.f32 %v111, %v323
    %v325 = vpop.f32.mrb[0].mxu0
    %v326 = vpop.f32.mrb[0].mxu0
    %v327 = vadd.f32 %v111, %v326
    %v328 = vpop.f32.mrb[0].mxu0
    %329 = vmatprep.mubr.bf16.mxu0 %v164
    %330 = vmatmul.mubr.bf16.gmra.mrb[0].mxu0 %v163
    %v331 = vpop.f32.mrb[0].mxu0
    %v332 = vadd.f32 %v111, %v331
    %v333 = vpop.f32.mrb[0].mxu0
    %v334 = vpop.f32.mrb[0].mxu0
    %v335 = vadd.f32 %v111, %v334
    %v336 = vpop.f32.mrb[0].mxu0
    %337 = vmatprep.mubr.bf16.mxu0 %v166
    %338 = vmatmul.mubr.bf16.gmra.mrb[0].mxu0 %v165
    %v339 = vpop.f32.mrb[0].mxu0
    %v340 = vadd.f32 %v111, %v339
    %v341 = vpop.f32.mrb[0].mxu0
    %v342 = vpop.f32.mrb[0].mxu0
    %v343 = vadd.f32 %v111, %v342
    %v344 = vpop.f32.mrb[0].mxu0
    %345 = vmatprep.mubr.bf16.mxu0 %v168
    %346 = vmatmul.mubr.bf16.gmra.mrb[0].mxu0 %v167
    %v347 = vpop.f32.mrb[0].mxu0
    %v348 = vadd.f32 %v111, %v347
    %v349 = vpop.f32.mrb[0].mxu0
    %v350 = vpop.f32.mrb[0].mxu0
    %v351 = vadd.f32 %v111, %v350
    %v352 = vpop.f32.mrb[0].mxu0
    %353 = vmatprep.mubr.bf16.mxu0 %v170
    %354 = vmatmul.mubr.bf16.gmra.mrb[0].mxu0 %v169
    %v355 = vpop.f32.mrb[0].mxu0
    %v356 = vadd.f32 %v111, %v355
    %v357 = vpop.f32.mrb[0].mxu0
    %v358 = vpop.f32.mrb[0].mxu0
    %v359 = vadd.f32 %v111, %v358
    %v360 = vpop.f32.mrb[0].mxu0
    %361 = vmatprep.mubr.bf16.mxu0 %v172
    %362 = vmatmul.mubr.bf16.gmra.mrb[0].mxu0 %v171
    %v363 = vpop.f32.mrb[0].mxu0
    %v364 = vadd.f32 %v111, %v363
    %v365 = vpop.f32.mrb[0].mxu0
    %v366 = vpop.f32.mrb[0].mxu0
    %v367 = vadd.f32 %v111, %v366
    %v368 = vpop.f32.mrb[0].mxu0
    %369 = vmatprep.mubr.bf16.mxu0 %v174
    %370 = vmatmul.mubr.bf16.gmra.mrb[0].mxu0 %v173
    %v371 = vpop.f32.mrb[0].mxu0
    %v372 = vadd.f32 %v111, %v371
    %v373 = vpop.f32.mrb[0].mxu0
    %v374 = vpop.f32.mrb[0].mxu0
    %v375 = vadd.f32 %v111, %v374
    %v376 = vpop.f32.mrb[0].mxu0
    %377 = vmatprep.mubr.bf16.mxu0 %v176
    %378 = vmatmul.mubr.bf16.gmra.mrb[0].mxu0 %v175
    %v379 = vpop.f32.mrb[0].mxu0
    %v380 = vadd.f32 %v111, %v379
    %v381 = vpop.f32.mrb[0].mxu0
    %v382 = vpop.f32.mrb[0].mxu0
    %v383 = vadd.f32 %v111, %v382
    %v384 = vpop.f32.mrb[0].mxu0
    %385 = vdwg.mxu0
    %v386 = vmax.f32 %v324, 0.0
    %v387 = vmax.f32 %v327, 0.0
    %v388 = vmax.f32 %v332, 0.0
    %v389 = vmax.f32 %v335, 0.0
    %v390 = vmax.f32 %v340, 0.0
    %v391 = vmax.f32 %v343, 0.0
    %v392 = vmax.f32 %v348, 0.0
    %v393 = vmax.f32 %v351, 0.0
    %v394 = vmax.f32 %v356, 0.0
    %v395 = vmax.f32 %v359, 0.0
    %v396 = vmax.f32 %v364, 0.0
    %v397 = vmax.f32 %v367, 0.0
    %v398 = vmax.f32 %v372, 0.0
    %v399 = vmax.f32 %v375, 0.0
    %v400 = vmax.f32 %v380, 0.0
    %v401 = vmax.f32 %v383, 0.0
    %v402 = vpack.c.bf16 %v387, %v386
    %v403 = vpack.c.bf16 %v389, %v388
    %v404 = vpack.c.bf16 %v391, %v390
    %v405 = vpack.c.bf16 %v393, %v392
    %v406 = vpack.c.bf16 %v395, %v394
    %v407 = vpack.c.bf16 %v397, %v396
    %v408 = vpack.c.bf16 %v399, %v398
    %v409 = vpack.c.bf16 %v401, %v400
    %v410 = vld [vmem:[%s3] sm:$0xf]
    %v411 = vld [vmem:[%s3 + $0x4] sm:$0xf]
    %v412 = vld [vmem:[%s3 + $0x8] sm:$0xf]
    %v413 = vld [vmem:[%s3 + $0xc] sm:$0xf]
    %v414 = vld [vmem:[%s3 + $0x10] sm:$0xf]
    %v415 = vld [vmem:[%s3 + $0x14] sm:$0xf]
    %v416 = vld [vmem:[%s3 + $0x18] sm:$0xf]
    %v417 = vld [vmem:[%s3 + $0x1c] sm:$0xf]
    %v418 = vld [vmem:[%s3 + $0x20] sm:$0xf]
    %v419 = vld [vmem:[%s3 + $0x24] sm:$0xf]
    %v420 = vld [vmem:[%s3 + $0x28] sm:$0xf]
    %v421 = vld [vmem:[%s3 + $0x2c] sm:$0xf]
    %v422 = vld [vmem:[%s3 + $0x30] sm:$0xf]
    %v423 = vld [vmem:[%s3 + $0x34] sm:$0xf]
    %v424 = vld [vmem:[%s3 + $0x38] sm:$0xf]
    %v425 = vld [vmem:[%s3 + $0x3c] sm:$0xf]
    %v426 = vld [vmem:[%s3 + $0x40] sm:$0xf]
    %v427 = vld [vmem:[%s3 + $0x44] sm:$0xf]
    %v428 = vld [vmem:[%s3 + $0x48] sm:$0xf]
    %v429 = vld [vmem:[%s3 + $0x4c] sm:$0xf]
    %v430 = vld [vmem:[%s3 + $0x50] sm:$0xf]
    %v431 = vld [vmem:[%s3 + $0x54] sm:$0xf]
    %v432 = vld [vmem:[%s3 + $0x58] sm:$0xf]
    %v433 = vld [vmem:[%s3 + $0x5c] sm:$0xf]
    %v434 = vld [vmem:[%s3 + $0x60] sm:$0xf]
    %v435 = vld [vmem:[%s3 + $0x64] sm:$0xf]
    %v436 = vld [vmem:[%s3 + $0x68] sm:$0xf]
    %v437 = vld [vmem:[%s3 + $0x6c] sm:$0xf]
    %v438 = vld [vmem:[%s3 + $0x70] sm:$0xf]
    %v439 = vld [vmem:[%s3 + $0x74] sm:$0xf]
    %v440 = vld [vmem:[%s3 + $0x78] sm:$0xf]
    %v441 = vld [vmem:[%s3 + $0x7c] sm:$0xf]
    %v442 = vld [vmem:[%s3 + $0x80] sm:$0xf]
    %v443 = vld [vmem:[%s3 + $0x84] sm:$0xf]
    %v444 = vld [vmem:[%s3 + $0x88] sm:$0xf]
    %v445 = vld [vmem:[%s3 + $0x8c] sm:$0xf]
    %v446 = vld [vmem:[%s3 + $0x90] sm:$0xf]
    %v447 = vld [vmem:[%s3 + $0x94] sm:$0xf]
    %v448 = vld [vmem:[%s3 + $0x98] sm:$0xf]
    %v449 = vld [vmem:[%s3 + $0x9c] sm:$0xf]
    %v450 = vld [vmem:[%s3 + $0xa0] sm:$0xf]
    %v451 = vld [vmem:[%s3 + $0xa4] sm:$0xf]
    %v452 = vld [vmem:[%s3 + $0xa8] sm:$0xf]
    %v453 = vld [vmem:[%s3 + $0xac] sm:$0xf]
    %v454 = vld [vmem:[%s3 + $0xb0] sm:$0xf]
    %v455 = vld [vmem:[%s3 + $0xb4] sm:$0xf]
    %v456 = vld [vmem:[%s3 + $0xb8] sm:$0xf]
    %v457 = vld [vmem:[%s3 + $0xbc] sm:$0xf]
    %v458 = vld [vmem:[%s3 + $0xc0] sm:$0xf]
    %v459 = vld [vmem:[%s3 + $0xc4] sm:$0xf]
    %v460 = vld [vmem:[%s3 + $0xc8] sm:$0xf]
    %v461 = vld [vmem:[%s3 + $0xcc] sm:$0xf]
    %v462 = vld [vmem:[%s3 + $0xd0] sm:$0xf]
    %v463 = vld [vmem:[%s3 + $0xd4] sm:$0xf]
    %v464 = vld [vmem:[%s3 + $0xd8] sm:$0xf]
    %v465 = vld [vmem:[%s3 + $0xdc] sm:$0xf]
    %v466 = vld [vmem:[%s3 + $0xe0] sm:$0xf]
    %v467 = vld [vmem:[%s3 + $0xe4] sm:$0xf]
    %v468 = vld [vmem:[%s3 + $0xe8] sm:$0xf]
    %v469 = vld [vmem:[%s3 + $0xec] sm:$0xf]
    %v470 = vld [vmem:[%s3 + $0xf0] sm:$0xf]
    %v471 = vld [vmem:[%s3 + $0xf4] sm:$0xf]
    %v472 = vld [vmem:[%s3 + $0xf8] sm:$0xf]
    %v473 = vld [vmem:[%s3 + $0xfc] sm:$0xf]
    %v538 = vunpack.c.l.b16 %v410
    %v539 = vunpack.c.l.b16 %v411
    %v540 = vunpack.c.l.b16 %v412
    %v541 = vunpack.c.l.b16 %v413
    %v542 = vunpack.c.l.b16 %v414
    %v543 = vunpack.c.l.b16 %v415
    %v544 = vunpack.c.l.b16 %v416
    %v545 = vunpack.c.l.b16 %v417
    %v546 = vunpack.c.l.b16 %v418
    %v547 = vunpack.c.l.b16 %v419
    %v548 = vunpack.c.l.b16 %v420
    %v549 = vunpack.c.l.b16 %v421
    %v550 = vunpack.c.l.b16 %v422
    %v551 = vunpack.c.l.b16 %v423
    %v552 = vunpack.c.l.b16 %v424
    %v553 = vunpack.c.l.b16 %v425
    %v554 = vunpack.c.l.b16 %v426
    %v555 = vunpack.c.l.b16 %v427
    %v556 = vunpack.c.l.b16 %v428
    %v557 = vunpack.c.l.b16 %v429
    %v558 = vunpack.c.l.b16 %v430
    %v559 = vunpack.c.l.b16 %v431
    %v560 = vunpack.c.l.b16 %v432
    %v561 = vunpack.c.l.b16 %v433
    %v562 = vunpack.c.l.b16 %v434
    %v563 = vunpack.c.l.b16 %v435
    %v564 = vunpack.c.l.b16 %v436
    %v565 = vunpack.c.l.b16 %v437
    %v566 = vunpack.c.l.b16 %v438
    %v567 = vunpack.c.l.b16 %v439
    %v568 = vunpack.c.l.b16 %v440
    %v569 = vunpack.c.l.b16 %v441
    %v570 = vunpack.c.l.b16 %v442
    %v571 = vunpack.c.l.b16 %v443
    %v572 = vunpack.c.l.b16 %v444
    %v573 = vunpack.c.l.b16 %v445
    %v574 = vunpack.c.l.b16 %v446
    %v575 = vunpack.c.l.b16 %v447
    %v576 = vunpack.c.l.b16 %v448
    %v577 = vunpack.c.l.b16 %v449
    %v578 = vunpack.c.l.b16 %v450
    %v579 = vunpack.c.l.b16 %v451
    %v580 = vunpack.c.l.b16 %v452
    %v581 = vunpack.c.l.b16 %v453
    %v582 = vunpack.c.l.b16 %v454
    %v583 = vunpack.c.l.b16 %v455
    %v584 = vunpack.c.l.b16 %v456
    %v585 = vunpack.c.l.b16 %v457
    %v586 = vunpack.c.l.b16 %v458
    %v587 = vunpack.c.l.b16 %v459
    %v588 = vunpack.c.l.b16 %v460
    %v589 = vunpack.c.l.b16 %v461
    %v590 = vunpack.c.l.b16 %v462
    %v591 = vunpack.c.l.b16 %v463
    %v592 = vunpack.c.l.b16 %v464
    %v593 = vunpack.c.l.b16 %v465
    %v594 = vunpack.c.l.b16 %v466
    %v595 = vunpack.c.l.b16 %v467
    %v596 = vunpack.c.l.b16 %v468
    %v597 = vunpack.c.l.b16 %v469
    %v598 = vunpack.c.l.b16 %v470
    %v599 = vunpack.c.l.b16 %v471
    %v600 = vunpack.c.l.b16 %v472
    %v601 = vunpack.c.l.b16 %v473
    %v602 = vpack.c.b16 %v539, %v538
    %v603 = vpack.c.b16 %v541, %v540
    %v604 = vpack.c.b16 %v543, %v542
    %v605 = vpack.c.b16 %v545, %v544
    %v606 = vpack.c.b16 %v547, %v546
    %v607 = vpack.c.b16 %v549, %v548
    %v608 = vpack.c.b16 %v551, %v550
    %v609 = vpack.c.b16 %v553, %v552
    %v610 = vpack.c.b16 %v555, %v554
    %v611 = vpack.c.b16 %v557, %v556
    %v612 = vpack.c.b16 %v559, %v558
    %v613 = vpack.c.b16 %v561, %v560
    %v614 = vpack.c.b16 %v563, %v562
    %v615 = vpack.c.b16 %v565, %v564
    %v616 = vpack.c.b16 %v567, %v566
    %v617 = vpack.c.b16 %v569, %v568
    %v618 = vpack.c.b16 %v571, %v570
    %v619 = vpack.c.b16 %v573, %v572
    %v620 = vpack.c.b16 %v575, %v574
    %v621 = vpack.c.b16 %v577, %v576
    %v622 = vpack.c.b16 %v579, %v578
    %v623 = vpack.c.b16 %v581, %v580
    %v624 = vpack.c.b16 %v583, %v582
    %v625 = vpack.c.b16 %v585, %v584
    %v626 = vpack.c.b16 %v587, %v586
    %v627 = vpack.c.b16 %v589, %v588
    %v628 = vpack.c.b16 %v591, %v590
    %v629 = vpack.c.b16 %v593, %v592
    %v630 = vpack.c.b16 %v595, %v594
    %v631 = vpack.c.b16 %v597, %v596
    %v632 = vpack.c.b16 %v599, %v598
    %v633 = vpack.c.b16 %v601, %v600
    %666 = vmatprep.subr.bf16.mxu0 0
    %667 = vmatpush1.bf16.msra.mxu0 %v402
    %668 = vmatprep.subr.bf16.mxu0 0
    %669 = vmatpush1.bf16.msra.mxu0 %v403
    %670 = vmatprep.subr.bf16.mxu0 0
    %671 = vmatpush1.bf16.msra.mxu0 %v404
    %672 = vmatprep.subr.bf16.mxu0 0
    %673 = vmatpush1.bf16.msra.mxu0 %v405
    %674 = vmatprep.subr.bf16.mxu0 0
    %675 = vmatpush1.bf16.msra.mxu0 %v406
    %676 = vmatprep.subr.bf16.mxu0 0
    %677 = vmatpush1.bf16.msra.mxu0 %v407
    %678 = vmatprep.subr.bf16.mxu0 0
    %679 = vmatpush1.bf16.msra.mxu0 %v408
    %680 = vmatprep.subr.bf16.mxu0 0
    %681 = vmatpush1.bf16.msra.mxu0 %v409
    %682 = vmatprep.subr.bf16.mxu0 0
    %683 = vmatpush1.bf16.msra.mxu0 0
    %684 = vmatprep.subr.bf16.mxu0 0
    %685 = vmatpush1.bf16.msra.mxu0 0
    %686 = vmatprep.subr.bf16.mxu0 0
    %687 = vmatpush1.bf16.msra.mxu0 0
    %688 = vmatprep.subr.bf16.mxu0 0
    %689 = vmatpush1.bf16.msra.mxu0 0
    %690 = vmatprep.subr.bf16.mxu0 0
    %691 = vmatpush1.bf16.msra.mxu0 0
    %692 = vmatprep.subr.bf16.mxu0 0
    %693 = vmatpush1.bf16.msra.mxu0 0
    %694 = vmatprep.subr.bf16.mxu0 0
    %695 = vmatpush1.bf16.msra.mxu0 0
    %696 = vmatprep.subr.bf16.mxu0 0
    %697 = vmatpush1.bf16.msra.mxu0 0
    %698 = vmatprep.mubr.bf16.mxu0 0
    %699 = vmatmul.mubr.bf16.gmra.mrb[0].mxu0 %v602
    %v700 = vpop.f32.mrb[0].mxu0
    %v701 = vadd.f32 0.0, %v700
    %v702 = vpop.f32.mrb[0].mxu0
    %v703 = vpop.f32.mrb[0].mxu0
    %v704 = vadd.f32 0.0, %v703
    %v705 = vpop.f32.mrb[0].mxu0
    %706 = vmatprep.mubr.bf16.mxu0 0
    %707 = vmatmul.mubr.bf16.gmra.mrb[0].mxu0 %v603
    %v708 = vpop.f32.mrb[0].mxu0
    %v709 = vadd.f32 0.0, %v708
    %v710 = vpop.f32.mrb[0].mxu0
    %v711 = vpop.f32.mrb[0].mxu0
    %v712 = vadd.f32 0.0, %v711
    %v713 = vpop.f32.mrb[0].mxu0
    %714 = vmatprep.mubr.bf16.mxu0 0
    %715 = vmatmul.mubr.bf16.gmra.mrb[0].mxu0 %v604
    %v716 = vpop.f32.mrb[0].mxu0
    %v717 = vadd.f32 0.0, %v716
    %v718 = vpop.f32.mrb[0].mxu0
    %v719 = vpop.f32.mrb[0].mxu0
    %v720 = vadd.f32 0.0, %v719
    %v721 = vpop.f32.mrb[0].mxu0
    %722 = vmatprep.mubr.bf16.mxu0 0
    %723 = vmatmul.mubr.bf16.gmra.mrb[0].mxu0 %v605
    %v724 = vpop.f32.mrb[0].mxu0
    %v725 = vadd.f32 0.0, %v724
    %v726 = vpop.f32.mrb[0].mxu0
    %v727 = vpop.f32.mrb[0].mxu0
    %v728 = vadd.f32 0.0, %v727
    %v729 = vpop.f32.mrb[0].mxu0
    %730 = vmatprep.mubr.bf16.mxu0 0
    %731 = vmatmul.mubr.bf16.gmra.mrb[0].mxu0 %v606
    %v732 = vpop.f32.mrb[0].mxu0
    %v733 = vadd.f32 0.0, %v732
    %v734 = vpop.f32.mrb[0].mxu0
    %v735 = vpop.f32.mrb[0].mxu0
    %v736 = vadd.f32 0.0, %v735
    %v737 = vpop.f32.mrb[0].mxu0
    %738 = vmatprep.mubr.bf16.mxu0 0
    %739 = vmatmul.mubr.bf16.gmra.mrb[0].mxu0 %v607
    %v740 = vpop.f32.mrb[0].mxu0
    %v741 = vadd.f32 0.0, %v740
    %v742 = vpop.f32.mrb[0].mxu0
    %v743 = vpop.f32.mrb[0].mxu0
    %v744 = vadd.f32 0.0, %v743
    %v745 = vpop.f32.mrb[0].mxu0
    %746 = vmatprep.mubr.bf16.mxu0 0
    %747 = vmatmul.mubr.bf16.gmra.mrb[0].mxu0 %v608
    %v748 = vpop.f32.mrb[0].mxu0
    %v749 = vadd.f32 0.0, %v748
    %v750 = vpop.f32.mrb[0].mxu0
    %v751 = vpop.f32.mrb[0].mxu0
    %v752 = vadd.f32 0.0, %v751
    %v753 = vpop.f32.mrb[0].mxu0
    %754 = vmatprep.mubr.bf16.mxu0 0
    %755 = vmatmul.mubr.bf16.gmra.mrb[0].mxu0 %v609
    %v756 = vpop.f32.mrb[0].mxu0
    %v757 = vadd.f32 0.0, %v756
    %v758 = vpop.f32.mrb[0].mxu0
    %v759 = vpop.f32.mrb[0].mxu0
    %v760 = vadd.f32 0.0, %v759
    %v761 = vpop.f32.mrb[0].mxu0
    %762 = vmatprep.mubr.bf16.mxu0 0
    %763 = vmatmul.mubr.bf16.gmra.mrb[0].mxu0 %v610
    %v764 = vpop.f32.mrb[0].mxu0
    %v765 = vadd.f32 0.0, %v764
    %v766 = vpop.f32.mrb[0].mxu0
    %v767 = vpop.f32.mrb[0].mxu0
    %v768 = vadd.f32 0.0, %v767
    %v769 = vpop.f32.mrb[0].mxu0
    %770 = vmatprep.mubr.bf16.mxu0 0
    %771 = vmatmul.mubr.bf16.gmra.mrb[0].mxu0 %v611
    %v772 = vpop.f32.mrb[0].mxu0
    %v773 = vadd.f32 0.0, %v772
    %v774 = vpop.f32.mrb[0].mxu0
    %v775 = vpop.f32.mrb[0].mxu0
    %v776 = vadd.f32 0.0, %v775
    %v777 = vpop.f32.mrb[0].mxu0
    %778 = vmatprep.mubr.bf16.mxu0 0
    %779 = vmatmul.mubr.bf16.gmra.mrb[0].mxu0 %v612
    %v780 = vpop.f32.mrb[0].mxu0
    %v781 = vadd.f32 0.0, %v780
    %v782 = vpop.f32.mrb[0].mxu0
    %v783 = vpop.f32.mrb[0].mxu0
    %v784 = vadd.f32 0.0, %v783
    %v785 = vpop.f32.mrb[0].mxu0
    %786 = vmatprep.mubr.bf16.mxu0 0
    %787 = vmatmul.mubr.bf16.gmra.mrb[0].mxu0 %v613
    %v788 = vpop.f32.mrb[0].mxu0
    %v789 = vadd.f32 0.0, %v788
    %v790 = vpop.f32.mrb[0].mxu0
    %v791 = vpop.f32.mrb[0].mxu0
    %v792 = vadd.f32 0.0, %v791
    %v793 = vpop.f32.mrb[0].mxu0
    %794 = vmatprep.mubr.bf16.mxu0 0
    %795 = vmatmul.mubr.bf16.gmra.mrb[0].mxu0 %v614
    %v796 = vpop.f32.mrb[0].mxu0
    %v797 = vadd.f32 0.0, %v796
    %v798 = vpop.f32.mrb[0].mxu0
    %v799 = vpop.f32.mrb[0].mxu0
    %v800 = vadd.f32 0.0, %v799
    %v801 = vpop.f32.mrb[0].mxu0
    %802 = vmatprep.mubr.bf16.mxu0 0
    %803 = vmatmul.mubr.bf16.gmra.mrb[0].mxu0 %v615
    %v804 = vpop.f32.mrb[0].mxu0
    %v805 = vadd.f32 0.0, %v804
    %v806 = vpop.f32.mrb[0].mxu0
    %v807 = vpop.f32.mrb[0].mxu0
    %v808 = vadd.f32 0.0, %v807
    %v809 = vpop.f32.mrb[0].mxu0
    %810 = vmatprep.mubr.bf16.mxu0 0
    %811 = vmatmul.mubr.bf16.gmra.mrb[0].mxu0 %v616
    %v812 = vpop.f32.mrb[0].mxu0
    %v813 = vadd.f32 0.0, %v812
    %v814 = vpop.f32.mrb[0].mxu0
    %v815 = vpop.f32.mrb[0].mxu0
    %v816 = vadd.f32 0.0, %v815
    %v817 = vpop.f32.mrb[0].mxu0
    %818 = vmatprep.mubr.bf16.mxu0 0
    %819 = vmatmul.mubr.bf16.gmra.mrb[0].mxu0 %v617
    %v820 = vpop.f32.mrb[0].mxu0
    %v821 = vadd.f32 0.0, %v820
    %v822 = vpop.f32.mrb[0].mxu0
    %v823 = vpop.f32.mrb[0].mxu0
    %v824 = vadd.f32 0.0, %v823
    %v825 = vpop.f32.mrb[0].mxu0
    %826 = vmatprep.mubr.bf16.mxu0 0
    %827 = vmatmul.mubr.bf16.gmra.mrb[0].mxu0 %v618
    %v828 = vpop.f32.mrb[0].mxu0
    %v829 = vadd.f32 0.0, %v828
    %v830 = vpop.f32.mrb[0].mxu0
    %v831 = vpop.f32.mrb[0].mxu0
    %v832 = vadd.f32 0.0, %v831
    %v833 = vpop.f32.mrb[0].mxu0
    %834 = vmatprep.mubr.bf16.mxu0 0
    %835 = vmatmul.mubr.bf16.gmra.mrb[0].mxu0 %v619
    %v836 = vpop.f32.mrb[0].mxu0
    %v837 = vadd.f32 0.0, %v836
    %v838 = vpop.f32.mrb[0].mxu0
    %v839 = vpop.f32.mrb[0].mxu0
    %v840 = vadd.f32 0.0, %v839
    %v841 = vpop.f32.mrb[0].mxu0
    %842 = vmatprep.mubr.bf16.mxu0 0
    %843 = vmatmul.mubr.bf16.gmra.mrb[0].mxu0 %v620
    %v844 = vpop.f32.mrb[0].mxu0
    %v845 = vadd.f32 0.0, %v844
    %v846 = vpop.f32.mrb[0].mxu0
    %v847 = vpop.f32.mrb[0].mxu0
    %v848 = vadd.f32 0.0, %v847
    %v849 = vpop.f32.mrb[0].mxu0
    %850 = vmatprep.mubr.bf16.mxu0 0
    %851 = vmatmul.mubr.bf16.gmra.mrb[0].mxu0 %v621
    %v852 = vpop.f32.mrb[0].mxu0
    %v853 = vadd.f32 0.0, %v852
    %v854 = vpop.f32.mrb[0].mxu0
    %v855 = vpop.f32.mrb[0].mxu0
    %v856 = vadd.f32 0.0, %v855
    %v857 = vpop.f32.mrb[0].mxu0
    %858 = vmatprep.mubr.bf16.mxu0 0
    %859 = vmatmul.mubr.bf16.gmra.mrb[0].mxu0 %v622
    %v860 = vpop.f32.mrb[0].mxu0
    %v861 = vadd.f32 0.0, %v860
    %v862 = vpop.f32.mrb[0].mxu0
    %v863 = vpop.f32.mrb[0].mxu0
    %v864 = vadd.f32 0.0, %v863
    %v865 = vpop.f32.mrb[0].mxu0
    %866 = vmatprep.mubr.bf16.mxu0 0
    %867 = vmatmul.mubr.bf16.gmra.mrb[0].mxu0 %v623
    %v868 = vpop.f32.mrb[0].mxu0
    %v869 = vadd.f32 0.0, %v868
    %v870 = vpop.f32.mrb[0].mxu0
    %v871 = vpop.f32.mrb[0].mxu0
    %v872 = vadd.f32 0.0, %v871
    %v873 = vpop.f32.mrb[0].mxu0
    %874 = vmatprep.mubr.bf16.mxu0 0
    %875 = vmatmul.mubr.bf16.gmra.mrb[0].mxu0 %v624
    %v876 = vpop.f32.mrb[0].mxu0
    %v877 = vadd.f32 0.0, %v876
    %v878 = vpop.f32.mrb[0].mxu0
    %v879 = vpop.f32.mrb[0].mxu0
    %v880 = vadd.f32 0.0, %v879
    %v881 = vpop.f32.mrb[0].mxu0
    %882 = vmatprep.mubr.bf16.mxu0 0
    %883 = vmatmul.mubr.bf16.gmra.mrb[0].mxu0 %v625
    %v884 = vpop.f32.mrb[0].mxu0
    %v885 = vadd.f32 0.0, %v884
    %v886 = vpop.f32.mrb[0].mxu0
    %v887 = vpop.f32.mrb[0].mxu0
    %v888 = vadd.f32 0.0, %v887
    %v889 = vpop.f32.mrb[0].mxu0
    %890 = vmatprep.mubr.bf16.mxu0 0
    %891 = vmatmul.mubr.bf16.gmra.mrb[0].mxu0 %v626
    %v892 = vpop.f32.mrb[0].mxu0
    %v893 = vadd.f32 0.0, %v892
    %v894 = vpop.f32.mrb[0].mxu0
    %v895 = vpop.f32.mrb[0].mxu0
    %v896 = vadd.f32 0.0, %v895
    %v897 = vpop.f32.mrb[0].mxu0
    %898 = vmatprep.mubr.bf16.mxu0 0
    %899 = vmatmul.mubr.bf16.gmra.mrb[0].mxu0 %v627
    %v900 = vpop.f32.mrb[0].mxu0
    %v901 = vadd.f32 0.0, %v900
    %v902 = vpop.f32.mrb[0].mxu0
    %v903 = vpop.f32.mrb[0].mxu0
    %v904 = vadd.f32 0.0, %v903
    %v905 = vpop.f32.mrb[0].mxu0
    %906 = vmatprep.mubr.bf16.mxu0 0
    %907 = vmatmul.mubr.bf16.gmra.mrb[0].mxu0 %v628
    %v908 = vpop.f32.mrb[0].mxu0
    %v909 = vadd.f32 0.0, %v908
    %v910 = vpop.f32.mrb[0].mxu0
    %v911 = vpop.f32.mrb[0].mxu0
    %v912 = vadd.f32 0.0, %v911
    %v913 = vpop.f32.mrb[0].mxu0
    %914 = vmatprep.mubr.bf16.mxu0 0
    %915 = vmatmul.mubr.bf16.gmra.mrb[0].mxu0 %v629
    %v916 = vpop.f32.mrb[0].mxu0
    %v917 = vadd.f32 0.0, %v916
    %v918 = vpop.f32.mrb[0].mxu0
    %v919 = vpop.f32.mrb[0].mxu0
    %v920 = vadd.f32 0.0, %v919
    %v921 = vpop.f32.mrb[0].mxu0
    %922 = vmatprep.mubr.bf16.mxu0 0
    %923 = vmatmul.mubr.bf16.gmra.mrb[0].mxu0 %v630
    %v924 = vpop.f32.mrb[0].mxu0
    %v925 = vadd.f32 0.0, %v924
    %v926 = vpop.f32.mrb[0].mxu0
    %v927 = vpop.f32.mrb[0].mxu0
    %v928 = vadd.f32 0.0, %v927
    %v929 = vpop.f32.mrb[0].mxu0
    %930 = vmatprep.mubr.bf16.mxu0 0
    %931 = vmatmul.mubr.bf16.gmra.mrb[0].mxu0 %v631
    %v932 = vpop.f32.mrb[0].mxu0
    %v933 = vadd.f32 0.0, %v932
    %v934 = vpop.f32.mrb[0].mxu0
    %v935 = vpop.f32.mrb[0].mxu0
    %v936 = vadd.f32 0.0, %v935
    %v937 = vpop.f32.mrb[0].mxu0
    %938 = vmatprep.mubr.bf16.mxu0 0
    %939 = vmatmul.mubr.bf16.gmra.mrb[0].mxu0 %v632
    %v940 = vpop.f32.mrb[0].mxu0
    %v941 = vadd.f32 0.0, %v940
    %v942 = vpop.f32.mrb[0].mxu0
    %v943 = vpop.f32.mrb[0].mxu0
    %v944 = vadd.f32 0.0, %v943
    %v945 = vpop.f32.mrb[0].mxu0
    %946 = vmatprep.mubr.bf16.mxu0 0
    %947 = vmatmul.mubr.bf16.gmra.mrb[0].mxu0 %v633
    %v948 = vpop.f32.mrb[0].mxu0
    %v949 = vadd.f32 0.0, %v948
    %v950 = vpop.f32.mrb[0].mxu0
    %v951 = vpop.f32.mrb[0].mxu0
    %v952 = vadd.f32 0.0, %v951
    %v953 = vpop.f32.mrb[0].mxu0
    %954 = vdwg.mxu0
    %v955 = vpack.c.bf16 %v704, %v701
    %v956 = vpack.c.bf16 %v712, %v709
    %v957 = vpack.c.bf16 %v720, %v717
    %v958 = vpack.c.bf16 %v728, %v725
    %v959 = vpack.c.bf16 %v736, %v733
    %v960 = vpack.c.bf16 %v744, %v741
    %v961 = vpack.c.bf16 %v752, %v749
    %v962 = vpack.c.bf16 %v760, %v757
    %v963 = vpack.c.bf16 %v768, %v765
    %v964 = vpack.c.bf16 %v776, %v773
    %v965 = vpack.c.bf16 %v784, %v781
    %v966 = vpack.c.bf16 %v792, %v789
    %v967 = vpack.c.bf16 %v800, %v797
    %v968 = vpack.c.bf16 %v808, %v805
    %v969 = vpack.c.bf16 %v816, %v813
    %v970 = vpack.c.bf16 %v824, %v821
    %v971 = vpack.c.bf16 %v832, %v829
    %v972 = vpack.c.bf16 %v840, %v837
    %v973 = vpack.c.bf16 %v848, %v845
    %v974 = vpack.c.bf16 %v856, %v853
    %v975 = vpack.c.bf16 %v864, %v861
    %v976 = vpack.c.bf16 %v872, %v869
    %v977 = vpack.c.bf16 %v880, %v877
    %v978 = vpack.c.bf16 %v888, %v885
    %v979 = vpack.c.bf16 %v896, %v893
    %v980 = vpack.c.bf16 %v904, %v901
    %v981 = vpack.c.bf16 %v912, %v909
    %v982 = vpack.c.bf16 %v920, %v917
    %v983 = vpack.c.bf16 %v928, %v925
    %v984 = vpack.c.bf16 %v936, %v933
    %v985 = vpack.c.bf16 %v944, %v941
    %v986 = vpack.c.bf16 %v952, %v949
    %vm987 = vcmask 261120
    %988 = vst.msk [vmem:[#allocation2] sm:$0xff] %vm987, %v955
    %989 = vst.msk [vmem:[#allocation2 + $0x8] sm:$0xff] %vm987, %v956
    %990 = vst.msk [vmem:[#allocation2 + $0x10] sm:$0xff] %vm987, %v957
    %991 = vst.msk [vmem:[#allocation2 + $0x18] sm:$0xff] %vm987, %v958
    %992 = vst.msk [vmem:[#allocation2 + $0x20] sm:$0xff] %vm987, %v959
    %993 = vst.msk [vmem:[#allocation2 + $0x28] sm:$0xff] %vm987, %v960
    %994 = vst.msk [vmem:[#allocation2 + $0x30] sm:$0xff] %vm987, %v961
    %995 = vst.msk [vmem:[#allocation2 + $0x38] sm:$0xff] %vm987, %v962
    %996 = vst.msk [vmem:[#allocation2 + $0x40] sm:$0xff] %vm987, %v963
    %997 = vst.msk [vmem:[#allocation2 + $0x48] sm:$0xff] %vm987, %v964
    %998 = vst.msk [vmem:[#allocation2 + $0x50] sm:$0xff] %vm987, %v965
    %999 = vst.msk [vmem:[#allocation2 + $0x58] sm:$0xff] %vm987, %v966
    %1000 = vst.msk [vmem:[#allocation2 + $0x60] sm:$0xff] %vm987, %v967
    %1001 = vst.msk [vmem:[#allocation2 + $0x68] sm:$0xff] %vm987, %v968
    %1002 = vst.msk [vmem:[#allocation2 + $0x70] sm:$0xff] %vm987, %v969
    %1003 = vst.msk [vmem:[#allocation2 + $0x78] sm:$0xff] %vm987, %v970
    %1004 = vst.msk [vmem:[#allocation2 + $0x80] sm:$0xff] %vm987, %v971
    %1005 = vst.msk [vmem:[#allocation2 + $0x88] sm:$0xff] %vm987, %v972
    %1006 = vst.msk [vmem:[#allocation2 + $0x90] sm:$0xff] %vm987, %v973
    %1007 = vst.msk [vmem:[#allocation2 + $0x98] sm:$0xff] %vm987, %v974
    %1008 = vst.msk [vmem:[#allocation2 + $0xa0] sm:$0xff] %vm987, %v975
    %1009 = vst.msk [vmem:[#allocation2 + $0xa8] sm:$0xff] %vm987, %v976
    %1010 = vst.msk [vmem:[#allocation2 + $0xb0] sm:$0xff] %vm987, %v977
    %1011 = vst.msk [vmem:[#allocation2 + $0xb8] sm:$0xff] %vm987, %v978
    %1012 = vst.msk [vmem:[#allocation2 + $0xc0] sm:$0xff] %vm987, %v979
    %1013 = vst.msk [vmem:[#allocation2 + $0xc8] sm:$0xff] %vm987, %v980
    %1014 = vst.msk [vmem:[#allocation2 + $0xd0] sm:$0xff] %vm987, %v981
    %1015 = vst.msk [vmem:[#allocation2 + $0xd8] sm:$0xff] %vm987, %v982
    %1016 = vst.msk [vmem:[#allocation2 + $0xe0] sm:$0xff] %vm987, %v983
    %1017 = vst.msk [vmem:[#allocation2 + $0xe8] sm:$0xff] %vm987, %v984
    %1018 = vst.msk [vmem:[#allocation2 + $0xf0] sm:$0xff] %vm987, %v985
    %1019 = vst.msk [vmem:[#allocation2 + $0xf8] sm:$0xff] %vm987, %v986
    %v1020 = vld [vmem:[#allocation2] sm:$0xff]
    %v1021 = vld [vmem:[#allocation2 + $0x8] sm:$0xff]
    %v1022 = vld [vmem:[%s4] sm:$0xf]
    %v1023 = vld [vmem:[%s4 + $0x4] sm:$0xf]
    %v1024 = vld [vmem:[%s4 + $0x8] sm:$0xf]
    %v1025 = vld [vmem:[%s4 + $0xc] sm:$0xf]
    %v1026 = vld [vmem:[#allocation2 + $0x10] sm:$0xff]
    %v1027 = vld [vmem:[#allocation2 + $0x18] sm:$0xff]
    %s1028 = scalar_lea.vmem %s4, 16
    %v1029 = vld [vmem:[%s1028] sm:$0xf]
    %v1030 = vld [vmem:[%s1028 + $0x4] sm:$0xf]
    %v1031 = vld [vmem:[%s1028 + $0x8] sm:$0xf]
    %v1032 = vld [vmem:[%s1028 + $0xc] sm:$0xf]
    %v1037 = vunpack.c.l.b16 %v1029
    %v1038 = vunpack.c.l.b16 %v1030
    %v1039 = vunpack.c.l.b16 %v1031
    %v1040 = vunpack.c.l.b16 %v1032
    %v1041 = vpack.c.b16 %v1038, %v1037
    %v1042 = vpack.c.b16 %v1040, %v1039
    %v1046 = vsel %vm987, %v1026, 0
    %v1049 = vsel %vm987, %v1027, 0
    %1051 = vmatprep.subr.bf16.mxu0 0
    %1052 = vmatpush1.bf16.msra.mxu0 %v1041
    %1053 = vmatprep.subr.bf16.mxu0 0
    %1054 = vmatpush1.bf16.msra.mxu0 %v1042
    %1055 = vmatprep.subr.bf16.mxu0 0
    %1056 = vmatpush1.bf16.msra.mxu0 0
    %1057 = vmatprep.subr.bf16.mxu0 0
    %1058 = vmatpush1.bf16.msra.mxu0 0
    %1059 = vmatprep.subr.bf16.mxu0 0
    %1060 = vmatpush1.bf16.msra.mxu0 0
    %1061 = vmatprep.subr.bf16.mxu0 0
    %1062 = vmatpush1.bf16.msra.mxu0 0
    %1063 = vmatprep.subr.bf16.mxu0 0
    %1064 = vmatpush1.bf16.msra.mxu0 0
    %1065 = vmatprep.subr.bf16.mxu0 0
    %1066 = vmatpush1.bf16.msra.mxu0 0
    %1067 = vmatprep.subr.bf16.mxu0 0
    %1068 = vmatpush1.bf16.msra.mxu0 0
    %1069 = vmatprep.subr.bf16.mxu0 0
    %1070 = vmatpush1.bf16.msra.mxu0 0
    %1071 = vmatprep.subr.bf16.mxu0 0
    %1072 = vmatpush1.bf16.msra.mxu0 0
    %1073 = vmatprep.subr.bf16.mxu0 0
    %1074 = vmatpush1.bf16.msra.mxu0 0
    %1075 = vmatprep.subr.bf16.mxu0 0
    %1076 = vmatpush1.bf16.msra.mxu0 0
    %1077 = vmatprep.subr.bf16.mxu0 0
    %1078 = vmatpush1.bf16.msra.mxu0 0
    %1079 = vmatprep.subr.bf16.mxu0 0
    %1080 = vmatpush1.bf16.msra.mxu0 0
    %1081 = vmatprep.subr.bf16.mxu0 0
    %1082 = vmatpush1.bf16.msra.mxu0 0
    %1083 = vmatprep.mubr.bf16.mxu0 0
    %1084 = vmatmul.mubr.bf16.gmra.mrb[0].mxu0 %v1046
    %v1085 = vpop.f32.mrb[0].mxu0
    %v1086 = vadd.f32 0.0, %v1085
    %v1087 = vpop.f32.mrb[0].mxu0
    %v1088 = vpop.f32.mrb[0].mxu0
    %v1089 = vadd.f32 0.0, %v1088
    %v1090 = vpop.f32.mrb[0].mxu0
    %1091 = vmatprep.mubr.bf16.mxu0 0
    %1092 = vmatmul.mubr.bf16.gmra.mrb[0].mxu0 %v1049
    %v1093 = vpop.f32.mrb[0].mxu0
    %v1094 = vadd.f32 0.0, %v1093
    %v1095 = vpop.f32.mrb[0].mxu0
    %v1096 = vpop.f32.mrb[0].mxu0
    %v1097 = vadd.f32 0.0, %v1096
    %v1098 = vpop.f32.mrb[0].mxu0
    %1099 = vdwg.mxu0
    %v1104 = vunpack.c.l.b16 %v1022
    %v1105 = vunpack.c.l.b16 %v1023
    %v1106 = vunpack.c.l.b16 %v1024
    %v1107 = vunpack.c.l.b16 %v1025
    %v1108 = vpack.c.b16 %v1105, %v1104
    %v1109 = vpack.c.b16 %v1107, %v1106
    %v1113 = vsel %vm987, %v1020, 0
    %v1116 = vsel %vm987, %v1021, 0
    %1118 = vmatprep.subr.bf16.mxu0 0
    %1119 = vmatpush1.bf16.msra.mxu0 %v1108
    %1120 = vmatprep.subr.bf16.mxu0 0
    %1121 = vmatpush1.bf16.msra.mxu0 %v1109
    %1122 = vmatprep.subr.bf16.mxu0 0
    %1123 = vmatpush1.bf16.msra.mxu0 0
    %1124 = vmatprep.subr.bf16.mxu0 0
    %1125 = vmatpush1.bf16.msra.mxu0 0
    %1126 = vmatprep.subr.bf16.mxu0 0
    %1127 = vmatpush1.bf16.msra.mxu0 0
    %1128 = vmatprep.subr.bf16.mxu0 0
    %1129 = vmatpush1.bf16.msra.mxu0 0
    %1130 = vmatprep.subr.bf16.mxu0 0
    %1131 = vmatpush1.bf16.msra.mxu0 0
    %1132 = vmatprep.subr.bf16.mxu0 0
    %1133 = vmatpush1.bf16.msra.mxu0 0
    %1134 = vmatprep.subr.bf16.mxu0 0
    %1135 = vmatpush1.bf16.msra.mxu0 0
    %1136 = vmatprep.subr.bf16.mxu0 0
    %1137 = vmatpush1.bf16.msra.mxu0 0
    %1138 = vmatprep.subr.bf16.mxu0 0
    %1139 = vmatpush1.bf16.msra.mxu0 0
    %1140 = vmatprep.subr.bf16.mxu0 0
    %1141 = vmatpush1.bf16.msra.mxu0 0
    %1142 = vmatprep.subr.bf16.mxu0 0
    %1143 = vmatpush1.bf16.msra.mxu0 0
    %1144 = vmatprep.subr.bf16.mxu0 0
    %1145 = vmatpush1.bf16.msra.mxu0 0
    %1146 = vmatprep.subr.bf16.mxu0 0
    %1147 = vmatpush1.bf16.msra.mxu0 0
    %1148 = vmatprep.subr.bf16.mxu0 0
    %1149 = vmatpush1.bf16.msra.mxu0 0
    %1150 = vmatprep.mubr.bf16.mxu0 0
    %1151 = vmatmul.mubr.bf16.gmra.mrb[0].mxu0 %v1113
    %v1152 = vpop.f32.mrb[0].mxu0
    %v1153 = vadd.f32 %v1086, %v1152
    %v1154 = vpop.f32.mrb[0].mxu0
    %v1155 = vpop.f32.mrb[0].mxu0
    %v1156 = vadd.f32 %v1089, %v1155
    %v1157 = vpop.f32.mrb[0].mxu0
    %1158 = vmatprep.mubr.bf16.mxu0 0
    %1159 = vmatmul.mubr.bf16.gmra.mrb[0].mxu0 %v1116
    %v1160 = vpop.f32.mrb[0].mxu0
    %v1161 = vadd.f32 %v1094, %v1160
    %v1162 = vpop.f32.mrb[0].mxu0
    %v1163 = vpop.f32.mrb[0].mxu0
    %v1164 = vadd.f32 %v1097, %v1163
    %v1165 = vpop.f32.mrb[0].mxu0
    %1166 = vdwg.mxu0
    %v1167 = vld [vmem:[#allocation2 + $0x20] sm:$0xff]
    %v1168 = vld [vmem:[#allocation2 + $0x28] sm:$0xff]
    %s1169 = scalar_lea.vmem %s4, 32
    %v1170 = vld [vmem:[%s1169] sm:$0xf]
    %v1171 = vld [vmem:[%s1169 + $0x4] sm:$0xf]
    %v1172 = vld [vmem:[%s1169 + $0x8] sm:$0xf]
    %v1173 = vld [vmem:[%s1169 + $0xc] sm:$0xf]
    %v1178 = vunpack.c.l.b16 %v1170
    %v1179 = vunpack.c.l.b16 %v1171
    %v1180 = vunpack.c.l.b16 %v1172
    %v1181 = vunpack.c.l.b16 %v1173
    %v1182 = vpack.c.b16 %v1179, %v1178
    %v1183 = vpack.c.b16 %v1181, %v1180
    %v1187 = vsel %vm987, %v1167, 0
    %v1190 = vsel %vm987, %v1168, 0
    %1192 = vmatprep.subr.bf16.mxu0 0
    %1193 = vmatpush1.bf16.msra.mxu0 %v1182
    %1194 = vmatprep.subr.bf16.mxu0 0
    %1195 = vmatpush1.bf16.msra.mxu0 %v1183
    %1196 = vmatprep.subr.bf16.mxu0 0
    %1197 = vmatpush1.bf16.msra.mxu0 0
    %1198 = vmatprep.subr.bf16.mxu0 0
    %1199 = vmatpush1.bf16.msra.mxu0 0
    %1200 = vmatprep.subr.bf16.mxu0 0
    %1201 = vmatpush1.bf16.msra.mxu0 0
    %1202 = vmatprep.subr.bf16.mxu0 0
    %1203 = vmatpush1.bf16.msra.mxu0 0
    %1204 = vmatprep.subr.bf16.mxu0 0
    %1205 = vmatpush1.bf16.msra.mxu0 0
    %1206 = vmatprep.subr.bf16.mxu0 0
    %1207 = vmatpush1.bf16.msra.mxu0 0
    %1208 = vmatprep.subr.bf16.mxu0 0
    %1209 = vmatpush1.bf16.msra.mxu0 0
    %1210 = vmatprep.subr.bf16.mxu0 0
    %1211 = vmatpush1.bf16.msra.mxu0 0
    %1212 = vmatprep.subr.bf16.mxu0 0
    %1213 = vmatpush1.bf16.msra.mxu0 0
    %1214 = vmatprep.subr.bf16.mxu0 0
    %1215 = vmatpush1.bf16.msra.mxu0 0
    %1216 = vmatprep.subr.bf16.mxu0 0
    %1217 = vmatpush1.bf16.msra.mxu0 0
    %1218 = vmatprep.subr.bf16.mxu0 0
    %1219 = vmatpush1.bf16.msra.mxu0 0
    %1220 = vmatprep.subr.bf16.mxu0 0
    %1221 = vmatpush1.bf16.msra.mxu0 0
    %1222 = vmatprep.subr.bf16.mxu0 0
    %1223 = vmatpush1.bf16.msra.mxu0 0
    %1224 = vmatprep.mubr.bf16.mxu0 0
    %1225 = vmatmul.mubr.bf16.gmra.mrb[0].mxu0 %v1187
    %v1226 = vpop.f32.mrb[0].mxu0
    %v1227 = vadd.f32 0.0, %v1226
    %v1228 = vpop.f32.mrb[0].mxu0
    %v1229 = vpop.f32.mrb[0].mxu0
    %v1230 = vadd.f32 0.0, %v1229
    %v1231 = vpop.f32.mrb[0].mxu0
    %1232 = vmatprep.mubr.bf16.mxu0 0
    %1233 = vmatmul.mubr.bf16.gmra.mrb[0].mxu0 %v1190
    %v1234 = vpop.f32.mrb[0].mxu0
    %v1235 = vadd.f32 0.0, %v1234
    %v1236 = vpop.f32.mrb[0].mxu0
    %v1237 = vpop.f32.mrb[0].mxu0
    %v1238 = vadd.f32 0.0, %v1237
    %v1239 = vpop.f32.mrb[0].mxu0
    %1240 = vdwg.mxu0
    %v1241 = vadd.f32 %v1153, %v1227
    %v1242 = vadd.f32 %v1156, %v1230
    %v1243 = vadd.f32 %v1161, %v1235
    %v1244 = vadd.f32 %v1164, %v1238
    %v1245 = vld [vmem:[#allocation2 + $0x30] sm:$0xff]
    %v1246 = vld [vmem:[#allocation2 + $0x38] sm:$0xff]
    %s1247 = scalar_lea.vmem %s4, 48
    %v1248 = vld [vmem:[%s1247] sm:$0xf]
    %v1249 = vld [vmem:[%s1247 + $0x4] sm:$0xf]
    %v1250 = vld [vmem:[%s1247 + $0x8] sm:$0xf]
    %v1251 = vld [vmem:[%s1247 + $0xc] sm:$0xf]
    %v1256 = vunpack.c.l.b16 %v1248
    %v1257 = vunpack.c.l.b16 %v1249
    %v1258 = vunpack.c.l.b16 %v1250
    %v1259 = vunpack.c.l.b16 %v1251
    %v1260 = vpack.c.b16 %v1257, %v1256
    %v1261 = vpack.c.b16 %v1259, %v1258
    %v1265 = vsel %vm987, %v1245, 0
    %v1268 = vsel %vm987, %v1246, 0
    %1270 = vmatprep.subr.bf16.mxu0 0
    %1271 = vmatpush1.bf16.msra.mxu0 %v1260
    %1272 = vmatprep.subr.bf16.mxu0 0
    %1273 = vmatpush1.bf16.msra.mxu0 %v1261
    %1274 = vmatprep.subr.bf16.mxu0 0
    %1275 = vmatpush1.bf16.msra.mxu0 0
    %1276 = vmatprep.subr.bf16.mxu0 0
    %1277 = vmatpush1.bf16.msra.mxu0 0
    %1278 = vmatprep.subr.bf16.mxu0 0
    %1279 = vmatpush1.bf16.msra.mxu0 0
    %1280 = vmatprep.subr.bf16.mxu0 0
    %1281 = vmatpush1.bf16.msra.mxu0 0
    %1282 = vmatprep.subr.bf16.mxu0 0
    %1283 = vmatpush1.bf16.msra.mxu0 0
    %1284 = vmatprep.subr.bf16.mxu0 0
    %1285 = vmatpush1.bf16.msra.mxu0 0
    %1286 = vmatprep.subr.bf16.mxu0 0
    %1287 = vmatpush1.bf16.msra.mxu0 0
    %1288 = vmatprep.subr.bf16.mxu0 0
    %1289 = vmatpush1.bf16.msra.mxu0 0
    %1290 = vmatprep.subr.bf16.mxu0 0
    %1291 = vmatpush1.bf16.msra.mxu0 0
    %1292 = vmatprep.subr.bf16.mxu0 0
    %1293 = vmatpush1.bf16.msra.mxu0 0
    %1294 = vmatprep.subr.bf16.mxu0 0
    %1295 = vmatpush1.bf16.msra.mxu0 0
    %1296 = vmatprep.subr.bf16.mxu0 0
    %1297 = vmatpush1.bf16.msra.mxu0 0
    %1298 = vmatprep.subr.bf16.mxu0 0
    %1299 = vmatpush1.bf16.msra.mxu0 0
    %1300 = vmatprep.subr.bf16.mxu0 0
    %1301 = vmatpush1.bf16.msra.mxu0 0
    %1302 = vmatprep.mubr.bf16.mxu0 0
    %1303 = vmatmul.mubr.bf16.gmra.mrb[0].mxu0 %v1265
    %v1304 = vpop.f32.mrb[0].mxu0
    %v1305 = vadd.f32 0.0, %v1304
    %v1306 = vpop.f32.mrb[0].mxu0
    %v1307 = vpop.f32.mrb[0].mxu0
    %v1308 = vadd.f32 0.0, %v1307
    %v1309 = vpop.f32.mrb[0].mxu0
    %1310 = vmatprep.mubr.bf16.mxu0 0
    %1311 = vmatmul.mubr.bf16.gmra.mrb[0].mxu0 %v1268
    %v1312 = vpop.f32.mrb[0].mxu0
    %v1313 = vadd.f32 0.0, %v1312
    %v1314 = vpop.f32.mrb[0].mxu0
    %v1315 = vpop.f32.mrb[0].mxu0
    %v1316 = vadd.f32 0.0, %v1315
    %v1317 = vpop.f32.mrb[0].mxu0
    %1318 = vdwg.mxu0
    %v1319 = vadd.f32 %v1241, %v1305
    %v1320 = vadd.f32 %v1242, %v1308
    %v1321 = vadd.f32 %v1243, %v1313
    %v1322 = vadd.f32 %v1244, %v1316
    %v1323 = vld [vmem:[#allocation2 + $0x40] sm:$0xff]
    %v1324 = vld [vmem:[#allocation2 + $0x48] sm:$0xff]
    %s1325 = scalar_lea.vmem %s4, 64
    %v1326 = vld [vmem:[%s1325] sm:$0xf]
    %v1327 = vld [vmem:[%s1325 + $0x4] sm:$0xf]
    %v1328 = vld [vmem:[%s1325 + $0x8] sm:$0xf]
    %v1329 = vld [vmem:[%s1325 + $0xc] sm:$0xf]
    %v1334 = vunpack.c.l.b16 %v1326
    %v1335 = vunpack.c.l.b16 %v1327
    %v1336 = vunpack.c.l.b16 %v1328
    %v1337 = vunpack.c.l.b16 %v1329
    %v1338 = vpack.c.b16 %v1335, %v1334
    %v1339 = vpack.c.b16 %v1337, %v1336
    %v1343 = vsel %vm987, %v1323, 0
    %v1346 = vsel %vm987, %v1324, 0
    %1348 = vmatprep.subr.bf16.mxu0 0
    %1349 = vmatpush1.bf16.msra.mxu0 %v1338
    %1350 = vmatprep.subr.bf16.mxu0 0
    %1351 = vmatpush1.bf16.msra.mxu0 %v1339
    %1352 = vmatprep.subr.bf16.mxu0 0
    %1353 = vmatpush1.bf16.msra.mxu0 0
    %1354 = vmatprep.subr.bf16.mxu0 0
    %1355 = vmatpush1.bf16.msra.mxu0 0
    %1356 = vmatprep.subr.bf16.mxu0 0
    %1357 = vmatpush1.bf16.msra.mxu0 0
    %1358 = vmatprep.subr.bf16.mxu0 0
    %1359 = vmatpush1.bf16.msra.mxu0 0
    %1360 = vmatprep.subr.bf16.mxu0 0
    %1361 = vmatpush1.bf16.msra.mxu0 0
    %1362 = vmatprep.subr.bf16.mxu0 0
    %1363 = vmatpush1.bf16.msra.mxu0 0
    %1364 = vmatprep.subr.bf16.mxu0 0
    %1365 = vmatpush1.bf16.msra.mxu0 0
    %1366 = vmatprep.subr.bf16.mxu0 0
    %1367 = vmatpush1.bf16.msra.mxu0 0
    %1368 = vmatprep.subr.bf16.mxu0 0
    %1369 = vmatpush1.bf16.msra.mxu0 0
    %1370 = vmatprep.subr.bf16.mxu0 0
    %1371 = vmatpush1.bf16.msra.mxu0 0
    %1372 = vmatprep.subr.bf16.mxu0 0
    %1373 = vmatpush1.bf16.msra.mxu0 0
    %1374 = vmatprep.subr.bf16.mxu0 0
    %1375 = vmatpush1.bf16.msra.mxu0 0
    %1376 = vmatprep.subr.bf16.mxu0 0
    %1377 = vmatpush1.bf16.msra.mxu0 0
    %1378 = vmatprep.subr.bf16.mxu0 0
    %1379 = vmatpush1.bf16.msra.mxu0 0
    %1380 = vmatprep.mubr.bf16.mxu0 0
    %1381 = vmatmul.mubr.bf16.gmra.mrb[0].mxu0 %v1343
    %v1382 = vpop.f32.mrb[0].mxu0
    %v1383 = vadd.f32 0.0, %v1382
    %v1384 = vpop.f32.mrb[0].mxu0
    %v1385 = vpop.f32.mrb[0].mxu0
    %v1386 = vadd.f32 0.0, %v1385
    %v1387 = vpop.f32.mrb[0].mxu0
    %1388 = vmatprep.mubr.bf16.mxu0 0
    %1389 = vmatmul.mubr.bf16.gmra.mrb[0].mxu0 %v1346
    %v1390 = vpop.f32.mrb[0].mxu0
    %v1391 = vadd.f32 0.0, %v1390
    %v1392 = vpop.f32.mrb[0].mxu0
    %v1393 = vpop.f32.mrb[0].mxu0
    %v1394 = vadd.f32 0.0, %v1393
    %v1395 = vpop.f32.mrb[0].mxu0
    %1396 = vdwg.mxu0
    %v1397 = vadd.f32 %v1319, %v1383
    %v1398 = vadd.f32 %v1320, %v1386
    %v1399 = vadd.f32 %v1321, %v1391
    %v1400 = vadd.f32 %v1322, %v1394
    %v1401 = vld [vmem:[#allocation2 + $0x50] sm:$0xff]
    %v1402 = vld [vmem:[#allocation2 + $0x58] sm:$0xff]
    %s1403 = scalar_lea.vmem %s4, 80
    %v1404 = vld [vmem:[%s1403] sm:$0xf]
    %v1405 = vld [vmem:[%s1403 + $0x4] sm:$0xf]
    %v1406 = vld [vmem:[%s1403 + $0x8] sm:$0xf]
    %v1407 = vld [vmem:[%s1403 + $0xc] sm:$0xf]
    %v1412 = vunpack.c.l.b16 %v1404
    %v1413 = vunpack.c.l.b16 %v1405
    %v1414 = vunpack.c.l.b16 %v1406
    %v1415 = vunpack.c.l.b16 %v1407
    %v1416 = vpack.c.b16 %v1413, %v1412
    %v1417 = vpack.c.b16 %v1415, %v1414
    %v1421 = vsel %vm987, %v1401, 0
    %v1424 = vsel %vm987, %v1402, 0
    %1426 = vmatprep.subr.bf16.mxu0 0
    %1427 = vmatpush1.bf16.msra.mxu0 %v1416
    %1428 = vmatprep.subr.bf16.mxu0 0
    %1429 = vmatpush1.bf16.msra.mxu0 %v1417
    %1430 = vmatprep.subr.bf16.mxu0 0
    %1431 = vmatpush1.bf16.msra.mxu0 0
    %1432 = vmatprep.subr.bf16.mxu0 0
    %1433 = vmatpush1.bf16.msra.mxu0 0
    %1434 = vmatprep.subr.bf16.mxu0 0
    %1435 = vmatpush1.bf16.msra.mxu0 0
    %1436 = vmatprep.subr.bf16.mxu0 0
    %1437 = vmatpush1.bf16.msra.mxu0 0
    %1438 = vmatprep.subr.bf16.mxu0 0
    %1439 = vmatpush1.bf16.msra.mxu0 0
    %1440 = vmatprep.subr.bf16.mxu0 0
    %1441 = vmatpush1.bf16.msra.mxu0 0
    %1442 = vmatprep.subr.bf16.mxu0 0
    %1443 = vmatpush1.bf16.msra.mxu0 0
    %1444 = vmatprep.subr.bf16.mxu0 0
    %1445 = vmatpush1.bf16.msra.mxu0 0
    %1446 = vmatprep.subr.bf16.mxu0 0
    %1447 = vmatpush1.bf16.msra.mxu0 0
    %1448 = vmatprep.subr.bf16.mxu0 0
    %1449 = vmatpush1.bf16.msra.mxu0 0
    %1450 = vmatprep.subr.bf16.mxu0 0
    %1451 = vmatpush1.bf16.msra.mxu0 0
    %1452 = vmatprep.subr.bf16.mxu0 0
    %1453 = vmatpush1.bf16.msra.mxu0 0
    %1454 = vmatprep.subr.bf16.mxu0 0
    %1455 = vmatpush1.bf16.msra.mxu0 0
    %1456 = vmatprep.subr.bf16.mxu0 0
    %1457 = vmatpush1.bf16.msra.mxu0 0
    %1458 = vmatprep.mubr.bf16.mxu0 0
    %1459 = vmatmul.mubr.bf16.gmra.mrb[0].mxu0 %v1421
    %v1460 = vpop.f32.mrb[0].mxu0
    %v1461 = vadd.f32 0.0, %v1460
    %v1462 = vpop.f32.mrb[0].mxu0
    %v1463 = vpop.f32.mrb[0].mxu0
    %v1464 = vadd.f32 0.0, %v1463
    %v1465 = vpop.f32.mrb[0].mxu0
    %1466 = vmatprep.mubr.bf16.mxu0 0
    %1467 = vmatmul.mubr.bf16.gmra.mrb[0].mxu0 %v1424
    %v1468 = vpop.f32.mrb[0].mxu0
    %v1469 = vadd.f32 0.0, %v1468
    %v1470 = vpop.f32.mrb[0].mxu0
    %v1471 = vpop.f32.mrb[0].mxu0
    %v1472 = vadd.f32 0.0, %v1471
    %v1473 = vpop.f32.mrb[0].mxu0
    %1474 = vdwg.mxu0
    %v1475 = vadd.f32 %v1397, %v1461
    %v1476 = vadd.f32 %v1398, %v1464
    %v1477 = vadd.f32 %v1399, %v1469
    %v1478 = vadd.f32 %v1400, %v1472
    %v1479 = vld [vmem:[#allocation2 + $0x60] sm:$0xff]
    %v1480 = vld [vmem:[#allocation2 + $0x68] sm:$0xff]
    %s1481 = scalar_lea.vmem %s4, 96
    %v1482 = vld [vmem:[%s1481] sm:$0xf]
    %v1483 = vld [vmem:[%s1481 + $0x4] sm:$0xf]
    %v1484 = vld [vmem:[%s1481 + $0x8] sm:$0xf]
    %v1485 = vld [vmem:[%s1481 + $0xc] sm:$0xf]
    %v1490 = vunpack.c.l.b16 %v1482
    %v1491 = vunpack.c.l.b16 %v1483
    %v1492 = vunpack.c.l.b16 %v1484
    %v1493 = vunpack.c.l.b16 %v1485
    %v1494 = vpack.c.b16 %v1491, %v1490
    %v1495 = vpack.c.b16 %v1493, %v1492
    %v1499 = vsel %vm987, %v1479, 0
    %v1502 = vsel %vm987, %v1480, 0
    %1504 = vmatprep.subr.bf16.mxu0 0
    %1505 = vmatpush1.bf16.msra.mxu0 %v1494
    %1506 = vmatprep.subr.bf16.mxu0 0
    %1507 = vmatpush1.bf16.msra.mxu0 %v1495
    %1508 = vmatprep.subr.bf16.mxu0 0
    %1509 = vmatpush1.bf16.msra.mxu0 0
    %1510 = vmatprep.subr.bf16.mxu0 0
    %1511 = vmatpush1.bf16.msra.mxu0 0
    %1512 = vmatprep.subr.bf16.mxu0 0
    %1513 = vmatpush1.bf16.msra.mxu0 0
    %1514 = vmatprep.subr.bf16.mxu0 0
    %1515 = vmatpush1.bf16.msra.mxu0 0
    %1516 = vmatprep.subr.bf16.mxu0 0
    %1517 = vmatpush1.bf16.msra.mxu0 0
    %1518 = vmatprep.subr.bf16.mxu0 0
    %1519 = vmatpush1.bf16.msra.mxu0 0
    %1520 = vmatprep.subr.bf16.mxu0 0
    %1521 = vmatpush1.bf16.msra.mxu0 0
    %1522 = vmatprep.subr.bf16.mxu0 0
    %1523 = vmatpush1.bf16.msra.mxu0 0
    %1524 = vmatprep.subr.bf16.mxu0 0
    %1525 = vmatpush1.bf16.msra.mxu0 0
    %1526 = vmatprep.subr.bf16.mxu0 0
    %1527 = vmatpush1.bf16.msra.mxu0 0
    %1528 = vmatprep.subr.bf16.mxu0 0
    %1529 = vmatpush1.bf16.msra.mxu0 0
    %1530 = vmatprep.subr.bf16.mxu0 0
    %1531 = vmatpush1.bf16.msra.mxu0 0
    %1532 = vmatprep.subr.bf16.mxu0 0
    %1533 = vmatpush1.bf16.msra.mxu0 0
    %1534 = vmatprep.subr.bf16.mxu0 0
    %1535 = vmatpush1.bf16.msra.mxu0 0
    %1536 = vmatprep.mubr.bf16.mxu0 0
    %1537 = vmatmul.mubr.bf16.gmra.mrb[0].mxu0 %v1499
    %v1538 = vpop.f32.mrb[0].mxu0
    %v1539 = vadd.f32 0.0, %v1538
    %v1540 = vpop.f32.mrb[0].mxu0
    %v1541 = vpop.f32.mrb[0].mxu0
    %v1542 = vadd.f32 0.0, %v1541
    %v1543 = vpop.f32.mrb[0].mxu0
    %1544 = vmatprep.mubr.bf16.mxu0 0
    %1545 = vmatmul.mubr.bf16.gmra.mrb[0].mxu0 %v1502
    %v1546 = vpop.f32.mrb[0].mxu0
    %v1547 = vadd.f32 0.0, %v1546
    %v1548 = vpop.f32.mrb[0].mxu0
    %v1549 = vpop.f32.mrb[0].mxu0
    %v1550 = vadd.f32 0.0, %v1549
    %v1551 = vpop.f32.mrb[0].mxu0
    %1552 = vdwg.mxu0
    %v1553 = vadd.f32 %v1475, %v1539
    %v1554 = vadd.f32 %v1476, %v1542
    %v1555 = vadd.f32 %v1477, %v1547
    %v1556 = vadd.f32 %v1478, %v1550
    %v1557 = vld [vmem:[#allocation2 + $0x70] sm:$0xff]
    %v1558 = vld [vmem:[#allocation2 + $0x78] sm:$0xff]
    %s1559 = scalar_lea.vmem %s4, 112
    %v1560 = vld [vmem:[%s1559] sm:$0xf]
    %v1561 = vld [vmem:[%s1559 + $0x4] sm:$0xf]
    %v1562 = vld [vmem:[%s1559 + $0x8] sm:$0xf]
    %v1563 = vld [vmem:[%s1559 + $0xc] sm:$0xf]
    %v1568 = vunpack.c.l.b16 %v1560
    %v1569 = vunpack.c.l.b16 %v1561
    %v1570 = vunpack.c.l.b16 %v1562
    %v1571 = vunpack.c.l.b16 %v1563
    %v1572 = vpack.c.b16 %v1569, %v1568
    %v1573 = vpack.c.b16 %v1571, %v1570
    %v1577 = vsel %vm987, %v1557, 0
    %v1580 = vsel %vm987, %v1558, 0
    %1582 = vmatprep.subr.bf16.mxu0 0
    %1583 = vmatpush1.bf16.msra.mxu0 %v1572
    %1584 = vmatprep.subr.bf16.mxu0 0
    %1585 = vmatpush1.bf16.msra.mxu0 %v1573
    %1586 = vmatprep.subr.bf16.mxu0 0
    %1587 = vmatpush1.bf16.msra.mxu0 0
    %1588 = vmatprep.subr.bf16.mxu0 0
    %1589 = vmatpush1.bf16.msra.mxu0 0
    %1590 = vmatprep.subr.bf16.mxu0 0
    %1591 = vmatpush1.bf16.msra.mxu0 0
    %1592 = vmatprep.subr.bf16.mxu0 0
    %1593 = vmatpush1.bf16.msra.mxu0 0
    %1594 = vmatprep.subr.bf16.mxu0 0
    %1595 = vmatpush1.bf16.msra.mxu0 0
    %1596 = vmatprep.subr.bf16.mxu0 0
    %1597 = vmatpush1.bf16.msra.mxu0 0
    %1598 = vmatprep.subr.bf16.mxu0 0
    %1599 = vmatpush1.bf16.msra.mxu0 0
    %1600 = vmatprep.subr.bf16.mxu0 0
    %1601 = vmatpush1.bf16.msra.mxu0 0
    %1602 = vmatprep.subr.bf16.mxu0 0
    %1603 = vmatpush1.bf16.msra.mxu0 0
    %1604 = vmatprep.subr.bf16.mxu0 0
    %1605 = vmatpush1.bf16.msra.mxu0 0
    %1606 = vmatprep.subr.bf16.mxu0 0
    %1607 = vmatpush1.bf16.msra.mxu0 0
    %1608 = vmatprep.subr.bf16.mxu0 0
    %1609 = vmatpush1.bf16.msra.mxu0 0
    %1610 = vmatprep.subr.bf16.mxu0 0
    %1611 = vmatpush1.bf16.msra.mxu0 0
    %1612 = vmatprep.subr.bf16.mxu0 0
    %1613 = vmatpush1.bf16.msra.mxu0 0
    %1614 = vmatprep.mubr.bf16.mxu0 0
    %1615 = vmatmul.mubr.bf16.gmra.mrb[0].mxu0 %v1577
    %v1616 = vpop.f32.mrb[0].mxu0
    %v1617 = vadd.f32 0.0, %v1616
    %v1618 = vpop.f32.mrb[0].mxu0
    %v1619 = vpop.f32.mrb[0].mxu0
    %v1620 = vadd.f32 0.0, %v1619
    %v1621 = vpop.f32.mrb[0].mxu0
    %1622 = vmatprep.mubr.bf16.mxu0 0
    %1623 = vmatmul.mubr.bf16.gmra.mrb[0].mxu0 %v1580
    %v1624 = vpop.f32.mrb[0].mxu0
    %v1625 = vadd.f32 0.0, %v1624
    %v1626 = vpop.f32.mrb[0].mxu0
    %v1627 = vpop.f32.mrb[0].mxu0
    %v1628 = vadd.f32 0.0, %v1627
    %v1629 = vpop.f32.mrb[0].mxu0
    %1630 = vdwg.mxu0
    %v1631 = vadd.f32 %v1553, %v1617
    %v1632 = vadd.f32 %v1554, %v1620
    %v1633 = vadd.f32 %v1555, %v1625
    %v1634 = vadd.f32 %v1556, %v1628
    %v1635 = vld [vmem:[#allocation2 + $0x80] sm:$0xff]
    %v1636 = vld [vmem:[#allocation2 + $0x88] sm:$0xff]
    %s1637 = scalar_lea.vmem %s4, 128
    %v1638 = vld [vmem:[%s1637] sm:$0xf]
    %v1639 = vld [vmem:[%s1637 + $0x4] sm:$0xf]
    %v1640 = vld [vmem:[%s1637 + $0x8] sm:$0xf]
    %v1641 = vld [vmem:[%s1637 + $0xc] sm:$0xf]
    %v1646 = vunpack.c.l.b16 %v1638
    %v1647 = vunpack.c.l.b16 %v1639
    %v1648 = vunpack.c.l.b16 %v1640
    %v1649 = vunpack.c.l.b16 %v1641
    %v1650 = vpack.c.b16 %v1647, %v1646
    %v1651 = vpack.c.b16 %v1649, %v1648
    %v1655 = vsel %vm987, %v1635, 0
    %v1658 = vsel %vm987, %v1636, 0
    %1660 = vmatprep.subr.bf16.mxu0 0
    %1661 = vmatpush1.bf16.msra.mxu0 %v1650
    %1662 = vmatprep.subr.bf16.mxu0 0
    %1663 = vmatpush1.bf16.msra.mxu0 %v1651
    %1664 = vmatprep.subr.bf16.mxu0 0
    %1665 = vmatpush1.bf16.msra.mxu0 0
    %1666 = vmatprep.subr.bf16.mxu0 0
    %1667 = vmatpush1.bf16.msra.mxu0 0
    %1668 = vmatprep.subr.bf16.mxu0 0
    %1669 = vmatpush1.bf16.msra.mxu0 0
    %1670 = vmatprep.subr.bf16.mxu0 0
    %1671 = vmatpush1.bf16.msra.mxu0 0
    %1672 = vmatprep.subr.bf16.mxu0 0
    %1673 = vmatpush1.bf16.msra.mxu0 0
    %1674 = vmatprep.subr.bf16.mxu0 0
    %1675 = vmatpush1.bf16.msra.mxu0 0
    %1676 = vmatprep.subr.bf16.mxu0 0
    %1677 = vmatpush1.bf16.msra.mxu0 0
    %1678 = vmatprep.subr.bf16.mxu0 0
    %1679 = vmatpush1.bf16.msra.mxu0 0
    %1680 = vmatprep.subr.bf16.mxu0 0
    %1681 = vmatpush1.bf16.msra.mxu0 0
    %1682 = vmatprep.subr.bf16.mxu0 0
    %1683 = vmatpush1.bf16.msra.mxu0 0
    %1684 = vmatprep.subr.bf16.mxu0 0
    %1685 = vmatpush1.bf16.msra.mxu0 0
    %1686 = vmatprep.subr.bf16.mxu0 0
    %1687 = vmatpush1.bf16.msra.mxu0 0
    %1688 = vmatprep.subr.bf16.mxu0 0
    %1689 = vmatpush1.bf16.msra.mxu0 0
    %1690 = vmatprep.subr.bf16.mxu0 0
    %1691 = vmatpush1.bf16.msra.mxu0 0
    %1692 = vmatprep.mubr.bf16.mxu0 0
    %1693 = vmatmul.mubr.bf16.gmra.mrb[0].mxu0 %v1655
    %v1694 = vpop.f32.mrb[0].mxu0
    %v1695 = vadd.f32 0.0, %v1694
    %v1696 = vpop.f32.mrb[0].mxu0
    %v1697 = vpop.f32.mrb[0].mxu0
    %v1698 = vadd.f32 0.0, %v1697
    %v1699 = vpop.f32.mrb[0].mxu0
    %1700 = vmatprep.mubr.bf16.mxu0 0
    %1701 = vmatmul.mubr.bf16.gmra.mrb[0].mxu0 %v1658
    %v1702 = vpop.f32.mrb[0].mxu0
    %v1703 = vadd.f32 0.0, %v1702
    %v1704 = vpop.f32.mrb[0].mxu0
    %v1705 = vpop.f32.mrb[0].mxu0
    %v1706 = vadd.f32 0.0, %v1705
    %v1707 = vpop.f32.mrb[0].mxu0
    %1708 = vdwg.mxu0
    %v1709 = vadd.f32 %v1631, %v1695
    %v1710 = vadd.f32 %v1632, %v1698
    %v1711 = vadd.f32 %v1633, %v1703
    %v1712 = vadd.f32 %v1634, %v1706
    %v1713 = vld [vmem:[#allocation2 + $0x90] sm:$0xff]
    %v1714 = vld [vmem:[#allocation2 + $0x98] sm:$0xff]
    %s1715 = scalar_lea.vmem %s4, 144
    %v1716 = vld [vmem:[%s1715] sm:$0xf]
    %v1717 = vld [vmem:[%s1715 + $0x4] sm:$0xf]
    %v1718 = vld [vmem:[%s1715 + $0x8] sm:$0xf]
    %v1719 = vld [vmem:[%s1715 + $0xc] sm:$0xf]
    %v1724 = vunpack.c.l.b16 %v1716
    %v1725 = vunpack.c.l.b16 %v1717
    %v1726 = vunpack.c.l.b16 %v1718
    %v1727 = vunpack.c.l.b16 %v1719
    %v1728 = vpack.c.b16 %v1725, %v1724
    %v1729 = vpack.c.b16 %v1727, %v1726
    %v1733 = vsel %vm987, %v1713, 0
    %v1736 = vsel %vm987, %v1714, 0
    %1738 = vmatprep.subr.bf16.mxu0 0
    %1739 = vmatpush1.bf16.msra.mxu0 %v1728
    %1740 = vmatprep.subr.bf16.mxu0 0
    %1741 = vmatpush1.bf16.msra.mxu0 %v1729
    %1742 = vmatprep.subr.bf16.mxu0 0
    %1743 = vmatpush1.bf16.msra.mxu0 0
    %1744 = vmatprep.subr.bf16.mxu0 0
    %1745 = vmatpush1.bf16.msra.mxu0 0
    %1746 = vmatprep.subr.bf16.mxu0 0
    %1747 = vmatpush1.bf16.msra.mxu0 0
    %1748 = vmatprep.subr.bf16.mxu0 0
    %1749 = vmatpush1.bf16.msra.mxu0 0
    %1750 = vmatprep.subr.bf16.mxu0 0
    %1751 = vmatpush1.bf16.msra.mxu0 0
    %1752 = vmatprep.subr.bf16.mxu0 0
    %1753 = vmatpush1.bf16.msra.mxu0 0
    %1754 = vmatprep.subr.bf16.mxu0 0
    %1755 = vmatpush1.bf16.msra.mxu0 0
    %1756 = vmatprep.subr.bf16.mxu0 0
    %1757 = vmatpush1.bf16.msra.mxu0 0
    %1758 = vmatprep.subr.bf16.mxu0 0
    %1759 = vmatpush1.bf16.msra.mxu0 0
    %1760 = vmatprep.subr.bf16.mxu0 0
    %1761 = vmatpush1.bf16.msra.mxu0 0
    %1762 = vmatprep.subr.bf16.mxu0 0
    %1763 = vmatpush1.bf16.msra.mxu0 0
    %1764 = vmatprep.subr.bf16.mxu0 0
    %1765 = vmatpush1.bf16.msra.mxu0 0
    %1766 = vmatprep.subr.bf16.mxu0 0
    %1767 = vmatpush1.bf16.msra.mxu0 0
    %1768 = vmatprep.subr.bf16.mxu0 0
    %1769 = vmatpush1.bf16.msra.mxu0 0
    %1770 = vmatprep.mubr.bf16.mxu0 0
    %1771 = vmatmul.mubr.bf16.gmra.mrb[0].mxu0 %v1733
    %v1772 = vpop.f32.mrb[0].mxu0
    %v1773 = vadd.f32 0.0, %v1772
    %v1774 = vpop.f32.mrb[0].mxu0
    %v1775 = vpop.f32.mrb[0].mxu0
    %v1776 = vadd.f32 0.0, %v1775
    %v1777 = vpop.f32.mrb[0].mxu0
    %1778 = vmatprep.mubr.bf16.mxu0 0
    %1779 = vmatmul.mubr.bf16.gmra.mrb[0].mxu0 %v1736
    %v1780 = vpop.f32.mrb[0].mxu0
    %v1781 = vadd.f32 0.0, %v1780
    %v1782 = vpop.f32.mrb[0].mxu0
    %v1783 = vpop.f32.mrb[0].mxu0
    %v1784 = vadd.f32 0.0, %v1783
    %v1785 = vpop.f32.mrb[0].mxu0
    %1786 = vdwg.mxu0
    %v1787 = vadd.f32 %v1709, %v1773
    %v1788 = vadd.f32 %v1710, %v1776
    %v1789 = vadd.f32 %v1711, %v1781
    %v1790 = vadd.f32 %v1712, %v1784
    %v1791 = vld [vmem:[#allocation2 + $0xa0] sm:$0xff]
    %v1792 = vld [vmem:[#allocation2 + $0xa8] sm:$0xff]
    %s1793 = scalar_lea.vmem %s4, 160
    %v1794 = vld [vmem:[%s1793] sm:$0xf]
    %v1795 = vld [vmem:[%s1793 + $0x4] sm:$0xf]
    %v1796 = vld [vmem:[%s1793 + $0x8] sm:$0xf]
    %v1797 = vld [vmem:[%s1793 + $0xc] sm:$0xf]
    %v1802 = vunpack.c.l.b16 %v1794
    %v1803 = vunpack.c.l.b16 %v1795
    %v1804 = vunpack.c.l.b16 %v1796
    %v1805 = vunpack.c.l.b16 %v1797
    %v1806 = vpack.c.b16 %v1803, %v1802
    %v1807 = vpack.c.b16 %v1805, %v1804
    %v1811 = vsel %vm987, %v1791, 0
    %v1814 = vsel %vm987, %v1792, 0
    %1816 = vmatprep.subr.bf16.mxu0 0
    %1817 = vmatpush1.bf16.msra.mxu0 %v1806
    %1818 = vmatprep.subr.bf16.mxu0 0
    %1819 = vmatpush1.bf16.msra.mxu0 %v1807
    %1820 = vmatprep.subr.bf16.mxu0 0
    %1821 = vmatpush1.bf16.msra.mxu0 0
    %1822 = vmatprep.subr.bf16.mxu0 0
    %1823 = vmatpush1.bf16.msra.mxu0 0
    %1824 = vmatprep.subr.bf16.mxu0 0
    %1825 = vmatpush1.bf16.msra.mxu0 0
    %1826 = vmatprep.subr.bf16.mxu0 0
    %1827 = vmatpush1.bf16.msra.mxu0 0
    %1828 = vmatprep.subr.bf16.mxu0 0
    %1829 = vmatpush1.bf16.msra.mxu0 0
    %1830 = vmatprep.subr.bf16.mxu0 0
    %1831 = vmatpush1.bf16.msra.mxu0 0
    %1832 = vmatprep.subr.bf16.mxu0 0
    %1833 = vmatpush1.bf16.msra.mxu0 0
    %1834 = vmatprep.subr.bf16.mxu0 0
    %1835 = vmatpush1.bf16.msra.mxu0 0
    %1836 = vmatprep.subr.bf16.mxu0 0
    %1837 = vmatpush1.bf16.msra.mxu0 0
    %1838 = vmatprep.subr.bf16.mxu0 0
    %1839 = vmatpush1.bf16.msra.mxu0 0
    %1840 = vmatprep.subr.bf16.mxu0 0
    %1841 = vmatpush1.bf16.msra.mxu0 0
    %1842 = vmatprep.subr.bf16.mxu0 0
    %1843 = vmatpush1.bf16.msra.mxu0 0
    %1844 = vmatprep.subr.bf16.mxu0 0
    %1845 = vmatpush1.bf16.msra.mxu0 0
    %1846 = vmatprep.subr.bf16.mxu0 0
    %1847 = vmatpush1.bf16.msra.mxu0 0
    %1848 = vmatprep.mubr.bf16.mxu0 0
    %1849 = vmatmul.mubr.bf16.gmra.mrb[0].mxu0 %v1811
    %v1850 = vpop.f32.mrb[0].mxu0
    %v1851 = vadd.f32 0.0, %v1850
    %v1852 = vpop.f32.mrb[0].mxu0
    %v1853 = vpop.f32.mrb[0].mxu0
    %v1854 = vadd.f32 0.0, %v1853
    %v1855 = vpop.f32.mrb[0].mxu0
    %1856 = vmatprep.mubr.bf16.mxu0 0
    %1857 = vmatmul.mubr.bf16.gmra.mrb[0].mxu0 %v1814
    %v1858 = vpop.f32.mrb[0].mxu0
    %v1859 = vadd.f32 0.0, %v1858
    %v1860 = vpop.f32.mrb[0].mxu0
    %v1861 = vpop.f32.mrb[0].mxu0
    %v1862 = vadd.f32 0.0, %v1861
    %v1863 = vpop.f32.mrb[0].mxu0
    %1864 = vdwg.mxu0
    %v1865 = vadd.f32 %v1787, %v1851
    %v1866 = vadd.f32 %v1788, %v1854
    %v1867 = vadd.f32 %v1789, %v1859
    %v1868 = vadd.f32 %v1790, %v1862
    %v1869 = vld [vmem:[#allocation2 + $0xb0] sm:$0xff]
    %v1870 = vld [vmem:[#allocation2 + $0xb8] sm:$0xff]
    %s1871 = scalar_lea.vmem %s4, 176
    %v1872 = vld [vmem:[%s1871] sm:$0xf]
    %v1873 = vld [vmem:[%s1871 + $0x4] sm:$0xf]
    %v1874 = vld [vmem:[%s1871 + $0x8] sm:$0xf]
    %v1875 = vld [vmem:[%s1871 + $0xc] sm:$0xf]
    %v1880 = vunpack.c.l.b16 %v1872
    %v1881 = vunpack.c.l.b16 %v1873
    %v1882 = vunpack.c.l.b16 %v1874
    %v1883 = vunpack.c.l.b16 %v1875
    %v1884 = vpack.c.b16 %v1881, %v1880
    %v1885 = vpack.c.b16 %v1883, %v1882
    %v1889 = vsel %vm987, %v1869, 0
    %v1892 = vsel %vm987, %v1870, 0
    %1894 = vmatprep.subr.bf16.mxu0 0
    %1895 = vmatpush1.bf16.msra.mxu0 %v1884
    %1896 = vmatprep.subr.bf16.mxu0 0
    %1897 = vmatpush1.bf16.msra.mxu0 %v1885
    %1898 = vmatprep.subr.bf16.mxu0 0
    %1899 = vmatpush1.bf16.msra.mxu0 0
    %1900 = vmatprep.subr.bf16.mxu0 0
    %1901 = vmatpush1.bf16.msra.mxu0 0
    %1902 = vmatprep.subr.bf16.mxu0 0
    %1903 = vmatpush1.bf16.msra.mxu0 0
    %1904 = vmatprep.subr.bf16.mxu0 0
    %1905 = vmatpush1.bf16.msra.mxu0 0
    %1906 = vmatprep.subr.bf16.mxu0 0
    %1907 = vmatpush1.bf16.msra.mxu0 0
    %1908 = vmatprep.subr.bf16.mxu0 0
    %1909 = vmatpush1.bf16.msra.mxu0 0
    %1910 = vmatprep.subr.bf16.mxu0 0
    %1911 = vmatpush1.bf16.msra.mxu0 0
    %1912 = vmatprep.subr.bf16.mxu0 0
    %1913 = vmatpush1.bf16.msra.mxu0 0
    %1914 = vmatprep.subr.bf16.mxu0 0
    %1915 = vmatpush1.bf16.msra.mxu0 0
    %1916 = vmatprep.subr.bf16.mxu0 0
    %1917 = vmatpush1.bf16.msra.mxu0 0
    %1918 = vmatprep.subr.bf16.mxu0 0
    %1919 = vmatpush1.bf16.msra.mxu0 0
    %1920 = vmatprep.subr.bf16.mxu0 0
    %1921 = vmatpush1.bf16.msra.mxu0 0
    %1922 = vmatprep.subr.bf16.mxu0 0
    %1923 = vmatpush1.bf16.msra.mxu0 0
    %1924 = vmatprep.subr.bf16.mxu0 0
    %1925 = vmatpush1.bf16.msra.mxu0 0
    %1926 = vmatprep.mubr.bf16.mxu0 0
    %1927 = vmatmul.mubr.bf16.gmra.mrb[0].mxu0 %v1889
    %v1928 = vpop.f32.mrb[0].mxu0
    %v1929 = vadd.f32 0.0, %v1928
    %v1930 = vpop.f32.mrb[0].mxu0
    %v1931 = vpop.f32.mrb[0].mxu0
    %v1932 = vadd.f32 0.0, %v1931
    %v1933 = vpop.f32.mrb[0].mxu0
    %1934 = vmatprep.mubr.bf16.mxu0 0
    %1935 = vmatmul.mubr.bf16.gmra.mrb[0].mxu0 %v1892
    %v1936 = vpop.f32.mrb[0].mxu0
    %v1937 = vadd.f32 0.0, %v1936
    %v1938 = vpop.f32.mrb[0].mxu0
    %v1939 = vpop.f32.mrb[0].mxu0
    %v1940 = vadd.f32 0.0, %v1939
    %v1941 = vpop.f32.mrb[0].mxu0
    %1942 = vdwg.mxu0
    %v1943 = vadd.f32 %v1865, %v1929
    %v1944 = vadd.f32 %v1866, %v1932
    %v1945 = vadd.f32 %v1867, %v1937
    %v1946 = vadd.f32 %v1868, %v1940
    %v1947 = vld [vmem:[#allocation2 + $0xc0] sm:$0xff]
    %v1948 = vld [vmem:[#allocation2 + $0xc8] sm:$0xff]
    %s1949 = scalar_lea.vmem %s4, 192
    %v1950 = vld [vmem:[%s1949] sm:$0xf]
    %v1951 = vld [vmem:[%s1949 + $0x4] sm:$0xf]
    %v1952 = vld [vmem:[%s1949 + $0x8] sm:$0xf]
    %v1953 = vld [vmem:[%s1949 + $0xc] sm:$0xf]
    %v1958 = vunpack.c.l.b16 %v1950
    %v1959 = vunpack.c.l.b16 %v1951
    %v1960 = vunpack.c.l.b16 %v1952
    %v1961 = vunpack.c.l.b16 %v1953
    %v1962 = vpack.c.b16 %v1959, %v1958
    %v1963 = vpack.c.b16 %v1961, %v1960
    %v1967 = vsel %vm987, %v1947, 0
    %v1970 = vsel %vm987, %v1948, 0
    %1972 = vmatprep.subr.bf16.mxu0 0
    %1973 = vmatpush1.bf16.msra.mxu0 %v1962
    %1974 = vmatprep.subr.bf16.mxu0 0
    %1975 = vmatpush1.bf16.msra.mxu0 %v1963
    %1976 = vmatprep.subr.bf16.mxu0 0
    %1977 = vmatpush1.bf16.msra.mxu0 0
    %1978 = vmatprep.subr.bf16.mxu0 0
    %1979 = vmatpush1.bf16.msra.mxu0 0
    %1980 = vmatprep.subr.bf16.mxu0 0
    %1981 = vmatpush1.bf16.msra.mxu0 0
    %1982 = vmatprep.subr.bf16.mxu0 0
    %1983 = vmatpush1.bf16.msra.mxu0 0
    %1984 = vmatprep.subr.bf16.mxu0 0
    %1985 = vmatpush1.bf16.msra.mxu0 0
    %1986 = vmatprep.subr.bf16.mxu0 0
    %1987 = vmatpush1.bf16.msra.mxu0 0
    %1988 = vmatprep.subr.bf16.mxu0 0
    %1989 = vmatpush1.bf16.msra.mxu0 0
    %1990 = vmatprep.subr.bf16.mxu0 0
    %1991 = vmatpush1.bf16.msra.mxu0 0
    %1992 = vmatprep.subr.bf16.mxu0 0
    %1993 = vmatpush1.bf16.msra.mxu0 0
    %1994 = vmatprep.subr.bf16.mxu0 0
    %1995 = vmatpush1.bf16.msra.mxu0 0
    %1996 = vmatprep.subr.bf16.mxu0 0
    %1997 = vmatpush1.bf16.msra.mxu0 0
    %1998 = vmatprep.subr.bf16.mxu0 0
    %1999 = vmatpush1.bf16.msra.mxu0 0
    %2000 = vmatprep.subr.bf16.mxu0 0
    %2001 = vmatpush1.bf16.msra.mxu0 0
    %2002 = vmatprep.subr.bf16.mxu0 0
    %2003 = vmatpush1.bf16.msra.mxu0 0
    %2004 = vmatprep.mubr.bf16.mxu0 0
    %2005 = vmatmul.mubr.bf16.gmra.mrb[0].mxu0 %v1967
    %v2006 = vpop.f32.mrb[0].mxu0
    %v2007 = vadd.f32 0.0, %v2006
    %v2008 = vpop.f32.mrb[0].mxu0
    %v2009 = vpop.f32.mrb[0].mxu0
    %v2010 = vadd.f32 0.0, %v2009
    %v2011 = vpop.f32.mrb[0].mxu0
    %2012 = vmatprep.mubr.bf16.mxu0 0
    %2013 = vmatmul.mubr.bf16.gmra.mrb[0].mxu0 %v1970
    %v2014 = vpop.f32.mrb[0].mxu0
    %v2015 = vadd.f32 0.0, %v2014
    %v2016 = vpop.f32.mrb[0].mxu0
    %v2017 = vpop.f32.mrb[0].mxu0
    %v2018 = vadd.f32 0.0, %v2017
    %v2019 = vpop.f32.mrb[0].mxu0
    %2020 = vdwg.mxu0
    %v2021 = vadd.f32 %v1943, %v2007
    %v2022 = vadd.f32 %v1944, %v2010
    %v2023 = vadd.f32 %v1945, %v2015
    %v2024 = vadd.f32 %v1946, %v2018
    %v2025 = vld [vmem:[#allocation2 + $0xd0] sm:$0xff]
    %v2026 = vld [vmem:[#allocation2 + $0xd8] sm:$0xff]
    %s2027 = scalar_lea.vmem %s4, 208
    %v2028 = vld [vmem:[%s2027] sm:$0xf]
    %v2029 = vld [vmem:[%s2027 + $0x4] sm:$0xf]
    %v2030 = vld [vmem:[%s2027 + $0x8] sm:$0xf]
    %v2031 = vld [vmem:[%s2027 + $0xc] sm:$0xf]
    %v2036 = vunpack.c.l.b16 %v2028
    %v2037 = vunpack.c.l.b16 %v2029
    %v2038 = vunpack.c.l.b16 %v2030
    %v2039 = vunpack.c.l.b16 %v2031
    %v2040 = vpack.c.b16 %v2037, %v2036
    %v2041 = vpack.c.b16 %v2039, %v2038
    %v2045 = vsel %vm987, %v2025, 0
    %v2048 = vsel %vm987, %v2026, 0
    %2050 = vmatprep.subr.bf16.mxu0 0
    %2051 = vmatpush1.bf16.msra.mxu0 %v2040
    %2052 = vmatprep.subr.bf16.mxu0 0
    %2053 = vmatpush1.bf16.msra.mxu0 %v2041
    %2054 = vmatprep.subr.bf16.mxu0 0
    %2055 = vmatpush1.bf16.msra.mxu0 0
    %2056 = vmatprep.subr.bf16.mxu0 0
    %2057 = vmatpush1.bf16.msra.mxu0 0
    %2058 = vmatprep.subr.bf16.mxu0 0
    %2059 = vmatpush1.bf16.msra.mxu0 0
    %2060 = vmatprep.subr.bf16.mxu0 0
    %2061 = vmatpush1.bf16.msra.mxu0 0
    %2062 = vmatprep.subr.bf16.mxu0 0
    %2063 = vmatpush1.bf16.msra.mxu0 0
    %2064 = vmatprep.subr.bf16.mxu0 0
    %2065 = vmatpush1.bf16.msra.mxu0 0
    %2066 = vmatprep.subr.bf16.mxu0 0
    %2067 = vmatpush1.bf16.msra.mxu0 0
    %2068 = vmatprep.subr.bf16.mxu0 0
    %2069 = vmatpush1.bf16.msra.mxu0 0
    %2070 = vmatprep.subr.bf16.mxu0 0
    %2071 = vmatpush1.bf16.msra.mxu0 0
    %2072 = vmatprep.subr.bf16.mxu0 0
    %2073 = vmatpush1.bf16.msra.mxu0 0
    %2074 = vmatprep.subr.bf16.mxu0 0
    %2075 = vmatpush1.bf16.msra.mxu0 0
    %2076 = vmatprep.subr.bf16.mxu0 0
    %2077 = vmatpush1.bf16.msra.mxu0 0
    %2078 = vmatprep.subr.bf16.mxu0 0
    %2079 = vmatpush1.bf16.msra.mxu0 0
    %2080 = vmatprep.subr.bf16.mxu0 0
    %2081 = vmatpush1.bf16.msra.mxu0 0
    %2082 = vmatprep.mubr.bf16.mxu0 0
    %2083 = vmatmul.mubr.bf16.gmra.mrb[0].mxu0 %v2045
    %v2084 = vpop.f32.mrb[0].mxu0
    %v2085 = vadd.f32 0.0, %v2084
    %v2086 = vpop.f32.mrb[0].mxu0
    %v2087 = vpop.f32.mrb[0].mxu0
    %v2088 = vadd.f32 0.0, %v2087
    %v2089 = vpop.f32.mrb[0].mxu0
    %2090 = vmatprep.mubr.bf16.mxu0 0
    %2091 = vmatmul.mubr.bf16.gmra.mrb[0].mxu0 %v2048
    %v2092 = vpop.f32.mrb[0].mxu0
    %v2093 = vadd.f32 0.0, %v2092
    %v2094 = vpop.f32.mrb[0].mxu0
    %v2095 = vpop.f32.mrb[0].mxu0
    %v2096 = vadd.f32 0.0, %v2095
    %v2097 = vpop.f32.mrb[0].mxu0
    %2098 = vdwg.mxu0
    %v2099 = vadd.f32 %v2021, %v2085
    %v2100 = vadd.f32 %v2022, %v2088
    %v2101 = vadd.f32 %v2023, %v2093
    %v2102 = vadd.f32 %v2024, %v2096
    %v2103 = vld [vmem:[#allocation2 + $0xe0] sm:$0xff]
    %v2104 = vld [vmem:[#allocation2 + $0xe8] sm:$0xff]
    %s2105 = scalar_lea.vmem %s4, 224
    %v2106 = vld [vmem:[%s2105] sm:$0xf]
    %v2107 = vld [vmem:[%s2105 + $0x4] sm:$0xf]
    %v2108 = vld [vmem:[%s2105 + $0x8] sm:$0xf]
    %v2109 = vld [vmem:[%s2105 + $0xc] sm:$0xf]
    %v2114 = vunpack.c.l.b16 %v2106
    %v2115 = vunpack.c.l.b16 %v2107
    %v2116 = vunpack.c.l.b16 %v2108
    %v2117 = vunpack.c.l.b16 %v2109
    %v2118 = vpack.c.b16 %v2115, %v2114
    %v2119 = vpack.c.b16 %v2117, %v2116
    %v2123 = vsel %vm987, %v2103, 0
    %v2126 = vsel %vm987, %v2104, 0
    %2128 = vmatprep.subr.bf16.mxu0 0
    %2129 = vmatpush1.bf16.msra.mxu0 %v2118
    %2130 = vmatprep.subr.bf16.mxu0 0
    %2131 = vmatpush1.bf16.msra.mxu0 %v2119
    %2132 = vmatprep.subr.bf16.mxu0 0
    %2133 = vmatpush1.bf16.msra.mxu0 0
    %2134 = vmatprep.subr.bf16.mxu0 0
    %2135 = vmatpush1.bf16.msra.mxu0 0
    %2136 = vmatprep.subr.bf16.mxu0 0
    %2137 = vmatpush1.bf16.msra.mxu0 0
    %2138 = vmatprep.subr.bf16.mxu0 0
    %2139 = vmatpush1.bf16.msra.mxu0 0
    %2140 = vmatprep.subr.bf16.mxu0 0
    %2141 = vmatpush1.bf16.msra.mxu0 0
    %2142 = vmatprep.subr.bf16.mxu0 0
    %2143 = vmatpush1.bf16.msra.mxu0 0
    %2144 = vmatprep.subr.bf16.mxu0 0
    %2145 = vmatpush1.bf16.msra.mxu0 0
    %2146 = vmatprep.subr.bf16.mxu0 0
    %2147 = vmatpush1.bf16.msra.mxu0 0
    %2148 = vmatprep.subr.bf16.mxu0 0
    %2149 = vmatpush1.bf16.msra.mxu0 0
    %2150 = vmatprep.subr.bf16.mxu0 0
    %2151 = vmatpush1.bf16.msra.mxu0 0
    %2152 = vmatprep.subr.bf16.mxu0 0
    %2153 = vmatpush1.bf16.msra.mxu0 0
    %2154 = vmatprep.subr.bf16.mxu0 0
    %2155 = vmatpush1.bf16.msra.mxu0 0
    %2156 = vmatprep.subr.bf16.mxu0 0
    %2157 = vmatpush1.bf16.msra.mxu0 0
    %2158 = vmatprep.subr.bf16.mxu0 0
    %2159 = vmatpush1.bf16.msra.mxu0 0
    %2160 = vmatprep.mubr.bf16.mxu0 0
    %2161 = vmatmul.mubr.bf16.gmra.mrb[0].mxu0 %v2123
    %v2162 = vpop.f32.mrb[0].mxu0
    %v2163 = vadd.f32 0.0, %v2162
    %v2164 = vpop.f32.mrb[0].mxu0
    %v2165 = vpop.f32.mrb[0].mxu0
    %v2166 = vadd.f32 0.0, %v2165
    %v2167 = vpop.f32.mrb[0].mxu0
    %2168 = vmatprep.mubr.bf16.mxu0 0
    %2169 = vmatmul.mubr.bf16.gmra.mrb[0].mxu0 %v2126
    %v2170 = vpop.f32.mrb[0].mxu0
    %v2171 = vadd.f32 0.0, %v2170
    %v2172 = vpop.f32.mrb[0].mxu0
    %v2173 = vpop.f32.mrb[0].mxu0
    %v2174 = vadd.f32 0.0, %v2173
    %v2175 = vpop.f32.mrb[0].mxu0
    %2176 = vdwg.mxu0
    %v2177 = vadd.f32 %v2099, %v2163
    %v2178 = vadd.f32 %v2100, %v2166
    %v2179 = vadd.f32 %v2101, %v2171
    %v2180 = vadd.f32 %v2102, %v2174
    %v2181 = vld [vmem:[#allocation2 + $0xf0] sm:$0xff]
    %v2182 = vld [vmem:[#allocation2 + $0xf8] sm:$0xff]
    %s2183 = scalar_lea.vmem %s4, 240
    %v2184 = vld [vmem:[%s2183] sm:$0xf]
    %v2185 = vld [vmem:[%s2183 + $0x4] sm:$0xf]
    %v2186 = vld [vmem:[%s2183 + $0x8] sm:$0xf]
    %v2187 = vld [vmem:[%s2183 + $0xc] sm:$0xf]
    %v2192 = vunpack.c.l.b16 %v2184
    %v2193 = vunpack.c.l.b16 %v2185
    %v2194 = vunpack.c.l.b16 %v2186
    %v2195 = vunpack.c.l.b16 %v2187
    %v2196 = vpack.c.b16 %v2193, %v2192
    %v2197 = vpack.c.b16 %v2195, %v2194
    %v2201 = vsel %vm987, %v2181, 0
    %v2204 = vsel %vm987, %v2182, 0
    %2206 = vmatprep.subr.bf16.mxu0 0
    %2207 = vmatpush1.bf16.msra.mxu0 %v2196
    %2208 = vmatprep.subr.bf16.mxu0 0
    %2209 = vmatpush1.bf16.msra.mxu0 %v2197
    %2210 = vmatprep.subr.bf16.mxu0 0
    %2211 = vmatpush1.bf16.msra.mxu0 0
    %2212 = vmatprep.subr.bf16.mxu0 0
    %2213 = vmatpush1.bf16.msra.mxu0 0
    %2214 = vmatprep.subr.bf16.mxu0 0
    %2215 = vmatpush1.bf16.msra.mxu0 0
    %2216 = vmatprep.subr.bf16.mxu0 0
    %2217 = vmatpush1.bf16.msra.mxu0 0
    %2218 = vmatprep.subr.bf16.mxu0 0
    %2219 = vmatpush1.bf16.msra.mxu0 0
    %2220 = vmatprep.subr.bf16.mxu0 0
    %2221 = vmatpush1.bf16.msra.mxu0 0
    %2222 = vmatprep.subr.bf16.mxu0 0
    %2223 = vmatpush1.bf16.msra.mxu0 0
    %2224 = vmatprep.subr.bf16.mxu0 0
    %2225 = vmatpush1.bf16.msra.mxu0 0
    %2226 = vmatprep.subr.bf16.mxu0 0
    %2227 = vmatpush1.bf16.msra.mxu0 0
    %2228 = vmatprep.subr.bf16.mxu0 0
    %2229 = vmatpush1.bf16.msra.mxu0 0
    %2230 = vmatprep.subr.bf16.mxu0 0
    %2231 = vmatpush1.bf16.msra.mxu0 0
    %2232 = vmatprep.subr.bf16.mxu0 0
    %2233 = vmatpush1.bf16.msra.mxu0 0
    %2234 = vmatprep.subr.bf16.mxu0 0
    %2235 = vmatpush1.bf16.msra.mxu0 0
    %2236 = vmatprep.subr.bf16.mxu0 0
    %2237 = vmatpush1.bf16.msra.mxu0 0
    %2238 = vmatprep.mubr.bf16.mxu0 0
    %2239 = vmatmul.mubr.bf16.gmra.mrb[0].mxu0 %v2201
    %v2240 = vpop.f32.mrb[0].mxu0
    %v2241 = vadd.f32 0.0, %v2240
    %v2242 = vpop.f32.mrb[0].mxu0
    %v2243 = vpop.f32.mrb[0].mxu0
    %v2244 = vadd.f32 0.0, %v2243
    %v2245 = vpop.f32.mrb[0].mxu0
    %2246 = vmatprep.mubr.bf16.mxu0 0
    %2247 = vmatmul.mubr.bf16.gmra.mrb[0].mxu0 %v2204
    %v2248 = vpop.f32.mrb[0].mxu0
    %v2249 = vadd.f32 0.0, %v2248
    %v2250 = vpop.f32.mrb[0].mxu0
    %v2251 = vpop.f32.mrb[0].mxu0
    %v2252 = vadd.f32 0.0, %v2251
    %v2253 = vpop.f32.mrb[0].mxu0
    %2254 = vdwg.mxu0
    %v2255 = vadd.f32 %v2177, %v2241
    %v2256 = vadd.f32 %v2178, %v2244
    %v2257 = vadd.f32 %v2179, %v2249
    %v2258 = vadd.f32 %v2180, %v2252
    %v2259 = vld [vmem:[%s5] sm:$0x1]
    %v2261 = vlaneseq
    %v2262 = vshrl.u32 %v2261, 7
    %v2263 = vsub.s32 0, %v2262
    %v2264 = vrot.slane %v2259, %v2263
    %v2266 = vadd.f32 %v2255, %v2264
    %v2267 = vadd.f32 %v2256, %v2264
    %v2268 = vadd.f32 %v2257, %v2264
    %v2269 = vadd.f32 %v2258, %v2264
    %v2270 = vmax.f32 %v2266, 0.0
    %v2271 = vmax.f32 %v2267, 0.0
    %v2272 = vmax.f32 %v2268, 0.0
    %v2273 = vmax.f32 %v2269, 0.0
    %v2274 = vpack.c.bf16 %v2271, %v2270
    %v2275 = vpack.c.bf16 %v2273, %v2272
    %v2276 = vld [vmem:[%s6] sm:$0xf]
    %v2277 = vld [vmem:[%s6 + $0x4] sm:$0xf]
    %v2278 = vld [vmem:[%s6 + $0x8] sm:$0xf]
    %v2279 = vld [vmem:[%s6 + $0xc] sm:$0xf]
    %v2280 = vld [vmem:[%s6 + $0x10] sm:$0xf]
    %v2281 = vld [vmem:[%s6 + $0x14] sm:$0xf]
    %v2282 = vld [vmem:[%s6 + $0x18] sm:$0xf]
    %v2283 = vld [vmem:[%s6 + $0x1c] sm:$0xf]
    %v2284 = vld [vmem:[%s6 + $0x20] sm:$0xf]
    %v2285 = vld [vmem:[%s6 + $0x24] sm:$0xf]
    %v2286 = vld [vmem:[%s6 + $0x28] sm:$0xf]
    %v2287 = vld [vmem:[%s6 + $0x2c] sm:$0xf]
    %v2288 = vld [vmem:[%s6 + $0x30] sm:$0xf]
    %v2289 = vld [vmem:[%s6 + $0x34] sm:$0xf]
    %v2290 = vld [vmem:[%s6 + $0x38] sm:$0xf]
    %v2291 = vld [vmem:[%s6 + $0x3c] sm:$0xf]
    %v2292 = vld [vmem:[%s6 + $0x40] sm:$0xf]
    %v2293 = vld [vmem:[%s6 + $0x44] sm:$0xf]
    %v2312 = vunpack.c.l.b16 %v2276
    %v2313 = vunpack.c.l.b16 %v2277
    %v2314 = vunpack.c.l.b16 %v2278
    %v2315 = vunpack.c.l.b16 %v2279
    %v2316 = vunpack.c.l.b16 %v2280
    %v2317 = vunpack.c.l.b16 %v2281
    %v2318 = vunpack.c.l.b16 %v2282
    %v2319 = vunpack.c.l.b16 %v2283
    %v2320 = vunpack.c.l.b16 %v2284
    %v2321 = vunpack.c.l.b16 %v2285
    %v2322 = vunpack.c.l.b16 %v2286
    %v2323 = vunpack.c.l.b16 %v2287
    %v2324 = vunpack.c.l.b16 %v2288
    %v2325 = vunpack.c.l.b16 %v2289
    %v2326 = vunpack.c.l.b16 %v2290
    %v2327 = vunpack.c.l.b16 %v2291
    %v2328 = vunpack.c.l.b16 %v2292
    %v2329 = vunpack.c.l.b16 %v2293
    %v2330 = vpack.c.b16 %v2313, %v2312
    %v2331 = vpack.c.b16 %v2315, %v2314
    %v2332 = vpack.c.b16 %v2317, %v2316
    %v2333 = vpack.c.b16 %v2319, %v2318
    %v2334 = vpack.c.b16 %v2321, %v2320
    %v2335 = vpack.c.b16 %v2323, %v2322
    %v2336 = vpack.c.b16 %v2325, %v2324
    %v2337 = vpack.c.b16 %v2327, %v2326
    %v2338 = vpack.c.b16 %v2329, %v2328
    %v2340 = vsel %vm987, %v2330, 0
    %v2343 = vsel %vm987, %v2331, 0
    %v2346 = vsel %vm987, %v2332, 0
    %v2349 = vsel %vm987, %v2333, 0
    %v2352 = vsel %vm987, %v2334, 0
    %v2355 = vsel %vm987, %v2335, 0
    %v2358 = vsel %vm987, %v2336, 0
    %v2361 = vsel %vm987, %v2337, 0
    %v2364 = vsel %vm987, %v2338, 0
    %2366 = vmatprep.subr.bf16.mxu0 0
    %2367 = vmatpush1.bf16.msra.mxu0 %v2274
    %2368 = vmatprep.subr.bf16.mxu0 0
    %2369 = vmatpush1.bf16.msra.mxu0 %v2275
    %2370 = vmatprep.subr.bf16.mxu0 0
    %2371 = vmatpush1.bf16.msra.mxu0 0
    %2372 = vmatprep.subr.bf16.mxu0 0
    %2373 = vmatpush1.bf16.msra.mxu0 0
    %2374 = vmatprep.subr.bf16.mxu0 0
    %2375 = vmatpush1.bf16.msra.mxu0 0
    %2376 = vmatprep.subr.bf16.mxu0 0
    %2377 = vmatpush1.bf16.msra.mxu0 0
    %2378 = vmatprep.subr.bf16.mxu0 0
    %2379 = vmatpush1.bf16.msra.mxu0 0
    %2380 = vmatprep.subr.bf16.mxu0 0
    %2381 = vmatpush1.bf16.msra.mxu0 0
    %2382 = vmatprep.subr.bf16.mxu0 0
    %2383 = vmatpush1.bf16.msra.mxu0 0
    %2384 = vmatprep.subr.bf16.mxu0 0
    %2385 = vmatpush1.bf16.msra.mxu0 0
    %2386 = vmatprep.subr.bf16.mxu0 0
    %2387 = vmatpush1.bf16.msra.mxu0 0
    %2388 = vmatprep.subr.bf16.mxu0 0
    %2389 = vmatpush1.bf16.msra.mxu0 0
    %2390 = vmatprep.subr.bf16.mxu0 0
    %2391 = vmatpush1.bf16.msra.mxu0 0
    %2392 = vmatprep.subr.bf16.mxu0 0
    %2393 = vmatpush1.bf16.msra.mxu0 0
    %2394 = vmatprep.subr.bf16.mxu0 0
    %2395 = vmatpush1.bf16.msra.mxu0 0
    %2396 = vmatprep.subr.bf16.mxu0 0
    %2397 = vmatpush1.bf16.msra.mxu0 0
    %2398 = vmatprep.mubr.bf16.mxu0 0
    %2399 = vmatmul.mubr.bf16.gmra.mrb[0].mxu0 %v2340
    %v2400 = vpop.f32.mrb[0].mxu0
    %v2401 = vadd.f32 0.0, %v2400
    %v2402 = vpop.f32.mrb[0].mxu0
    %v2403 = vpop.f32.mrb[0].mxu0
    %v2404 = vadd.f32 0.0, %v2403
    %v2405 = vpop.f32.mrb[0].mxu0
    %2406 = vmatprep.mubr.bf16.mxu0 0
    %2407 = vmatmul.mubr.bf16.gmra.mrb[0].mxu0 %v2343
    %v2408 = vpop.f32.mrb[0].mxu0
    %v2409 = vadd.f32 0.0, %v2408
    %v2410 = vpop.f32.mrb[0].mxu0
    %v2411 = vpop.f32.mrb[0].mxu0
    %v2412 = vadd.f32 0.0, %v2411
    %v2413 = vpop.f32.mrb[0].mxu0
    %2414 = vmatprep.mubr.bf16.mxu0 0
    %2415 = vmatmul.mubr.bf16.gmra.mrb[0].mxu0 %v2346
    %v2416 = vpop.f32.mrb[0].mxu0
    %v2417 = vadd.f32 0.0, %v2416
    %v2418 = vpop.f32.mrb[0].mxu0
    %v2419 = vpop.f32.mrb[0].mxu0
    %v2420 = vadd.f32 0.0, %v2419
    %v2421 = vpop.f32.mrb[0].mxu0
    %2422 = vmatprep.mubr.bf16.mxu0 0
    %2423 = vmatmul.mubr.bf16.gmra.mrb[0].mxu0 %v2349
    %v2424 = vpop.f32.mrb[0].mxu0
    %v2425 = vadd.f32 0.0, %v2424
    %v2426 = vpop.f32.mrb[0].mxu0
    %v2427 = vpop.f32.mrb[0].mxu0
    %v2428 = vadd.f32 0.0, %v2427
    %v2429 = vpop.f32.mrb[0].mxu0
    %2430 = vmatprep.mubr.bf16.mxu0 0
    %2431 = vmatmul.mubr.bf16.gmra.mrb[0].mxu0 %v2352
    %v2432 = vpop.f32.mrb[0].mxu0
    %v2433 = vadd.f32 0.0, %v2432
    %v2434 = vpop.f32.mrb[0].mxu0
    %v2435 = vpop.f32.mrb[0].mxu0
    %v2436 = vadd.f32 0.0, %v2435
    %v2437 = vpop.f32.mrb[0].mxu0
    %2438 = vmatprep.mubr.bf16.mxu0 0
    %2439 = vmatmul.mubr.bf16.gmra.mrb[0].mxu0 %v2355
    %v2440 = vpop.f32.mrb[0].mxu0
    %v2441 = vadd.f32 0.0, %v2440
    %v2442 = vpop.f32.mrb[0].mxu0
    %v2443 = vpop.f32.mrb[0].mxu0
    %v2444 = vadd.f32 0.0, %v2443
    %v2445 = vpop.f32.mrb[0].mxu0
    %2446 = vmatprep.mubr.bf16.mxu0 0
    %2447 = vmatmul.mubr.bf16.gmra.mrb[0].mxu0 %v2358
    %v2448 = vpop.f32.mrb[0].mxu0
    %v2449 = vadd.f32 0.0, %v2448
    %v2450 = vpop.f32.mrb[0].mxu0
    %v2451 = vpop.f32.mrb[0].mxu0
    %v2452 = vadd.f32 0.0, %v2451
    %v2453 = vpop.f32.mrb[0].mxu0
    %2454 = vmatprep.mubr.bf16.mxu0 0
    %2455 = vmatmul.mubr.bf16.gmra.mrb[0].mxu0 %v2361
    %v2456 = vpop.f32.mrb[0].mxu0
    %v2457 = vadd.f32 0.0, %v2456
    %v2458 = vpop.f32.mrb[0].mxu0
    %v2459 = vpop.f32.mrb[0].mxu0
    %v2460 = vadd.f32 0.0, %v2459
    %v2461 = vpop.f32.mrb[0].mxu0
    %2462 = vmatprep.mubr.bf16.mxu0 0
    %2463 = vmatmul.mubr.bf16.gmra.mrb[0].mxu0 %v2364
    %v2464 = vpop.f32.mrb[0].mxu0
    %v2465 = vadd.f32 0.0, %v2464
    %v2466 = vpop.f32.mrb[0].mxu0
    %v2467 = vpop.f32.mrb[0].mxu0
    %v2468 = vadd.f32 0.0, %v2467
    %v2469 = vpop.f32.mrb[0].mxu0
    %2470 = vdwg.mxu0
    %v2471 = vpack.c.bf16 %v2404, %v2401
    %v2472 = vpack.c.bf16 %v2412, %v2409
    %v2473 = vpack.c.bf16 %v2420, %v2417
    %v2474 = vpack.c.bf16 %v2428, %v2425
    %v2475 = vpack.c.bf16 %v2436, %v2433
    %v2476 = vpack.c.bf16 %v2444, %v2441
    %v2477 = vpack.c.bf16 %v2452, %v2449
    %v2478 = vpack.c.bf16 %v2460, %v2457
    %v2479 = vpack.c.bf16 %v2468, %v2465
    %v2480 = vld [vmem:[%s7] sm:$0xf]
    %v2481 = vld [vmem:[%s7 + $0x4] sm:$0xf]
    %v2482 = vld [vmem:[%s7 + $0x8] sm:$0xf]
    %v2483 = vld [vmem:[%s7 + $0xc] sm:$0xf]
    %v2484 = vld [vmem:[%s7 + $0x10] sm:$0xf]
    %v2485 = vld [vmem:[%s7 + $0x14] sm:$0xf]
    %v2486 = vld [vmem:[%s7 + $0x18] sm:$0xf]
    %v2487 = vld [vmem:[%s7 + $0x1c] sm:$0xf]
    %s2488 = scalar_lea.vmem %s7, 32
    %v2489 = vld [vmem:[%s2488] sm:$0xf]
    %v2490 = vld [vmem:[%s2488 + $0x4] sm:$0xf]
    %v2491 = vld [vmem:[%s2488 + $0x8] sm:$0xf]
    %v2492 = vld [vmem:[%s2488 + $0xc] sm:$0xf]
    %v2493 = vld [vmem:[%s2488 + $0x10] sm:$0xf]
    %v2494 = vld [vmem:[%s2488 + $0x14] sm:$0xf]
    %v2495 = vld [vmem:[%s2488 + $0x18] sm:$0xf]
    %v2496 = vld [vmem:[%s2488 + $0x1c] sm:$0xf]
    %v2505 = vunpack.c.l.b16 %v2489
    %v2506 = vunpack.c.l.b16 %v2490
    %v2507 = vunpack.c.l.b16 %v2491
    %v2508 = vunpack.c.l.b16 %v2492
    %v2509 = vunpack.c.l.b16 %v2493
    %v2510 = vunpack.c.l.b16 %v2494
    %v2511 = vunpack.c.l.b16 %v2495
    %v2512 = vunpack.c.l.b16 %v2496
    %v2513 = vpack.c.b16 %v2506, %v2505
    %v2514 = vpack.c.b16 %v2508, %v2507
    %v2515 = vpack.c.b16 %v2510, %v2509
    %v2516 = vpack.c.b16 %v2512, %v2511
    %vm2521 = vcmask 523264
    %v2523 = vsel %vm2521, %v2472, 0
    %2525 = vmatprep.subr.bf16.mxu0 0
    %2526 = vmatpush1.bf16.msra.mxu0 %v2513
    %2527 = vmatprep.subr.bf16.mxu0 0
    %2528 = vmatpush1.bf16.msra.mxu0 %v2514
    %2529 = vmatprep.subr.bf16.mxu0 0
    %2530 = vmatpush1.bf16.msra.mxu0 %v2515
    %2531 = vmatprep.subr.bf16.mxu0 0
    %2532 = vmatpush1.bf16.msra.mxu0 %v2516
    %2533 = vmatprep.subr.bf16.mxu0 0
    %2534 = vmatpush1.bf16.msra.mxu0 0
    %2535 = vmatprep.subr.bf16.mxu0 0
    %2536 = vmatpush1.bf16.msra.mxu0 0
    %2537 = vmatprep.subr.bf16.mxu0 0
    %2538 = vmatpush1.bf16.msra.mxu0 0
    %2539 = vmatprep.subr.bf16.mxu0 0
    %2540 = vmatpush1.bf16.msra.mxu0 0
    %2541 = vmatprep.subr.bf16.mxu0 0
    %2542 = vmatpush1.bf16.msra.mxu0 0
    %2543 = vmatprep.subr.bf16.mxu0 0
    %2544 = vmatpush1.bf16.msra.mxu0 0
    %2545 = vmatprep.subr.bf16.mxu0 0
    %2546 = vmatpush1.bf16.msra.mxu0 0
    %2547 = vmatprep.subr.bf16.mxu0 0
    %2548 = vmatpush1.bf16.msra.mxu0 0
    %2549 = vmatprep.subr.bf16.mxu0 0
    %2550 = vmatpush1.bf16.msra.mxu0 0
    %2551 = vmatprep.subr.bf16.mxu0 0
    %2552 = vmatpush1.bf16.msra.mxu0 0
    %2553 = vmatprep.subr.bf16.mxu0 0
    %2554 = vmatpush1.bf16.msra.mxu0 0
    %2555 = vmatprep.subr.bf16.mxu0 0
    %2556 = vmatpush1.bf16.msra.mxu0 0
    %2557 = vmatprep.mubr.bf16.mxu0 0
    %2558 = vmatmul.mubr.bf16.gmra.mrb[0].mxu0 %v2523
    %v2559 = vpop.f32.mrb[0].mxu0
    %v2560 = vadd.f32 0.0, %v2559
    %v2561 = vpop.f32.mrb[0].mxu0
    %v2562 = vpop.f32.mrb[0].mxu0
    %v2563 = vadd.f32 0.0, %v2562
    %v2564 = vpop.f32.mrb[0].mxu0
    %2565 = vdwg.mxu0
    %v2574 = vunpack.c.l.b16 %v2480
    %v2575 = vunpack.c.l.b16 %v2481
    %v2576 = vunpack.c.l.b16 %v2482
    %v2577 = vunpack.c.l.b16 %v2483
    %v2578 = vunpack.c.l.b16 %v2484
    %v2579 = vunpack.c.l.b16 %v2485
    %v2580 = vunpack.c.l.b16 %v2486
    %v2581 = vunpack.c.l.b16 %v2487
    %v2582 = vpack.c.b16 %v2575, %v2574
    %v2583 = vpack.c.b16 %v2577, %v2576
    %v2584 = vpack.c.b16 %v2579, %v2578
    %v2585 = vpack.c.b16 %v2581, %v2580
    %v2591 = vsel %vm2521, %v2471, 0
    %2593 = vmatprep.subr.bf16.mxu0 0
    %2594 = vmatpush1.bf16.msra.mxu0 %v2582
    %2595 = vmatprep.subr.bf16.mxu0 0
    %2596 = vmatpush1.bf16.msra.mxu0 %v2583
    %2597 = vmatprep.subr.bf16.mxu0 0
    %2598 = vmatpush1.bf16.msra.mxu0 %v2584
    %2599 = vmatprep.subr.bf16.mxu0 0
    %2600 = vmatpush1.bf16.msra.mxu0 %v2585
    %2601 = vmatprep.subr.bf16.mxu0 0
    %2602 = vmatpush1.bf16.msra.mxu0 0
    %2603 = vmatprep.subr.bf16.mxu0 0
    %2604 = vmatpush1.bf16.msra.mxu0 0
    %2605 = vmatprep.subr.bf16.mxu0 0
    %2606 = vmatpush1.bf16.msra.mxu0 0
    %2607 = vmatprep.subr.bf16.mxu0 0
    %2608 = vmatpush1.bf16.msra.mxu0 0
    %2609 = vmatprep.subr.bf16.mxu0 0
    %2610 = vmatpush1.bf16.msra.mxu0 0
    %2611 = vmatprep.subr.bf16.mxu0 0
    %2612 = vmatpush1.bf16.msra.mxu0 0
    %2613 = vmatprep.subr.bf16.mxu0 0
    %2614 = vmatpush1.bf16.msra.mxu0 0
    %2615 = vmatprep.subr.bf16.mxu0 0
    %2616 = vmatpush1.bf16.msra.mxu0 0
    %2617 = vmatprep.subr.bf16.mxu0 0
    %2618 = vmatpush1.bf16.msra.mxu0 0
    %2619 = vmatprep.subr.bf16.mxu0 0
    %2620 = vmatpush1.bf16.msra.mxu0 0
    %2621 = vmatprep.subr.bf16.mxu0 0
    %2622 = vmatpush1.bf16.msra.mxu0 0
    %2623 = vmatprep.subr.bf16.mxu0 0
    %2624 = vmatpush1.bf16.msra.mxu0 0
    %2625 = vmatprep.mubr.bf16.mxu0 0
    %2626 = vmatmul.mubr.bf16.gmra.mrb[0].mxu0 %v2591
    %v2627 = vpop.f32.mrb[0].mxu0
    %v2628 = vadd.f32 %v2560, %v2627
    %v2629 = vpop.f32.mrb[0].mxu0
    %v2630 = vpop.f32.mrb[0].mxu0
    %v2631 = vadd.f32 %v2563, %v2630
    %v2632 = vpop.f32.mrb[0].mxu0
    %2633 = vdwg.mxu0
    %s2634 = scalar_lea.vmem %s7, 64
    %v2635 = vld [vmem:[%s2634] sm:$0xf]
    %v2636 = vld [vmem:[%s2634 + $0x4] sm:$0xf]
    %v2637 = vld [vmem:[%s2634 + $0x8] sm:$0xf]
    %v2638 = vld [vmem:[%s2634 + $0xc] sm:$0xf]
    %v2639 = vld [vmem:[%s2634 + $0x10] sm:$0xf]
    %v2640 = vld [vmem:[%s2634 + $0x14] sm:$0xf]
    %v2641 = vld [vmem:[%s2634 + $0x18] sm:$0xf]
    %v2642 = vld [vmem:[%s2634 + $0x1c] sm:$0xf]
    %v2651 = vunpack.c.l.b16 %v2635
    %v2652 = vunpack.c.l.b16 %v2636
    %v2653 = vunpack.c.l.b16 %v2637
    %v2654 = vunpack.c.l.b16 %v2638
    %v2655 = vunpack.c.l.b16 %v2639
    %v2656 = vunpack.c.l.b16 %v2640
    %v2657 = vunpack.c.l.b16 %v2641
    %v2658 = vunpack.c.l.b16 %v2642
    %v2659 = vpack.c.b16 %v2652, %v2651
    %v2660 = vpack.c.b16 %v2654, %v2653
    %v2661 = vpack.c.b16 %v2656, %v2655
    %v2662 = vpack.c.b16 %v2658, %v2657
    %v2668 = vsel %vm2521, %v2473, 0
    %2670 = vmatprep.subr.bf16.mxu0 0
    %2671 = vmatpush1.bf16.msra.mxu0 %v2659
    %2672 = vmatprep.subr.bf16.mxu0 0
    %2673 = vmatpush1.bf16.msra.mxu0 %v2660
    %2674 = vmatprep.subr.bf16.mxu0 0
    %2675 = vmatpush1.bf16.msra.mxu0 %v2661
    %2676 = vmatprep.subr.bf16.mxu0 0
    %2677 = vmatpush1.bf16.msra.mxu0 %v2662
    %2678 = vmatprep.subr.bf16.mxu0 0
    %2679 = vmatpush1.bf16.msra.mxu0 0
    %2680 = vmatprep.subr.bf16.mxu0 0
    %2681 = vmatpush1.bf16.msra.mxu0 0
    %2682 = vmatprep.subr.bf16.mxu0 0
    %2683 = vmatpush1.bf16.msra.mxu0 0
    %2684 = vmatprep.subr.bf16.mxu0 0
    %2685 = vmatpush1.bf16.msra.mxu0 0
    %2686 = vmatprep.subr.bf16.mxu0 0
    %2687 = vmatpush1.bf16.msra.mxu0 0
    %2688 = vmatprep.subr.bf16.mxu0 0
    %2689 = vmatpush1.bf16.msra.mxu0 0
    %2690 = vmatprep.subr.bf16.mxu0 0
    %2691 = vmatpush1.bf16.msra.mxu0 0
    %2692 = vmatprep.subr.bf16.mxu0 0
    %2693 = vmatpush1.bf16.msra.mxu0 0
    %2694 = vmatprep.subr.bf16.mxu0 0
    %2695 = vmatpush1.bf16.msra.mxu0 0
    %2696 = vmatprep.subr.bf16.mxu0 0
    %2697 = vmatpush1.bf16.msra.mxu0 0
    %2698 = vmatprep.subr.bf16.mxu0 0
    %2699 = vmatpush1.bf16.msra.mxu0 0
    %2700 = vmatprep.subr.bf16.mxu0 0
    %2701 = vmatpush1.bf16.msra.mxu0 0
    %2702 = vmatprep.mubr.bf16.mxu0 0
    %2703 = vmatmul.mubr.bf16.gmra.mrb[0].mxu0 %v2668
    %v2704 = vpop.f32.mrb[0].mxu0
    %v2705 = vadd.f32 0.0, %v2704
    %v2706 = vpop.f32.mrb[0].mxu0
    %v2707 = vpop.f32.mrb[0].mxu0
    %v2708 = vadd.f32 0.0, %v2707
    %v2709 = vpop.f32.mrb[0].mxu0
    %2710 = vdwg.mxu0
    %v2711 = vadd.f32 %v2628, %v2705
    %v2712 = vadd.f32 %v2631, %v2708
    %s2713 = scalar_lea.vmem %s7, 96
    %v2714 = vld [vmem:[%s2713] sm:$0xf]
    %v2715 = vld [vmem:[%s2713 + $0x4] sm:$0xf]
    %v2716 = vld [vmem:[%s2713 + $0x8] sm:$0xf]
    %v2717 = vld [vmem:[%s2713 + $0xc] sm:$0xf]
    %v2718 = vld [vmem:[%s2713 + $0x10] sm:$0xf]
    %v2719 = vld [vmem:[%s2713 + $0x14] sm:$0xf]
    %v2720 = vld [vmem:[%s2713 + $0x18] sm:$0xf]
    %v2721 = vld [vmem:[%s2713 + $0x1c] sm:$0xf]
    %v2730 = vunpack.c.l.b16 %v2714
    %v2731 = vunpack.c.l.b16 %v2715
    %v2732 = vunpack.c.l.b16 %v2716
    %v2733 = vunpack.c.l.b16 %v2717
    %v2734 = vunpack.c.l.b16 %v2718
    %v2735 = vunpack.c.l.b16 %v2719
    %v2736 = vunpack.c.l.b16 %v2720
    %v2737 = vunpack.c.l.b16 %v2721
    %v2738 = vpack.c.b16 %v2731, %v2730
    %v2739 = vpack.c.b16 %v2733, %v2732
    %v2740 = vpack.c.b16 %v2735, %v2734
    %v2741 = vpack.c.b16 %v2737, %v2736
    %v2747 = vsel %vm2521, %v2474, 0
    %2749 = vmatprep.subr.bf16.mxu0 0
    %2750 = vmatpush1.bf16.msra.mxu0 %v2738
    %2751 = vmatprep.subr.bf16.mxu0 0
    %2752 = vmatpush1.bf16.msra.mxu0 %v2739
    %2753 = vmatprep.subr.bf16.mxu0 0
    %2754 = vmatpush1.bf16.msra.mxu0 %v2740
    %2755 = vmatprep.subr.bf16.mxu0 0
    %2756 = vmatpush1.bf16.msra.mxu0 %v2741
    %2757 = vmatprep.subr.bf16.mxu0 0
    %2758 = vmatpush1.bf16.msra.mxu0 0
    %2759 = vmatprep.subr.bf16.mxu0 0
    %2760 = vmatpush1.bf16.msra.mxu0 0
    %2761 = vmatprep.subr.bf16.mxu0 0
    %2762 = vmatpush1.bf16.msra.mxu0 0
    %2763 = vmatprep.subr.bf16.mxu0 0
    %2764 = vmatpush1.bf16.msra.mxu0 0
    %2765 = vmatprep.subr.bf16.mxu0 0
    %2766 = vmatpush1.bf16.msra.mxu0 0
    %2767 = vmatprep.subr.bf16.mxu0 0
    %2768 = vmatpush1.bf16.msra.mxu0 0
    %2769 = vmatprep.subr.bf16.mxu0 0
    %2770 = vmatpush1.bf16.msra.mxu0 0
    %2771 = vmatprep.subr.bf16.mxu0 0
    %2772 = vmatpush1.bf16.msra.mxu0 0
    %2773 = vmatprep.subr.bf16.mxu0 0
    %2774 = vmatpush1.bf16.msra.mxu0 0
    %2775 = vmatprep.subr.bf16.mxu0 0
    %2776 = vmatpush1.bf16.msra.mxu0 0
    %2777 = vmatprep.subr.bf16.mxu0 0
    %2778 = vmatpush1.bf16.msra.mxu0 0
    %2779 = vmatprep.subr.bf16.mxu0 0
    %2780 = vmatpush1.bf16.msra.mxu0 0
    %2781 = vmatprep.mubr.bf16.mxu0 0
    %2782 = vmatmul.mubr.bf16.gmra.mrb[0].mxu0 %v2747
    %v2783 = vpop.f32.mrb[0].mxu0
    %v2784 = vadd.f32 0.0, %v2783
    %v2785 = vpop.f32.mrb[0].mxu0
    %v2786 = vpop.f32.mrb[0].mxu0
    %v2787 = vadd.f32 0.0, %v2786
    %v2788 = vpop.f32.mrb[0].mxu0
    %2789 = vdwg.mxu0
    %v2790 = vadd.f32 %v2711, %v2784
    %v2791 = vadd.f32 %v2712, %v2787
    %s2792 = scalar_lea.vmem %s7, 128
    %v2793 = vld [vmem:[%s2792] sm:$0xf]
    %v2794 = vld [vmem:[%s2792 + $0x4] sm:$0xf]
    %v2795 = vld [vmem:[%s2792 + $0x8] sm:$0xf]
    %v2796 = vld [vmem:[%s2792 + $0xc] sm:$0xf]
    %v2797 = vld [vmem:[%s2792 + $0x10] sm:$0xf]
    %v2798 = vld [vmem:[%s2792 + $0x14] sm:$0xf]
    %v2799 = vld [vmem:[%s2792 + $0x18] sm:$0xf]
    %v2800 = vld [vmem:[%s2792 + $0x1c] sm:$0xf]
    %v2809 = vunpack.c.l.b16 %v2793
    %v2810 = vunpack.c.l.b16 %v2794
    %v2811 = vunpack.c.l.b16 %v2795
    %v2812 = vunpack.c.l.b16 %v2796
    %v2813 = vunpack.c.l.b16 %v2797
    %v2814 = vunpack.c.l.b16 %v2798
    %v2815 = vunpack.c.l.b16 %v2799
    %v2816 = vunpack.c.l.b16 %v2800
    %v2817 = vpack.c.b16 %v2810, %v2809
    %v2818 = vpack.c.b16 %v2812, %v2811
    %v2819 = vpack.c.b16 %v2814, %v2813
    %v2820 = vpack.c.b16 %v2816, %v2815
    %v2826 = vsel %vm2521, %v2475, 0
    %2828 = vmatprep.subr.bf16.mxu0 0
    %2829 = vmatpush1.bf16.msra.mxu0 %v2817
    %2830 = vmatprep.subr.bf16.mxu0 0
    %2831 = vmatpush1.bf16.msra.mxu0 %v2818
    %2832 = vmatprep.subr.bf16.mxu0 0
    %2833 = vmatpush1.bf16.msra.mxu0 %v2819
    %2834 = vmatprep.subr.bf16.mxu0 0
    %2835 = vmatpush1.bf16.msra.mxu0 %v2820
    %2836 = vmatprep.subr.bf16.mxu0 0
    %2837 = vmatpush1.bf16.msra.mxu0 0
    %2838 = vmatprep.subr.bf16.mxu0 0
    %2839 = vmatpush1.bf16.msra.mxu0 0
    %2840 = vmatprep.subr.bf16.mxu0 0
    %2841 = vmatpush1.bf16.msra.mxu0 0
    %2842 = vmatprep.subr.bf16.mxu0 0
    %2843 = vmatpush1.bf16.msra.mxu0 0
    %2844 = vmatprep.subr.bf16.mxu0 0
    %2845 = vmatpush1.bf16.msra.mxu0 0
    %2846 = vmatprep.subr.bf16.mxu0 0
    %2847 = vmatpush1.bf16.msra.mxu0 0
    %2848 = vmatprep.subr.bf16.mxu0 0
    %2849 = vmatpush1.bf16.msra.mxu0 0
    %2850 = vmatprep.subr.bf16.mxu0 0
    %2851 = vmatpush1.bf16.msra.mxu0 0
    %2852 = vmatprep.subr.bf16.mxu0 0
    %2853 = vmatpush1.bf16.msra.mxu0 0
    %2854 = vmatprep.subr.bf16.mxu0 0
    %2855 = vmatpush1.bf16.msra.mxu0 0
    %2856 = vmatprep.subr.bf16.mxu0 0
    %2857 = vmatpush1.bf16.msra.mxu0 0
    %2858 = vmatprep.subr.bf16.mxu0 0
    %2859 = vmatpush1.bf16.msra.mxu0 0
    %2860 = vmatprep.mubr.bf16.mxu0 0
    %2861 = vmatmul.mubr.bf16.gmra.mrb[0].mxu0 %v2826
    %v2862 = vpop.f32.mrb[0].mxu0
    %v2863 = vadd.f32 0.0, %v2862
    %v2864 = vpop.f32.mrb[0].mxu0
    %v2865 = vpop.f32.mrb[0].mxu0
    %v2866 = vadd.f32 0.0, %v2865
    %v2867 = vpop.f32.mrb[0].mxu0
    %2868 = vdwg.mxu0
    %v2869 = vadd.f32 %v2790, %v2863
    %v2870 = vadd.f32 %v2791, %v2866
    %s2871 = scalar_lea.vmem %s7, 160
    %v2872 = vld [vmem:[%s2871] sm:$0xf]
    %v2873 = vld [vmem:[%s2871 + $0x4] sm:$0xf]
    %v2874 = vld [vmem:[%s2871 + $0x8] sm:$0xf]
    %v2875 = vld [vmem:[%s2871 + $0xc] sm:$0xf]
    %v2876 = vld [vmem:[%s2871 + $0x10] sm:$0xf]
    %v2877 = vld [vmem:[%s2871 + $0x14] sm:$0xf]
    %v2878 = vld [vmem:[%s2871 + $0x18] sm:$0xf]
    %v2879 = vld [vmem:[%s2871 + $0x1c] sm:$0xf]
    %v2888 = vunpack.c.l.b16 %v2872
    %v2889 = vunpack.c.l.b16 %v2873
    %v2890 = vunpack.c.l.b16 %v2874
    %v2891 = vunpack.c.l.b16 %v2875
    %v2892 = vunpack.c.l.b16 %v2876
    %v2893 = vunpack.c.l.b16 %v2877
    %v2894 = vunpack.c.l.b16 %v2878
    %v2895 = vunpack.c.l.b16 %v2879
    %v2896 = vpack.c.b16 %v2889, %v2888
    %v2897 = vpack.c.b16 %v2891, %v2890
    %v2898 = vpack.c.b16 %v2893, %v2892
    %v2899 = vpack.c.b16 %v2895, %v2894
    %v2905 = vsel %vm2521, %v2476, 0
    %2907 = vmatprep.subr.bf16.mxu0 0
    %2908 = vmatpush1.bf16.msra.mxu0 %v2896
    %2909 = vmatprep.subr.bf16.mxu0 0
    %2910 = vmatpush1.bf16.msra.mxu0 %v2897
    %2911 = vmatprep.subr.bf16.mxu0 0
    %2912 = vmatpush1.bf16.msra.mxu0 %v2898
    %2913 = vmatprep.subr.bf16.mxu0 0
    %2914 = vmatpush1.bf16.msra.mxu0 %v2899
    %2915 = vmatprep.subr.bf16.mxu0 0
    %2916 = vmatpush1.bf16.msra.mxu0 0
    %2917 = vmatprep.subr.bf16.mxu0 0
    %2918 = vmatpush1.bf16.msra.mxu0 0
    %2919 = vmatprep.subr.bf16.mxu0 0
    %2920 = vmatpush1.bf16.msra.mxu0 0
    %2921 = vmatprep.subr.bf16.mxu0 0
    %2922 = vmatpush1.bf16.msra.mxu0 0
    %2923 = vmatprep.subr.bf16.mxu0 0
    %2924 = vmatpush1.bf16.msra.mxu0 0
    %2925 = vmatprep.subr.bf16.mxu0 0
    %2926 = vmatpush1.bf16.msra.mxu0 0
    %2927 = vmatprep.subr.bf16.mxu0 0
    %2928 = vmatpush1.bf16.msra.mxu0 0
    %2929 = vmatprep.subr.bf16.mxu0 0
    %2930 = vmatpush1.bf16.msra.mxu0 0
    %2931 = vmatprep.subr.bf16.mxu0 0
    %2932 = vmatpush1.bf16.msra.mxu0 0
    %2933 = vmatprep.subr.bf16.mxu0 0
    %2934 = vmatpush1.bf16.msra.mxu0 0
    %2935 = vmatprep.subr.bf16.mxu0 0
    %2936 = vmatpush1.bf16.msra.mxu0 0
    %2937 = vmatprep.subr.bf16.mxu0 0
    %2938 = vmatpush1.bf16.msra.mxu0 0
    %2939 = vmatprep.mubr.bf16.mxu0 0
    %2940 = vmatmul.mubr.bf16.gmra.mrb[0].mxu0 %v2905
    %v2941 = vpop.f32.mrb[0].mxu0
    %v2942 = vadd.f32 0.0, %v2941
    %v2943 = vpop.f32.mrb[0].mxu0
    %v2944 = vpop.f32.mrb[0].mxu0
    %v2945 = vadd.f32 0.0, %v2944
    %v2946 = vpop.f32.mrb[0].mxu0
    %2947 = vdwg.mxu0
    %v2948 = vadd.f32 %v2869, %v2942
    %v2949 = vadd.f32 %v2870, %v2945
    %s2950 = scalar_lea.vmem %s7, 192
    %v2951 = vld [vmem:[%s2950] sm:$0xf]
    %v2952 = vld [vmem:[%s2950 + $0x4] sm:$0xf]
    %v2953 = vld [vmem:[%s2950 + $0x8] sm:$0xf]
    %v2954 = vld [vmem:[%s2950 + $0xc] sm:$0xf]
    %v2955 = vld [vmem:[%s2950 + $0x10] sm:$0xf]
    %v2956 = vld [vmem:[%s2950 + $0x14] sm:$0xf]
    %v2957 = vld [vmem:[%s2950 + $0x18] sm:$0xf]
    %v2958 = vld [vmem:[%s2950 + $0x1c] sm:$0xf]
    %v2967 = vunpack.c.l.b16 %v2951
    %v2968 = vunpack.c.l.b16 %v2952
    %v2969 = vunpack.c.l.b16 %v2953
    %v2970 = vunpack.c.l.b16 %v2954
    %v2971 = vunpack.c.l.b16 %v2955
    %v2972 = vunpack.c.l.b16 %v2956
    %v2973 = vunpack.c.l.b16 %v2957
    %v2974 = vunpack.c.l.b16 %v2958
    %v2975 = vpack.c.b16 %v2968, %v2967
    %v2976 = vpack.c.b16 %v2970, %v2969
    %v2977 = vpack.c.b16 %v2972, %v2971
    %v2978 = vpack.c.b16 %v2974, %v2973
    %v2984 = vsel %vm2521, %v2477, 0
    %2986 = vmatprep.subr.bf16.mxu0 0
    %2987 = vmatpush1.bf16.msra.mxu0 %v2975
    %2988 = vmatprep.subr.bf16.mxu0 0
    %2989 = vmatpush1.bf16.msra.mxu0 %v2976
    %2990 = vmatprep.subr.bf16.mxu0 0
    %2991 = vmatpush1.bf16.msra.mxu0 %v2977
    %2992 = vmatprep.subr.bf16.mxu0 0
    %2993 = vmatpush1.bf16.msra.mxu0 %v2978
    %2994 = vmatprep.subr.bf16.mxu0 0
    %2995 = vmatpush1.bf16.msra.mxu0 0
    %2996 = vmatprep.subr.bf16.mxu0 0
    %2997 = vmatpush1.bf16.msra.mxu0 0
    %2998 = vmatprep.subr.bf16.mxu0 0
    %2999 = vmatpush1.bf16.msra.mxu0 0
    %3000 = vmatprep.subr.bf16.mxu0 0
    %3001 = vmatpush1.bf16.msra.mxu0 0
    %3002 = vmatprep.subr.bf16.mxu0 0
    %3003 = vmatpush1.bf16.msra.mxu0 0
    %3004 = vmatprep.subr.bf16.mxu0 0
    %3005 = vmatpush1.bf16.msra.mxu0 0
    %3006 = vmatprep.subr.bf16.mxu0 0
    %3007 = vmatpush1.bf16.msra.mxu0 0
    %3008 = vmatprep.subr.bf16.mxu0 0
    %3009 = vmatpush1.bf16.msra.mxu0 0
    %3010 = vmatprep.subr.bf16.mxu0 0
    %3011 = vmatpush1.bf16.msra.mxu0 0
    %3012 = vmatprep.subr.bf16.mxu0 0
    %3013 = vmatpush1.bf16.msra.mxu0 0
    %3014 = vmatprep.subr.bf16.mxu0 0
    %3015 = vmatpush1.bf16.msra.mxu0 0
    %3016 = vmatprep.subr.bf16.mxu0 0
    %3017 = vmatpush1.bf16.msra.mxu0 0
    %3018 = vmatprep.mubr.bf16.mxu0 0
    %3019 = vmatmul.mubr.bf16.gmra.mrb[0].mxu0 %v2984
    %v3020 = vpop.f32.mrb[0].mxu0
    %v3021 = vadd.f32 0.0, %v3020
    %v3022 = vpop.f32.mrb[0].mxu0
    %v3023 = vpop.f32.mrb[0].mxu0
    %v3024 = vadd.f32 0.0, %v3023
    %v3025 = vpop.f32.mrb[0].mxu0
    %3026 = vdwg.mxu0
    %v3027 = vadd.f32 %v2948, %v3021
    %v3028 = vadd.f32 %v2949, %v3024
    %s3029 = scalar_lea.vmem %s7, 224
    %v3030 = vld [vmem:[%s3029] sm:$0xf]
    %v3031 = vld [vmem:[%s3029 + $0x4] sm:$0xf]
    %v3032 = vld [vmem:[%s3029 + $0x8] sm:$0xf]
    %v3033 = vld [vmem:[%s3029 + $0xc] sm:$0xf]
    %v3034 = vld [vmem:[%s3029 + $0x10] sm:$0xf]
    %v3035 = vld [vmem:[%s3029 + $0x14] sm:$0xf]
    %v3036 = vld [vmem:[%s3029 + $0x18] sm:$0xf]
    %v3037 = vld [vmem:[%s3029 + $0x1c] sm:$0xf]
    %v3046 = vunpack.c.l.b16 %v3030
    %v3047 = vunpack.c.l.b16 %v3031
    %v3048 = vunpack.c.l.b16 %v3032
    %v3049 = vunpack.c.l.b16 %v3033
    %v3050 = vunpack.c.l.b16 %v3034
    %v3051 = vunpack.c.l.b16 %v3035
    %v3052 = vunpack.c.l.b16 %v3036
    %v3053 = vunpack.c.l.b16 %v3037
    %v3054 = vpack.c.b16 %v3047, %v3046
    %v3055 = vpack.c.b16 %v3049, %v3048
    %v3056 = vpack.c.b16 %v3051, %v3050
    %v3057 = vpack.c.b16 %v3053, %v3052
    %v3063 = vsel %vm2521, %v2478, 0
    %3065 = vmatprep.subr.bf16.mxu0 0
    %3066 = vmatpush1.bf16.msra.mxu0 %v3054
    %3067 = vmatprep.subr.bf16.mxu0 0
    %3068 = vmatpush1.bf16.msra.mxu0 %v3055
    %3069 = vmatprep.subr.bf16.mxu0 0
    %3070 = vmatpush1.bf16.msra.mxu0 %v3056
    %3071 = vmatprep.subr.bf16.mxu0 0
    %3072 = vmatpush1.bf16.msra.mxu0 %v3057
    %3073 = vmatprep.subr.bf16.mxu0 0
    %3074 = vmatpush1.bf16.msra.mxu0 0
    %3075 = vmatprep.subr.bf16.mxu0 0
    %3076 = vmatpush1.bf16.msra.mxu0 0
    %3077 = vmatprep.subr.bf16.mxu0 0
    %3078 = vmatpush1.bf16.msra.mxu0 0
    %3079 = vmatprep.subr.bf16.mxu0 0
    %3080 = vmatpush1.bf16.msra.mxu0 0
    %3081 = vmatprep.subr.bf16.mxu0 0
    %3082 = vmatpush1.bf16.msra.mxu0 0
    %3083 = vmatprep.subr.bf16.mxu0 0
    %3084 = vmatpush1.bf16.msra.mxu0 0
    %3085 = vmatprep.subr.bf16.mxu0 0
    %3086 = vmatpush1.bf16.msra.mxu0 0
    %3087 = vmatprep.subr.bf16.mxu0 0
    %3088 = vmatpush1.bf16.msra.mxu0 0
    %3089 = vmatprep.subr.bf16.mxu0 0
    %3090 = vmatpush1.bf16.msra.mxu0 0
    %3091 = vmatprep.subr.bf16.mxu0 0
    %3092 = vmatpush1.bf16.msra.mxu0 0
    %3093 = vmatprep.subr.bf16.mxu0 0
    %3094 = vmatpush1.bf16.msra.mxu0 0
    %3095 = vmatprep.subr.bf16.mxu0 0
    %3096 = vmatpush1.bf16.msra.mxu0 0
    %3097 = vmatprep.mubr.bf16.mxu0 0
    %3098 = vmatmul.mubr.bf16.gmra.mrb[0].mxu0 %v3063
    %v3099 = vpop.f32.mrb[0].mxu0
    %v3100 = vadd.f32 0.0, %v3099
    %v3101 = vpop.f32.mrb[0].mxu0
    %v3102 = vpop.f32.mrb[0].mxu0
    %v3103 = vadd.f32 0.0, %v3102
    %v3104 = vpop.f32.mrb[0].mxu0
    %3105 = vdwg.mxu0
    %v3106 = vadd.f32 %v3027, %v3100
    %v3107 = vadd.f32 %v3028, %v3103
    %s3108 = scalar_lea.vmem %s7, 256
    %v3109 = vld [vmem:[%s3108] sm:$0xf]
    %v3110 = vld [vmem:[%s3108 + $0x4] sm:$0xf]
    %v3111 = vld [vmem:[%s3108 + $0x8] sm:$0xf]
    %v3112 = vld [vmem:[%s3108 + $0xc] sm:$0xf]
    %v3113 = vld [vmem:[%s3108 + $0x10] sm:$0xf]
    %v3114 = vld [vmem:[%s3108 + $0x14] sm:$0xf]
    %v3115 = vld [vmem:[%s3108 + $0x18] sm:$0xf]
    %v3116 = vld [vmem:[%s3108 + $0x1c] sm:$0xf]
    %v3125 = vunpack.c.l.b16 %v3109
    %v3126 = vunpack.c.l.b16 %v3110
    %v3127 = vunpack.c.l.b16 %v3111
    %v3128 = vunpack.c.l.b16 %v3112
    %v3129 = vunpack.c.l.b16 %v3113
    %v3130 = vunpack.c.l.b16 %v3114
    %v3131 = vunpack.c.l.b16 %v3115
    %v3132 = vunpack.c.l.b16 %v3116
    %v3133 = vpack.c.b16 %v3126, %v3125
    %v3134 = vpack.c.b16 %v3128, %v3127
    %v3135 = vpack.c.b16 %v3130, %v3129
    %v3136 = vpack.c.b16 %v3132, %v3131
    %v3142 = vsel %vm2521, %v2479, 0
    %3144 = vmatprep.subr.bf16.mxu0 0
    %3145 = vmatpush1.bf16.msra.mxu0 %v3133
    %3146 = vmatprep.subr.bf16.mxu0 0
    %3147 = vmatpush1.bf16.msra.mxu0 %v3134
    %3148 = vmatprep.subr.bf16.mxu0 0
    %3149 = vmatpush1.bf16.msra.mxu0 %v3135
    %3150 = vmatprep.subr.bf16.mxu0 0
    %3151 = vmatpush1.bf16.msra.mxu0 %v3136
    %3152 = vmatprep.subr.bf16.mxu0 0
    %3153 = vmatpush1.bf16.msra.mxu0 0
    %3154 = vmatprep.subr.bf16.mxu0 0
    %3155 = vmatpush1.bf16.msra.mxu0 0
    %3156 = vmatprep.subr.bf16.mxu0 0
    %3157 = vmatpush1.bf16.msra.mxu0 0
    %3158 = vmatprep.subr.bf16.mxu0 0
    %3159 = vmatpush1.bf16.msra.mxu0 0
    %3160 = vmatprep.subr.bf16.mxu0 0
    %3161 = vmatpush1.bf16.msra.mxu0 0
    %3162 = vmatprep.subr.bf16.mxu0 0
    %3163 = vmatpush1.bf16.msra.mxu0 0
    %3164 = vmatprep.subr.bf16.mxu0 0
    %3165 = vmatpush1.bf16.msra.mxu0 0
    %3166 = vmatprep.subr.bf16.mxu0 0
    %3167 = vmatpush1.bf16.msra.mxu0 0
    %3168 = vmatprep.subr.bf16.mxu0 0
    %3169 = vmatpush1.bf16.msra.mxu0 0
    %3170 = vmatprep.subr.bf16.mxu0 0
    %3171 = vmatpush1.bf16.msra.mxu0 0
    %3172 = vmatprep.subr.bf16.mxu0 0
    %3173 = vmatpush1.bf16.msra.mxu0 0
    %3174 = vmatprep.subr.bf16.mxu0 0
    %3175 = vmatpush1.bf16.msra.mxu0 0
    %3176 = vmatprep.mubr.bf16.mxu0 0
    %3177 = vmatmul.mubr.bf16.gmra.mrb[0].mxu0 %v3142
    %v3178 = vpop.f32.mrb[0].mxu0
    %v3179 = vadd.f32 0.0, %v3178
    %v3180 = vpop.f32.mrb[0].mxu0
    %v3181 = vpop.f32.mrb[0].mxu0
    %v3182 = vadd.f32 0.0, %v3181
    %v3183 = vpop.f32.mrb[0].mxu0
    %3184 = vdwg.mxu0
    %v3185 = vadd.f32 %v3106, %v3179
    %v3186 = vadd.f32 %v3107, %v3182
    %v3187 = vld [vmem:[%s8] sm:$0x1]
    %v3189 = vlaneseq
    %v3190 = vshrl.u32 %v3189, 7
    %v3191 = vsub.s32 0, %v3190
    %v3192 = vrot.slane %v3187, %v3191
    %v3194 = vadd.f32 %v3185, %v3192
    %v3195 = vadd.f32 %v3186, %v3192
    %v3196 = vmax.f32 %v3194, 0.0
    %v3197 = vmax.f32 %v3195, 0.0
    %v3198 = vpack.c.bf16 %v3197, %v3196
    %v3199 = vld [vmem:[%s9] sm:$0xff]
    %v3200 = vld [vmem:[%s9 + $0x8] sm:$0xff]
    %v3201 = vld [vmem:[%s9 + $0x10] sm:$0xff]
    %v3202 = vld [vmem:[%s9 + $0x18] sm:$0xff]
    %v3203 = vld [vmem:[%s9 + $0x20] sm:$0xff]
    %v3204 = vld [vmem:[%s9 + $0x28] sm:$0xff]
    %v3205 = vld [vmem:[%s9 + $0x30] sm:$0xff]
    %v3206 = vld [vmem:[%s9 + $0x38] sm:$0xff]
    %v3207 = vld [vmem:[%s10] sm:$0x3]
    %v3209 = vlaneseq
    %v3210 = vshrl.u32 %v3209, 7
    %v3211 = vsub.s32 0, %v3210
    %v3212 = vrot.slane %v3207, %v3211
    %v3213 = vlaneseq
    %v3214 = vshrl.u32 %v3213, 7
    %v3215 = vsub.s32 1, %v3214
    %v3216 = vrot.slane %v3207, %v3215
    %v3227 = vunpack.c.l.b16 %v3199
    %v3228 = vunpack.c.h.b16 %v3199
    %v3229 = vunpack.c.l.b16 %v3200
    %v3230 = vunpack.c.h.b16 %v3200
    %v3231 = vunpack.c.l.b16 %v3201
    %v3232 = vunpack.c.h.b16 %v3201
    %v3233 = vunpack.c.l.b16 %v3202
    %v3234 = vunpack.c.h.b16 %v3202
    %v3235 = vunpack.c.l.b16 %v3203
    %v3236 = vunpack.c.h.b16 %v3203
    %v3237 = vunpack.c.l.b16 %v3204
    %v3238 = vunpack.c.h.b16 %v3204
    %v3239 = vunpack.c.l.b16 %v3205
    %v3240 = vunpack.c.h.b16 %v3205
    %v3241 = vunpack.c.l.b16 %v3206
    %v3242 = vunpack.c.h.b16 %v3206
    %v3243 = vpack.c.b16 %v3229, %v3227
    %v3244 = vpack.c.b16 %v3230, %v3228
    %v3245 = vpack.c.b16 %v3233, %v3231
    %v3246 = vpack.c.b16 %v3234, %v3232
    %v3247 = vpack.c.b16 %v3237, %v3235
    %v3248 = vpack.c.b16 %v3238, %v3236
    %v3249 = vpack.c.b16 %v3241, %v3239
    %v3250 = vpack.c.b16 %v3242, %v3240
    %v3260 = vsel %vm2521, %v3198, 0
    %3262 = vmatprep.subr.bf16.mxu0 %v3244
    %3263 = vmatpush1.bf16.msra.mxu0 %v3243
    %3264 = vmatprep.subr.bf16.mxu0 %v3246
    %3265 = vmatpush1.bf16.msra.mxu0 %v3245
    %3266 = vmatprep.subr.bf16.mxu0 %v3248
    %3267 = vmatpush1.bf16.msra.mxu0 %v3247
    %3268 = vmatprep.subr.bf16.mxu0 %v3250
    %3269 = vmatpush1.bf16.msra.mxu0 %v3249
    %3270 = vmatprep.subr.bf16.mxu0 0
    %3271 = vmatpush1.bf16.msra.mxu0 0
    %3272 = vmatprep.subr.bf16.mxu0 0
    %3273 = vmatpush1.bf16.msra.mxu0 0
    %3274 = vmatprep.subr.bf16.mxu0 0
    %3275 = vmatpush1.bf16.msra.mxu0 0
    %3276 = vmatprep.subr.bf16.mxu0 0
    %3277 = vmatpush1.bf16.msra.mxu0 0
    %3278 = vmatprep.subr.bf16.mxu0 0
    %3279 = vmatpush1.bf16.msra.mxu0 0
    %3280 = vmatprep.subr.bf16.mxu0 0
    %3281 = vmatpush1.bf16.msra.mxu0 0
    %3282 = vmatprep.subr.bf16.mxu0 0
    %3283 = vmatpush1.bf16.msra.mxu0 0
    %3284 = vmatprep.subr.bf16.mxu0 0
    %3285 = vmatpush1.bf16.msra.mxu0 0
    %3286 = vmatprep.subr.bf16.mxu0 0
    %3287 = vmatpush1.bf16.msra.mxu0 0
    %3288 = vmatprep.subr.bf16.mxu0 0
    %3289 = vmatpush1.bf16.msra.mxu0 0
    %3290 = vmatprep.subr.bf16.mxu0 0
    %3291 = vmatpush1.bf16.msra.mxu0 0
    %3292 = vmatprep.subr.bf16.mxu0 0
    %3293 = vmatpush1.bf16.msra.mxu0 0
    %3294 = vmatprep.mubr.bf16.mxu0 0
    %3295 = vmatmul.mubr.bf16.gmra.mrb[0].mxu0 %v3260
    %v3296 = vpop.f32.mrb[0].mxu0
    %v3297 = vadd.f32 %v3212, %v3296
    %v3298 = vpop.f32.mrb[0].mxu0
    %v3299 = vadd.f32 %v3216, %v3298
    %v3300 = vpop.f32.mrb[0].mxu0
    %v3301 = vadd.f32 %v3212, %v3300
    %v3302 = vpop.f32.mrb[0].mxu0
    %v3303 = vadd.f32 %v3216, %v3302
    %3304 = vdwg.mxu0
    %v3305 = vmax.f32 %v3297, 0.0
    %v3306 = vmax.f32 %v3299, 0.0
    %v3307 = vmax.f32 %v3301, 0.0
    %v3308 = vmax.f32 %v3303, 0.0
    %v3309 = vpack.c.bf16 %v3307, %v3305
    %v3310 = vpack.c.bf16 %v3308, %v3306
    %v3311 = vld [vmem:[%s11] sm:$0xff]
    %v3312 = vld [vmem:[%s11 + $0x8] sm:$0xff]
    %v3313 = vld [vmem:[%s11 + $0x10] sm:$0xff]
    %v3314 = vld [vmem:[%s11 + $0x18] sm:$0xff]
    %v3315 = vld [vmem:[%s11 + $0x20] sm:$0xff]
    %v3316 = vld [vmem:[%s11 + $0x28] sm:$0xff]
    %v3317 = vld [vmem:[%s11 + $0x30] sm:$0xff]
    %v3318 = vld [vmem:[%s11 + $0x38] sm:$0xff]
    %v3319 = vld [vmem:[%s11 + $0x40] sm:$0xff]
    %v3320 = vld [vmem:[%s11 + $0x48] sm:$0xff]
    %v3321 = vld [vmem:[%s11 + $0x50] sm:$0xff]
    %v3322 = vld [vmem:[%s11 + $0x58] sm:$0xff]
    %v3323 = vld [vmem:[%s11 + $0x60] sm:$0xff]
    %v3324 = vld [vmem:[%s11 + $0x68] sm:$0xff]
    %v3325 = vld [vmem:[%s11 + $0x70] sm:$0xff]
    %v3326 = vld [vmem:[%s11 + $0x78] sm:$0xff]
    %v3327 = vld [vmem:[%s11 + $0x80] sm:$0xff]
    %v3328 = vld [vmem:[%s11 + $0x88] sm:$0xff]
    %v3329 = vld [vmem:[%s11 + $0x90] sm:$0xff]
    %v3330 = vld [vmem:[%s11 + $0x98] sm:$0xff]
    %v3331 = vld [vmem:[%s11 + $0xa0] sm:$0xff]
    %v3332 = vld [vmem:[%s11 + $0xa8] sm:$0xff]
    %v3333 = vld [vmem:[%s11 + $0xb0] sm:$0xff]
    %v3334 = vld [vmem:[%s11 + $0xb8] sm:$0xff]
    %v3335 = vld [vmem:[%s11 + $0xc0] sm:$0xff]
    %v3336 = vld [vmem:[%s11 + $0xc8] sm:$0xff]
    %v3337 = vld [vmem:[%s11 + $0xd0] sm:$0xff]
    %v3338 = vld [vmem:[%s11 + $0xd8] sm:$0xff]
    %v3339 = vld [vmem:[%s11 + $0xe0] sm:$0xff]
    %v3340 = vld [vmem:[%s11 + $0xe8] sm:$0xff]
    %v3341 = vld [vmem:[%s11 + $0xf0] sm:$0xff]
    %v3342 = vld [vmem:[%s11 + $0xf8] sm:$0xff]
    %v3343 = vld [vmem:[%s12] sm:$0x3]
    %v3345 = vlaneseq
    %v3346 = vshrl.u32 %v3345, 7
    %v3347 = vsub.s32 0, %v3346
    %v3348 = vrot.slane %v3343, %v3347
    %v3349 = vlaneseq
    %v3350 = vshrl.u32 %v3349, 7
    %v3351 = vsub.s32 1, %v3350
    %v3352 = vrot.slane %v3343, %v3351
    %v3387 = vunpack.c.l.b16 %v3311
    %v3388 = vunpack.c.h.b16 %v3311
    %v3389 = vunpack.c.l.b16 %v3312
    %v3390 = vunpack.c.h.b16 %v3312
    %v3391 = vunpack.c.l.b16 %v3313
    %v3392 = vunpack.c.h.b16 %v3313
    %v3393 = vunpack.c.l.b16 %v3314
    %v3394 = vunpack.c.h.b16 %v3314
    %v3395 = vunpack.c.l.b16 %v3315
    %v3396 = vunpack.c.h.b16 %v3315
    %v3397 = vunpack.c.l.b16 %v3316
    %v3398 = vunpack.c.h.b16 %v3316
    %v3399 = vunpack.c.l.b16 %v3317
    %v3400 = vunpack.c.h.b16 %v3317
    %v3401 = vunpack.c.l.b16 %v3318
    %v3402 = vunpack.c.h.b16 %v3318
    %v3403 = vunpack.c.l.b16 %v3319
    %v3404 = vunpack.c.h.b16 %v3319
    %v3405 = vunpack.c.l.b16 %v3320
    %v3406 = vunpack.c.h.b16 %v3320
    %v3407 = vunpack.c.l.b16 %v3321
    %v3408 = vunpack.c.h.b16 %v3321
    %v3409 = vunpack.c.l.b16 %v3322
    %v3410 = vunpack.c.h.b16 %v3322
    %v3411 = vunpack.c.l.b16 %v3323
    %v3412 = vunpack.c.h.b16 %v3323
    %v3413 = vunpack.c.l.b16 %v3324
    %v3414 = vunpack.c.h.b16 %v3324
    %v3415 = vunpack.c.l.b16 %v3325
    %v3416 = vunpack.c.h.b16 %v3325
    %v3417 = vunpack.c.l.b16 %v3326
    %v3418 = vunpack.c.h.b16 %v3326
    %v3419 = vunpack.c.l.b16 %v3327
    %v3420 = vunpack.c.h.b16 %v3327
    %v3421 = vunpack.c.l.b16 %v3328
    %v3422 = vunpack.c.h.b16 %v3328
    %v3423 = vunpack.c.l.b16 %v3329
    %v3424 = vunpack.c.h.b16 %v3329
    %v3425 = vunpack.c.l.b16 %v3330
    %v3426 = vunpack.c.h.b16 %v3330
    %v3427 = vunpack.c.l.b16 %v3331
    %v3428 = vunpack.c.h.b16 %v3331
    %v3429 = vunpack.c.l.b16 %v3332
    %v3430 = vunpack.c.h.b16 %v3332
    %v3431 = vunpack.c.l.b16 %v3333
    %v3432 = vunpack.c.h.b16 %v3333
    %v3433 = vunpack.c.l.b16 %v3334
    %v3434 = vunpack.c.h.b16 %v3334
    %v3435 = vunpack.c.l.b16 %v3335
    %v3436 = vunpack.c.h.b16 %v3335
    %v3437 = vunpack.c.l.b16 %v3336
    %v3438 = vunpack.c.h.b16 %v3336
    %v3439 = vunpack.c.l.b16 %v3337
    %v3440 = vunpack.c.h.b16 %v3337
    %v3441 = vunpack.c.l.b16 %v3338
    %v3442 = vunpack.c.h.b16 %v3338
    %v3443 = vunpack.c.l.b16 %v3339
    %v3444 = vunpack.c.h.b16 %v3339
    %v3445 = vunpack.c.l.b16 %v3340
    %v3446 = vunpack.c.h.b16 %v3340
    %v3447 = vunpack.c.l.b16 %v3341
    %v3448 = vunpack.c.h.b16 %v3341
    %v3449 = vunpack.c.l.b16 %v3342
    %v3450 = vunpack.c.h.b16 %v3342
    %v3451 = vpack.c.b16 %v3389, %v3387
    %v3452 = vpack.c.b16 %v3390, %v3388
    %v3453 = vpack.c.b16 %v3393, %v3391
    %v3454 = vpack.c.b16 %v3394, %v3392
    %v3455 = vpack.c.b16 %v3397, %v3395
    %v3456 = vpack.c.b16 %v3398, %v3396
    %v3457 = vpack.c.b16 %v3401, %v3399
    %v3458 = vpack.c.b16 %v3402, %v3400
    %v3459 = vpack.c.b16 %v3405, %v3403
    %v3460 = vpack.c.b16 %v3406, %v3404
    %v3461 = vpack.c.b16 %v3409, %v3407
    %v3462 = vpack.c.b16 %v3410, %v3408
    %v3463 = vpack.c.b16 %v3413, %v3411
    %v3464 = vpack.c.b16 %v3414, %v3412
    %v3465 = vpack.c.b16 %v3417, %v3415
    %v3466 = vpack.c.b16 %v3418, %v3416
    %v3467 = vpack.c.b16 %v3421, %v3419
    %v3468 = vpack.c.b16 %v3422, %v3420
    %v3469 = vpack.c.b16 %v3425, %v3423
    %v3470 = vpack.c.b16 %v3426, %v3424
    %v3471 = vpack.c.b16 %v3429, %v3427
    %v3472 = vpack.c.b16 %v3430, %v3428
    %v3473 = vpack.c.b16 %v3433, %v3431
    %v3474 = vpack.c.b16 %v3434, %v3432
    %v3475 = vpack.c.b16 %v3437, %v3435
    %v3476 = vpack.c.b16 %v3438, %v3436
    %v3477 = vpack.c.b16 %v3441, %v3439
    %v3478 = vpack.c.b16 %v3442, %v3440
    %v3479 = vpack.c.b16 %v3445, %v3443
    %v3480 = vpack.c.b16 %v3446, %v3444
    %v3481 = vpack.c.b16 %v3449, %v3447
    %v3482 = vpack.c.b16 %v3450, %v3448
    %3515 = vmatprep.subr.bf16.mxu0 %v3452
    %3516 = vmatpush1.bf16.msra.mxu0 %v3451
    %3517 = vmatprep.subr.bf16.mxu0 %v3454
    %3518 = vmatpush1.bf16.msra.mxu0 %v3453
    %3519 = vmatprep.subr.bf16.mxu0 %v3456
    %3520 = vmatpush1.bf16.msra.mxu0 %v3455
    %3521 = vmatprep.subr.bf16.mxu0 %v3458
    %3522 = vmatpush1.bf16.msra.mxu0 %v3457
    %3523 = vmatprep.subr.bf16.mxu0 %v3460
    %3524 = vmatpush1.bf16.msra.mxu0 %v3459
    %3525 = vmatprep.subr.bf16.mxu0 %v3462
    %3526 = vmatpush1.bf16.msra.mxu0 %v3461
    %3527 = vmatprep.subr.bf16.mxu0 %v3464
    %3528 = vmatpush1.bf16.msra.mxu0 %v3463
    %3529 = vmatprep.subr.bf16.mxu0 %v3466
    %3530 = vmatpush1.bf16.msra.mxu0 %v3465
    %3531 = vmatprep.subr.bf16.mxu0 %v3468
    %3532 = vmatpush1.bf16.msra.mxu0 %v3467
    %3533 = vmatprep.subr.bf16.mxu0 %v3470
    %3534 = vmatpush1.bf16.msra.mxu0 %v3469
    %3535 = vmatprep.subr.bf16.mxu0 %v3472
    %3536 = vmatpush1.bf16.msra.mxu0 %v3471
    %3537 = vmatprep.subr.bf16.mxu0 %v3474
    %3538 = vmatpush1.bf16.msra.mxu0 %v3473
    %3539 = vmatprep.subr.bf16.mxu0 %v3476
    %3540 = vmatpush1.bf16.msra.mxu0 %v3475
    %3541 = vmatprep.subr.bf16.mxu0 %v3478
    %3542 = vmatpush1.bf16.msra.mxu0 %v3477
    %3543 = vmatprep.subr.bf16.mxu0 %v3480
    %3544 = vmatpush1.bf16.msra.mxu0 %v3479
    %3545 = vmatprep.subr.bf16.mxu0 %v3482
    %3546 = vmatpush1.bf16.msra.mxu0 %v3481
    %3547 = vmatprep.mubr.bf16.mxu0 %v3310
    %3548 = vmatmul.mubr.bf16.gmra.mrb[0].mxu0 %v3309
    %v3549 = vpop.f32.mrb[0].mxu0
    %v3550 = vadd.f32 %v3348, %v3549
    %v3551 = vpop.f32.mrb[0].mxu0
    %v3552 = vadd.f32 %v3352, %v3551
    %v3553 = vpop.f32.mrb[0].mxu0
    %v3554 = vadd.f32 %v3348, %v3553
    %v3555 = vpop.f32.mrb[0].mxu0
    %v3556 = vadd.f32 %v3352, %v3555
    %3557 = vdwg.mxu0
    %v3558 = vmax.f32 %v3550, 0.0
    %v3559 = vmax.f32 %v3552, 0.0
    %v3560 = vmax.f32 %v3554, 0.0
    %v3561 = vmax.f32 %v3556, 0.0
    %v3562 = vpack.c.bf16 %v3560, %v3558
    %v3563 = vpack.c.bf16 %v3561, %v3559
    %v3564 = vld [vmem:[%s13] sm:$0xff]
    %v3565 = vld [vmem:[%s13 + $0x8] sm:$0xff]
    %v3566 = vld [vmem:[%s13 + $0x10] sm:$0xff]
    %v3567 = vld [vmem:[%s13 + $0x18] sm:$0xff]
    %v3568 = vld [vmem:[%s13 + $0x20] sm:$0xff]
    %v3569 = vld [vmem:[%s13 + $0x28] sm:$0xff]
    %v3570 = vld [vmem:[%s13 + $0x30] sm:$0xff]
    %v3571 = vld [vmem:[%s13 + $0x38] sm:$0xff]
    %v3572 = vld [vmem:[%s13 + $0x40] sm:$0xff]
    %v3573 = vld [vmem:[%s13 + $0x48] sm:$0xff]
    %v3574 = vld [vmem:[%s13 + $0x50] sm:$0xff]
    %v3575 = vld [vmem:[%s13 + $0x58] sm:$0xff]
    %v3576 = vld [vmem:[%s13 + $0x60] sm:$0xff]
    %v3577 = vld [vmem:[%s13 + $0x68] sm:$0xff]
    %v3578 = vld [vmem:[%s13 + $0x70] sm:$0xff]
    %v3579 = vld [vmem:[%s13 + $0x78] sm:$0xff]
    %v3580 = vld [vmem:[%s13 + $0x80] sm:$0xff]
    %v3581 = vld [vmem:[%s13 + $0x88] sm:$0xff]
    %v3582 = vld [vmem:[%s13 + $0x90] sm:$0xff]
    %v3583 = vld [vmem:[%s13 + $0x98] sm:$0xff]
    %v3584 = vld [vmem:[%s13 + $0xa0] sm:$0xff]
    %v3585 = vld [vmem:[%s13 + $0xa8] sm:$0xff]
    %v3586 = vld [vmem:[%s13 + $0xb0] sm:$0xff]
    %v3587 = vld [vmem:[%s13 + $0xb8] sm:$0xff]
    %v3588 = vld [vmem:[%s13 + $0xc0] sm:$0xff]
    %v3589 = vld [vmem:[%s13 + $0xc8] sm:$0xff]
    %v3590 = vld [vmem:[%s13 + $0xd0] sm:$0xff]
    %v3591 = vld [vmem:[%s13 + $0xd8] sm:$0xff]
    %v3592 = vld [vmem:[%s13 + $0xe0] sm:$0xff]
    %v3593 = vld [vmem:[%s13 + $0xe8] sm:$0xff]
    %v3594 = vld [vmem:[%s13 + $0xf0] sm:$0xff]
    %v3595 = vld [vmem:[%s13 + $0xf8] sm:$0xff]
    %v3628 = vunpack.c.l.b16 %v3564
    %v3629 = vunpack.c.h.b16 %v3564
    %v3630 = vunpack.c.l.b16 %v3565
    %v3631 = vunpack.c.h.b16 %v3565
    %v3632 = vunpack.c.l.b16 %v3566
    %v3633 = vunpack.c.h.b16 %v3566
    %v3634 = vunpack.c.l.b16 %v3567
    %v3635 = vunpack.c.h.b16 %v3567
    %v3636 = vunpack.c.l.b16 %v3568
    %v3637 = vunpack.c.h.b16 %v3568
    %v3638 = vunpack.c.l.b16 %v3569
    %v3639 = vunpack.c.h.b16 %v3569
    %v3640 = vunpack.c.l.b16 %v3570
    %v3641 = vunpack.c.h.b16 %v3570
    %v3642 = vunpack.c.l.b16 %v3571
    %v3643 = vunpack.c.h.b16 %v3571
    %v3644 = vunpack.c.l.b16 %v3572
    %v3645 = vunpack.c.h.b16 %v3572
    %v3646 = vunpack.c.l.b16 %v3573
    %v3647 = vunpack.c.h.b16 %v3573
    %v3648 = vunpack.c.l.b16 %v3574
    %v3649 = vunpack.c.h.b16 %v3574
    %v3650 = vunpack.c.l.b16 %v3575
    %v3651 = vunpack.c.h.b16 %v3575
    %v3652 = vunpack.c.l.b16 %v3576
    %v3653 = vunpack.c.h.b16 %v3576
    %v3654 = vunpack.c.l.b16 %v3577
    %v3655 = vunpack.c.h.b16 %v3577
    %v3656 = vunpack.c.l.b16 %v3578
    %v3657 = vunpack.c.h.b16 %v3578
    %v3658 = vunpack.c.l.b16 %v3579
    %v3659 = vunpack.c.h.b16 %v3579
    %v3660 = vunpack.c.l.b16 %v3580
    %v3661 = vunpack.c.h.b16 %v3580
    %v3662 = vunpack.c.l.b16 %v3581
    %v3663 = vunpack.c.h.b16 %v3581
    %v3664 = vunpack.c.l.b16 %v3582
    %v3665 = vunpack.c.h.b16 %v3582
    %v3666 = vunpack.c.l.b16 %v3583
    %v3667 = vunpack.c.h.b16 %v3583
    %v3668 = vunpack.c.l.b16 %v3584
    %v3669 = vunpack.c.h.b16 %v3584
    %v3670 = vunpack.c.l.b16 %v3585
    %v3671 = vunpack.c.h.b16 %v3585
    %v3672 = vunpack.c.l.b16 %v3586
    %v3673 = vunpack.c.h.b16 %v3586
    %v3674 = vunpack.c.l.b16 %v3587
    %v3675 = vunpack.c.h.b16 %v3587
    %v3676 = vunpack.c.l.b16 %v3588
    %v3677 = vunpack.c.h.b16 %v3588
    %v3678 = vunpack.c.l.b16 %v3589
    %v3679 = vunpack.c.h.b16 %v3589
    %v3680 = vunpack.c.l.b16 %v3590
    %v3681 = vunpack.c.h.b16 %v3590
    %v3682 = vunpack.c.l.b16 %v3591
    %v3683 = vunpack.c.h.b16 %v3591
    %v3684 = vunpack.c.l.b16 %v3592
    %v3685 = vunpack.c.h.b16 %v3592
    %v3686 = vunpack.c.l.b16 %v3593
    %v3687 = vunpack.c.h.b16 %v3593
    %v3688 = vunpack.c.l.b16 %v3594
    %v3689 = vunpack.c.h.b16 %v3594
    %v3690 = vunpack.c.l.b16 %v3595
    %v3691 = vunpack.c.h.b16 %v3595
    %v3692 = vpack.c.b16 %v3630, %v3628
    %v3693 = vpack.c.b16 %v3631, %v3629
    %v3694 = vpack.c.b16 %v3634, %v3632
    %v3695 = vpack.c.b16 %v3635, %v3633
    %v3696 = vpack.c.b16 %v3638, %v3636
    %v3697 = vpack.c.b16 %v3639, %v3637
    %v3698 = vpack.c.b16 %v3642, %v3640
    %v3699 = vpack.c.b16 %v3643, %v3641
    %v3700 = vpack.c.b16 %v3646, %v3644
    %v3701 = vpack.c.b16 %v3647, %v3645
    %v3702 = vpack.c.b16 %v3650, %v3648
    %v3703 = vpack.c.b16 %v3651, %v3649
    %v3704 = vpack.c.b16 %v3654, %v3652
    %v3705 = vpack.c.b16 %v3655, %v3653
    %v3706 = vpack.c.b16 %v3658, %v3656
    %v3707 = vpack.c.b16 %v3659, %v3657
    %v3708 = vpack.c.b16 %v3662, %v3660
    %v3709 = vpack.c.b16 %v3663, %v3661
    %v3710 = vpack.c.b16 %v3666, %v3664
    %v3711 = vpack.c.b16 %v3667, %v3665
    %v3712 = vpack.c.b16 %v3670, %v3668
    %v3713 = vpack.c.b16 %v3671, %v3669
    %v3714 = vpack.c.b16 %v3674, %v3672
    %v3715 = vpack.c.b16 %v3675, %v3673
    %v3716 = vpack.c.b16 %v3678, %v3676
    %v3717 = vpack.c.b16 %v3679, %v3677
    %v3718 = vpack.c.b16 %v3682, %v3680
    %v3719 = vpack.c.b16 %v3683, %v3681
    %v3720 = vpack.c.b16 %v3686, %v3684
    %v3721 = vpack.c.b16 %v3687, %v3685
    %v3722 = vpack.c.b16 %v3690, %v3688
    %v3723 = vpack.c.b16 %v3691, %v3689
    %3756 = vmatprep.subr.bf16.mxu0 %v3693
    %3757 = vmatpush1.bf16.msra.mxu0 %v3692
    %3758 = vmatprep.subr.bf16.mxu0 %v3695
    %3759 = vmatpush1.bf16.msra.mxu0 %v3694
    %3760 = vmatprep.subr.bf16.mxu0 %v3697
    %3761 = vmatpush1.bf16.msra.mxu0 %v3696
    %3762 = vmatprep.subr.bf16.mxu0 %v3699
    %3763 = vmatpush1.bf16.msra.mxu0 %v3698
    %3764 = vmatprep.subr.bf16.mxu0 %v3701
    %3765 = vmatpush1.bf16.msra.mxu0 %v3700
    %3766 = vmatprep.subr.bf16.mxu0 %v3703
    %3767 = vmatpush1.bf16.msra.mxu0 %v3702
    %3768 = vmatprep.subr.bf16.mxu0 %v3705
    %3769 = vmatpush1.bf16.msra.mxu0 %v3704
    %3770 = vmatprep.subr.bf16.mxu0 %v3707
    %3771 = vmatpush1.bf16.msra.mxu0 %v3706
    %3772 = vmatprep.subr.bf16.mxu0 %v3709
    %3773 = vmatpush1.bf16.msra.mxu0 %v3708
    %3774 = vmatprep.subr.bf16.mxu0 %v3711
    %3775 = vmatpush1.bf16.msra.mxu0 %v3710
    %3776 = vmatprep.subr.bf16.mxu0 %v3713
    %3777 = vmatpush1.bf16.msra.mxu0 %v3712
    %3778 = vmatprep.subr.bf16.mxu0 %v3715
    %3779 = vmatpush1.bf16.msra.mxu0 %v3714
    %3780 = vmatprep.subr.bf16.mxu0 %v3717
    %3781 = vmatpush1.bf16.msra.mxu0 %v3716
    %3782 = vmatprep.subr.bf16.mxu0 %v3719
    %3783 = vmatpush1.bf16.msra.mxu0 %v3718
    %3784 = vmatprep.subr.bf16.mxu0 %v3721
    %3785 = vmatpush1.bf16.msra.mxu0 %v3720
    %3786 = vmatprep.subr.bf16.mxu0 %v3723
    %3787 = vmatpush1.bf16.msra.mxu0 %v3722
    %3788 = vmatprep.mubr.bf16.mxu0 %v3563
    %3789 = vmatmul.mubr.bf16.gmra.mrb[0].mxu0 %v3562
    %v3790 = vpop.f32.mrb[0].mxu0
    %v3791 = vadd.f32 0.0, %v3790
    %v3792 = vpop.f32.mrb[0].mxu0
    %v3793 = vadd.f32 0.0, %v3792
    %v3794 = vpop.f32.mrb[0].mxu0
    %v3795 = vpop.f32.mrb[0].mxu0
    %3796 = vdwg.mxu0
    %v3797 = vld [vmem:[%s14] sm:$0x1]
    %v3799 = vlaneseq
    %v3800 = vshrl.u32 %v3799, 7
    %v3801 = vsub.s32 0, %v3800
    %v3802 = vrot.slane %v3797, %v3801
    %v3804 = vadd.f32 %v3791, %v3802
    %vm3805 = vcmask 41984
    %3806 = vst.msk [vmem:[#allocation3] sm:$0x3] %vm3805, %v3804
    %v3807 = vld [vmem:[%s15] sm:$0x1]
    %v3809 = vlaneseq
    %v3810 = vshrl.u32 %v3809, 7
    %v3811 = vsub.s32 0, %v3810
    %v3812 = vrot.slane %v3807, %v3811
    %v3814 = vadd.f32 %v3793, %v3812
    %v3815 = vmax.f32 %v3814, -20.0
    %v3816 = vmin.f32 %v3815, 2.0
    %3817 = vst.msk [vmem:[#allocation5] sm:$0x3] %vm3805, %v3816
    // Predicated region
    $region66: #{policy_network_forward.1} parent=1 // pred_check
      _
    $region67: #{policy_network_forward.1} parent=1 // pred_check_branch
      %3819 = sbr.rel (0) target = $region69
    $region68: #{policy_network_forward.1} parent=1 // pred_region
      %s3821 = ssub.s32 32, 32
      %3822 = vsyncadd [#allocation4], %s3821
      %s3824 = sshll.u32 [#allocation3], 4
      %s3825 = int_to_ptr.vmem [resolvable:$true] %s3824
      %3827 = dma.vmem_to_hbm [thread:$0]  %s3825, 32, %s16, [#allocation4]
    $region69: #{policy_network_forward.1} parent=1 // pred_fallthru
      _
    // Predicated region
    $region70: #{policy_network_forward.1} parent=1 // pred_check
      _
    $region71: #{policy_network_forward.1} parent=1 // pred_check_branch
      %3829 = sbr.rel (0) target = $region73
    $region72: #{policy_network_forward.1} parent=1 // pred_region
      %s3831 = ssub.s32 32, 32
      %3832 = vsyncadd [#allocation6], %s3831
      %s3834 = sshll.u32 [#allocation5], 4
      %s3835 = int_to_ptr.vmem [resolvable:$true] %s3834
      %3837 = dma.vmem_to_hbm [thread:$0]  %s3835, 32, %s17, [#allocation6]
    $region73: #{policy_network_forward.1} parent=1 // pred_fallthru
      _
    // Predicated region
    $region74: #{policy_network_forward.1} parent=1 // pred_check
      _
    $region75: #{policy_network_forward.1} parent=1 // pred_check_branch
      %3839 = sbr.rel (0) target = $region77
    $region76: #{policy_network_forward.1} parent=1 // pred_region
      %3840 = dma.done [#allocation4], 32
    $region77: #{policy_network_forward.1} parent=1 // pred_fallthru
      _
    // Predicated region
    $region78: #{policy_network_forward.1} parent=1 // pred_check
      _
    $region79: #{policy_network_forward.1} parent=1 // pred_check_branch
      %3842 = sbr.rel (0) target = $region81
    $region80: #{policy_network_forward.1} parent=1 // pred_region
      %3843 = dma.done [#allocation6], 32
    $region81: #{policy_network_forward.1} parent=1 // pred_fallthru
      _
    %3844 = vsyncpa [#allocation4], 1
    %3845 = vsyncpa [#allocation6], 1

</llo_original>
